<compile_context>
chip_gen: v6e
topology: v6e:2x2x1
jax: 0.10.0
libtpu: 0.0.40
codegen_flags: <defaults>
</compile_context>

<pallas_src>
import functools

import jax
import jax.numpy as jnp
import numpy as np
from jax.experimental import pallas as pl
from jax.experimental.pallas import tpu as pltpu


# ---------------------------------------------------------------------------
# Static layout of the packed bf16 constants slab (selectors + fc2/fc3).
# Used identically by prepare_params (host packing) and the kernel (slicing).
# ---------------------------------------------------------------------------
def _const_layout(bb):
    h1_in, h1_out = 32 * bb - 4, 14 * bb          # conv1-act rows -> p1 rows
    h2_in, h2_out = 14 * bb - 4, 5 * bb           # conv2-act rows -> p2 rows
    shapes = [
        ("sh1e", h1_out, h1_in), ("sh1o", h1_out, h1_in),
        ("sh2e", h2_out, h2_in), ("sh2o", h2_out, h2_in),
        ("sw1e", 168, 84), ("sw1o", 168, 84),
        ("sw2e", 160, 80), ("sw2o", 160, 80),
        ("wf2", 120, 84), ("wf3", 84, 10),
    ]
    layout, off, width = {}, 0, 0
    for name, r, c in shapes:
        layout[name] = (off, r, c)
        off += r
        off = -(-off // 16) * 16                  # keep bf16 sublane-tile aligned
        width = max(width, c)
    return layout, off, width


# ---------------------------------------------------------------------------
# The fused LeNet forward kernel (one batch block of `bb` images per step)
# ---------------------------------------------------------------------------
def _lenet_kernel(x_ref, band1_ref, band2_ref, wf1_ref, cst_ref, bias_ref,
                  out_ref, *, bb, layout):
    f32, bf16 = jnp.float32, jnp.bfloat16

    def dotf(a, b):                               # bf16 x bf16 -> f32 accumulate
        return jnp.dot(a, b, preferred_element_type=f32)

    def cst(name):                                # static slice of packed consts
        off, r, c = layout[name]
        return cst_ref[off:off + r, 0:c]

    # Hoisted constant loads (once per grid step).
    sh1e, sh1o = cst("sh1e"), cst("sh1o")         # (14bb, 32bb-4) row-pool sel
    sh2e, sh2o = cst("sh2e"), cst("sh2o")         # (5bb, 14bb-4)
    sw1e, sw1o = cst("sw1e"), cst("sw1o")         # (168, 84)      col-pool sel
    sw2e, sw2o = cst("sw2e"), cst("sw2o")         # (160, 80)
    wf2, wf3 = cst("wf2"), cst("wf3")             # (120, 84), (84, 10) bf16
    b1 = bias_ref[0:1, 0:168]                     # f32 biases, tiled over width
    b2 = bias_ref[1:2, 0:160]
    bf1 = bias_ref[2:3, 0:120]
    bf2 = bias_ref[3:4, 0:84]
    bf3 = bias_ref[4:5, 0:10]

    # ---- conv1: 5 accumulating matmuls over kernel rows, whole batch -------
    # x block: (bb*32, 96) = images stacked along rows, layout (H, W*C) bf16.
    # band1[di]: (96, 168).  acc row o (valid for image bi iff 32bi<=o<=32bi+27)
    # accumulates x rows o..o+4; cross-image rows are garbage but never pooled.
    H1 = 32 * bb - 4
    acc1 = dotf(x_ref[0:H1, :], band1_ref[0])
    for di in range(1, 5):
        acc1 = acc1 + dotf(x_ref[di:di + H1, :], band1_ref[di])
    a1 = jnp.maximum(acc1 + b1, 0.0).astype(bf16)                 # (H1, 168)

    # ---- relu+2x2 maxpool via exact 0/1-selection matmuls (bf16 operands) ---
    hp1 = jnp.maximum(dotf(sh1e, a1), dotf(sh1o, a1)).astype(bf16)   # (14bb, 168)
    p1 = jnp.maximum(dotf(hp1, sw1e), dotf(hp1, sw1o)).astype(bf16)  # (14bb, 84)

    # ---- conv2 (same batched banded scheme, per-image stride 14 in p1) -----
    H2 = 14 * bb - 4
    acc2 = dotf(p1[0:H2, :], band2_ref[0])
    for di in range(1, 5):
        acc2 = acc2 + dotf(p1[di:di + H2, :], band2_ref[di])
    a2 = jnp.maximum(acc2 + b2, 0.0).astype(bf16)                 # (H2, 160)
    hp2 = jnp.maximum(dotf(sh2e, a2), dotf(sh2o, a2)).astype(bf16)   # (5bb, 160)
    # sel_h2 emits p2 rows in h-major order (row h*bb + bi), so each fc1 step
    # below reads a contiguous (bb, 80) slice -- no per-image gathers.
    p2 = jnp.maximum(dotf(hp2, sw2e), dotf(hp2, sw2o)).astype(bf16)  # (5bb, 80)

    # ---- fc1: contraction over (h, w, c) as 5 accumulating (bb,80) matmuls -
    accf = dotf(p2[0:bb, :], wf1_ref[0])
    for h in range(1, 5):
        accf = accf + dotf(p2[h * bb:(h + 1) * bb, :], wf1_ref[h])
    h1 = jnp.maximum(accf + bf1, 0.0).astype(bf16)                # (bb, 120)
    h2 = jnp.maximum(dotf(h1, wf2) + bf2, 0.0).astype(bf16)       # (bb, 84)
    out_ref[...] = dotf(h2, wf3) + bf3                            # single store


# ---------------------------------------------------------------------------
# Wrapper
# ---------------------------------------------------------------------------
def net_forward(x, prep, *, block_b=2):
    """x: NCHW float32 (B, 3, 32, 32) -> logits (B, 10)."""
    B = x.shape[0]
    assert B % block_b == 0
    layout, total_rows, width = _const_layout(block_b)
    assert prep["consts"].shape == (total_rows, width), "prep/block_b mismatch"

    # Layout plumbing only: NCHW -> (B*H, W*C), channels fastest, bf16 once.
    x_r = (jnp.transpose(x, (0, 2, 3, 1))
              .reshape(B * 32, 32 * 3)
              .astype(jnp.bfloat16))

    def full(a):                                   # whole-array (resident) spec
        return pl.BlockSpec(a.shape, lambda i, nd=a.ndim: (0,) * nd)

    kernel = functools.partial(_lenet_kernel, bb=block_b, layout=layout)
    return pl.pallas_call(
        kernel,
        out_shape=jax.ShapeDtypeStruct((B, 10), jnp.float32),
        grid=(B // block_b,),
        in_specs=[
            pl.BlockSpec((block_b * 32, 96), lambda i: (i, 0)),   # x batch block
            full(prep["band1"]), full(prep["band2"]), full(prep["wf1"]),
            full(prep["consts"]), full(prep["biases"]),
        ],
        out_specs=pl.BlockSpec((block_b, 10), lambda i: (i, 0)),
        compiler_params=pltpu.CompilerParams(
            dimension_semantics=("parallel",)),
    )(x_r, prep["band1"], prep["band2"], prep["wf1"],
      prep["consts"], prep["biases"])


# ---------------------------------------------------------------------------
# One-time host-side weight preparation
# ---------------------------------------------------------------------------
def prepare_params(params, *, block_b=2):
    (w1, b1, w2, b2, wf1, bf1, wf2, bf2, wf3, bf3) = [
        np.asarray(p, np.float32) for p in params]
    bb = block_b

    def conv_band(w, w_in, ow):
        # (F, C, KH, KW) -> (KH, w_in*C, ow*F) block-Toeplitz weight so that
        # conv(x) row o == sum_kh  x[row o+kh, :] @ band[kh].
        F, C, KH, KW = w.shape
        band = np.zeros((KH, w_in * C, ow * F), np.float32)
        for di in range(KH):
            for dj in range(KW):
                for c in range(C):
                    for o in range(ow):
                        band[di, (o + dj) * C + c, o * F:(o + 1) * F] = w[:, c, di, dj]
        return band

    def pool_cols(ow, f):          # (2, ow*f, (ow//2)*f): even/odd width pick
        pw = ow // 2
        s = np.zeros((2, ow * f, pw * f), np.float32)
        for j in range(pw):
            for k in range(f):
                s[0, (2 * j) * f + k, j * f + k] = 1.0
                s[1, (2 * j + 1) * f + k, j * f + k] = 1.0
        return s

    # Row-pool selectors over the batch-stacked activations.
    # pool1: image-major output rows (14 per image), input stride 32 per image.
    sh1 = np.zeros((2, 14 * bb, 32 * bb - 4), np.float32)
    for bi in range(bb):
        for i in range(14):
            sh1[0, 14 * bi + i, 32 * bi + 2 * i] = 1.0
            sh1[1, 14 * bi + i, 32 * bi + 2 * i + 1] = 1.0
    # pool2: h-major output rows (row h*bb + bi), input stride 14 per image.
    sh2 = np.zeros((2, 5 * bb, 14 * bb - 4), np.float32)
    for bi in range(bb):
        for h in range(5):
            sh2[0, h * bb + bi, 14 * bi + 2 * h] = 1.0
            sh2[1, h * bb + bi, 14 * bi + 2 * h + 1] = 1.0

    sw1 = pool_cols(28, 6)
    sw2 = pool_cols(10, 16)

    # Pack all selectors + fc2/fc3 into one bf16 slab (one DMA).
    layout, total_rows, width = _const_layout(bb)
    consts = np.zeros((total_rows, width), np.float32)

    def put(name, arr):
        off, r, c = layout[name]
        assert arr.shape == (r, c), (name, arr.shape, (r, c))
        consts[off:off + r, :c] = arr

    put("sh1e", sh1[0]); put("sh1o", sh1[1])
    put("sh2e", sh2[0]); put("sh2o", sh2[1])
    put("sw1e", sw1[0]); put("sw1o", sw1[1])
    put("sw2e", sw2[0]); put("sw2o", sw2[1])
    put("wf2", wf2.T);   put("wf3", wf3.T)

    # Pack all biases (f32) into one slab: rows b1/b2 tiled over width, fc1-3.
    biases = np.zeros((5, 168), np.float32)
    biases[0, :168] = np.tile(b1, 28)
    biases[1, :160] = np.tile(b2, 10)
    biases[2, :120] = bf1
    biases[3, :84] = bf2
    biases[4, :10] = bf3

    # fc1 columns permuted from PyTorch's (c, h, w) flatten order to our
    # channels-last (h, w, c) layout, grouped by h for accumulating matmuls.
    wf1_r = wf1.reshape(120, 16, 5, 5).transpose(2, 3, 1, 0).reshape(5, 80, 120)

    bf = lambda a: jnp.asarray(a, jnp.bfloat16)
    return {
        "band1": bf(conv_band(w1, 32, 28)),      # (5, 96, 168) bf16
        "band2": bf(conv_band(w2, 14, 10)),      # (5, 84, 160) bf16
        "wf1": bf(wf1_r),                        # (5, 80, 120) bf16
        "consts": bf(consts),                    # packed selectors + fc2/fc3
        "biases": jnp.asarray(biases, jnp.float32),
    }


# ---------------------------------------------------------------------------
# Params + pure-XLA f32 reference (numerical sanity check only)
# ---------------------------------------------------------------------------
def init_params(key):
    def uni(k, shape, fan_in):
        bound = 1.0 / np.sqrt(fan_in)
        return jax.random.uniform(k, shape, jnp.float32, -bound, bound)

    ks = jax.random.split(key, 10)
    w1 = uni(ks[0], (6, 3, 5, 5), 3 * 25)
    b1 = uni(ks[1], (6,), 3 * 25)
    w2 = uni(ks[2], (16, 6, 5, 5), 6 * 25)
    b2 = uni(ks[3], (16,), 6 * 25)
    wf1 = uni(ks[4], (120, 400), 400)
    bf1 = uni(ks[5], (120,), 400)
    wf2 = uni(ks[6], (84, 120), 120)
    bf2 = uni(ks[7], (84,), 120)
    wf3 = uni(ks[8], (10, 84), 84)
    bf3 = uni(ks[9], (10,), 84)
    return (w1, b1, w2, b2, wf1, bf1, wf2, bf2, wf3, bf3)


def reference_forward(x, params):
    (w1, b1, w2, b2, wf1, bf1, wf2, bf2, wf3, bf3) = params

    def conv(x, w, b):
        y = jax.lax.conv_general_dilated(
            x, w, (1, 1), "VALID",
            dimension_numbers=("NCHW", "OIHW", "NCHW"))
        return y + b[None, :, None, None]

    def pool(x):
        return jax.lax.reduce_window(x, -jnp.inf, jax.lax.max,
                                     (1, 1, 2, 2), (1, 1, 2, 2), "VALID")

    x = pool(jax.nn.relu(conv(x, w1, b1)))
    x = pool(jax.nn.relu(conv(x, w2, b2)))
    x = x.reshape(x.shape[0], -1)
    x = jax.nn.relu(x @ wf1.T + bf1)
    x = jax.nn.relu(x @ wf2.T + bf2)
    return x @ wf3.T + bf3


if __name__ == "__main__":
    key = jax.random.PRNGKey(0)
    pkey, xkey = jax.random.split(key)
    params = init_params(pkey)
    prep = prepare_params(params, block_b=2)     # one-time host-side weight prep
    # Forward implies 3-channel 32x32 inputs (16*5*5 flatten).
    x = jax.random.normal(xkey, (2, 3, 32, 32), jnp.float32)

    fwd = jax.jit(net_forward)
    out = fwd(x, prep)
    jax.block_until_ready(out)

    assert out.shape == (2, 10) and out.dtype == jnp.float32
    assert bool(jnp.all(jnp.isfinite(out)))
    # bf16 matmul operands (f32 accumulate) vs all-f32 XLA reference.
    ref = reference_forward(x, params)
    err = float(jnp.max(jnp.abs(out - ref)))
    assert err < 5e-2, f"mismatch vs f32 reference: {err}"
    print("KERNEL_OK")
</pallas_src>

<mosaic_0001>
module attributes {stable_mosaic.version = 11 : i64} {
  func.func @_lenet_kernel(%arg0: i32, %arg1: memref<64x96xbf16, #tpu.memory_space<vmem>>, %arg2: memref<5x96x168xbf16, #tpu.memory_space<vmem>>, %arg3: memref<5x84x160xbf16, #tpu.memory_space<vmem>>, %arg4: memref<5x80x120xbf16, #tpu.memory_space<vmem>>, %arg5: memref<992x84xbf16, #tpu.memory_space<vmem>>, %arg6: memref<5x168xf32, #tpu.memory_space<vmem>>, %arg7: memref<2x10xf32, #tpu.memory_space<vmem>>) attributes {dimension_semantics = [#tpu.dimension_semantics<parallel>], iteration_bounds = array<i64: 1>, scalar_prefetch = 0 : i64, scratch_operands = 0 : i64, tpu.core_type = #tpu.core_type<tc>, window_params = [{transform_indices = @transform_0, window_bounds = array<i64: 64, 96>}, {pipeline_mode = #tpu.pipeline_mode<synchronous>, transform_indices = @transform_1, window_bounds = array<i64: 5, 96, 168>}, {pipeline_mode = #tpu.pipeline_mode<synchronous>, transform_indices = @transform_2, window_bounds = array<i64: 5, 84, 160>}, {pipeline_mode = #tpu.pipeline_mode<synchronous>, transform_indices = @transform_3, window_bounds = array<i64: 5, 80, 120>}, {pipeline_mode = #tpu.pipeline_mode<synchronous>, transform_indices = @transform_4, window_bounds = array<i64: 992, 84>}, {pipeline_mode = #tpu.pipeline_mode<synchronous>, transform_indices = @transform_5, window_bounds = array<i64: 5, 168>}, {transform_indices = @transform_6, window_bounds = array<i64: 2, 10>}]} {
    %c0 = arith.constant 0 : index
    %c0_0 = arith.constant 0 : index
    %0 = vector.load %arg5[%c0, %c0_0] : memref<992x84xbf16, #tpu.memory_space<vmem>>, vector<28x60xbf16>
    %c32 = arith.constant 32 : index
    %c0_1 = arith.constant 0 : index
    %1 = vector.load %arg5[%c32, %c0_1] : memref<992x84xbf16, #tpu.memory_space<vmem>>, vector<28x60xbf16>
    %c64 = arith.constant 64 : index
    %c0_2 = arith.constant 0 : index
    %2 = vector.load %arg5[%c64, %c0_2] : memref<992x84xbf16, #tpu.memory_space<vmem>>, vector<10x24xbf16>
    %c80 = arith.constant 80 : index
    %c0_3 = arith.constant 0 : index
    %3 = vector.load %arg5[%c80, %c0_3] : memref<992x84xbf16, #tpu.memory_space<vmem>>, vector<10x24xbf16>
    %c96 = arith.constant 96 : index
    %c0_4 = arith.constant 0 : index
    %4 = vector.load %arg5[%c96, %c0_4] : memref<992x84xbf16, #tpu.memory_space<vmem>>, vector<168x84xbf16>
    %c272 = arith.constant 272 : index
    %c0_5 = arith.constant 0 : index
    %5 = vector.load %arg5[%c272, %c0_5] : memref<992x84xbf16, #tpu.memory_space<vmem>>, vector<168x84xbf16>
    %c448 = arith.constant 448 : index
    %c0_6 = arith.constant 0 : index
    %6 = vector.load %arg5[%c448, %c0_6] : memref<992x84xbf16, #tpu.memory_space<vmem>>, vector<160x80xbf16>
    %c608 = arith.constant 608 : index
    %c0_7 = arith.constant 0 : index
    %7 = vector.load %arg5[%c608, %c0_7] : memref<992x84xbf16, #tpu.memory_space<vmem>>, vector<160x80xbf16>
    %c768 = arith.constant 768 : index
    %c0_8 = arith.constant 0 : index
    %8 = vector.load %arg5[%c768, %c0_8] : memref<992x84xbf16, #tpu.memory_space<vmem>>, vector<120x84xbf16>
    %c896 = arith.constant 896 : index
    %c0_9 = arith.constant 0 : index
    %9 = vector.load %arg5[%c896, %c0_9] : memref<992x84xbf16, #tpu.memory_space<vmem>>, vector<84x10xbf16>
    %c0_10 = arith.constant 0 : index
    %c0_11 = arith.constant 0 : index
    %10 = vector.load %arg6[%c0_10, %c0_11] : memref<5x168xf32, #tpu.memory_space<vmem>>, vector<1x168xf32>
    %c1 = arith.constant 1 : index
    %c0_12 = arith.constant 0 : index
    %11 = vector.load %arg6[%c1, %c0_12] : memref<5x168xf32, #tpu.memory_space<vmem>>, vector<1x160xf32>
    %c2 = arith.constant 2 : index
    %c0_13 = arith.constant 0 : index
    %12 = vector.load %arg6[%c2, %c0_13] : memref<5x168xf32, #tpu.memory_space<vmem>>, vector<1x120xf32>
    %c3 = arith.constant 3 : index
    %c0_14 = arith.constant 0 : index
    %13 = vector.load %arg6[%c3, %c0_14] : memref<5x168xf32, #tpu.memory_space<vmem>>, vector<1x84xf32>
    %c4 = arith.constant 4 : index
    %c0_15 = arith.constant 0 : index
    %14 = vector.load %arg6[%c4, %c0_15] : memref<5x168xf32, #tpu.memory_space<vmem>>, vector<1x10xf32>
    %c0_16 = arith.constant 0 : index
    %c0_17 = arith.constant 0 : index
    %15 = vector.load %arg1[%c0_16, %c0_17] : memref<64x96xbf16, #tpu.memory_space<vmem>>, vector<60x96xbf16>
    %c0_18 = arith.constant 0 : index
    %c0_19 = arith.constant 0 : index
    %c0_20 = arith.constant 0 : index
    %16 = vector.load %arg2[%c0_18, %c0_19, %c0_20] : memref<5x96x168xbf16, #tpu.memory_space<vmem>>, vector<1x96x168xbf16>
    %17 = vector.shape_cast %16 : vector<1x96x168xbf16> to vector<96x168xbf16>
    %cst = arith.constant dense<0.000000e+00> : vector<60x168xf32>
    %18 = tpu.matmul %15, %17, %cst {dimension_numbers = #tpu.dot_dimension_numbers<[1], [0], [0], [1], [0, 0, 1, 1], [], []>} : vector<60x96xbf16>, vector<96x168xbf16>, vector<60x168xf32> -> vector<60x168xf32>
    %c1_21 = arith.constant 1 : index
    %c0_22 = arith.constant 0 : index
    %19 = vector.load %arg1[%c1_21, %c0_22] : memref<64x96xbf16, #tpu.memory_space<vmem>>, vector<60x96xbf16>
    %c1_23 = arith.constant 1 : index
    %c0_24 = arith.constant 0 : index
    %c0_25 = arith.constant 0 : index
    %20 = vector.load %arg2[%c1_23, %c0_24, %c0_25] : memref<5x96x168xbf16, #tpu.memory_space<vmem>>, vector<1x96x168xbf16>
    %21 = vector.shape_cast %20 : vector<1x96x168xbf16> to vector<96x168xbf16>
    %cst_26 = arith.constant dense<0.000000e+00> : vector<60x168xf32>
    %22 = tpu.matmul %19, %21, %cst_26 {dimension_numbers = #tpu.dot_dimension_numbers<[1], [0], [0], [1], [0, 0, 1, 1], [], []>} : vector<60x96xbf16>, vector<96x168xbf16>, vector<60x168xf32> -> vector<60x168xf32>
    %23 = arith.addf %18, %22 : vector<60x168xf32>
    %c2_27 = arith.constant 2 : index
    %c0_28 = arith.constant 0 : index
    %24 = vector.load %arg1[%c2_27, %c0_28] : memref<64x96xbf16, #tpu.memory_space<vmem>>, vector<60x96xbf16>
    %c2_29 = arith.constant 2 : index
    %c0_30 = arith.constant 0 : index
    %c0_31 = arith.constant 0 : index
    %25 = vector.load %arg2[%c2_29, %c0_30, %c0_31] : memref<5x96x168xbf16, #tpu.memory_space<vmem>>, vector<1x96x168xbf16>
    %26 = vector.shape_cast %25 : vector<1x96x168xbf16> to vector<96x168xbf16>
    %cst_32 = arith.constant dense<0.000000e+00> : vector<60x168xf32>
    %27 = tpu.matmul %24, %26, %cst_32 {dimension_numbers = #tpu.dot_dimension_numbers<[1], [0], [0], [1], [0, 0, 1, 1], [], []>} : vector<60x96xbf16>, vector<96x168xbf16>, vector<60x168xf32> -> vector<60x168xf32>
    %28 = arith.addf %23, %27 : vector<60x168xf32>
    %c3_33 = arith.constant 3 : index
    %c0_34 = arith.constant 0 : index
    %29 = vector.load %arg1[%c3_33, %c0_34] : memref<64x96xbf16, #tpu.memory_space<vmem>>, vector<60x96xbf16>
    %c3_35 = arith.constant 3 : index
    %c0_36 = arith.constant 0 : index
    %c0_37 = arith.constant 0 : index
    %30 = vector.load %arg2[%c3_35, %c0_36, %c0_37] : memref<5x96x168xbf16, #tpu.memory_space<vmem>>, vector<1x96x168xbf16>
    %31 = vector.shape_cast %30 : vector<1x96x168xbf16> to vector<96x168xbf16>
    %cst_38 = arith.constant dense<0.000000e+00> : vector<60x168xf32>
    %32 = tpu.matmul %29, %31, %cst_38 {dimension_numbers = #tpu.dot_dimension_numbers<[1], [0], [0], [1], [0, 0, 1, 1], [], []>} : vector<60x96xbf16>, vector<96x168xbf16>, vector<60x168xf32> -> vector<60x168xf32>
    %33 = arith.addf %28, %32 : vector<60x168xf32>
    %c4_39 = arith.constant 4 : index
    %c0_40 = arith.constant 0 : index
    %34 = vector.load %arg1[%c4_39, %c0_40] : memref<64x96xbf16, #tpu.memory_space<vmem>>, vector<60x96xbf16>
    %c4_41 = arith.constant 4 : index
    %c0_42 = arith.constant 0 : index
    %c0_43 = arith.constant 0 : index
    %35 = vector.load %arg2[%c4_41, %c0_42, %c0_43] : memref<5x96x168xbf16, #tpu.memory_space<vmem>>, vector<1x96x168xbf16>
    %36 = vector.shape_cast %35 : vector<1x96x168xbf16> to vector<96x168xbf16>
    %cst_44 = arith.constant dense<0.000000e+00> : vector<60x168xf32>
    %37 = tpu.matmul %34, %36, %cst_44 {dimension_numbers = #tpu.dot_dimension_numbers<[1], [0], [0], [1], [0, 0, 1, 1], [], []>} : vector<60x96xbf16>, vector<96x168xbf16>, vector<60x168xf32> -> vector<60x168xf32>
    %38 = arith.addf %33, %37 : vector<60x168xf32>
    %39 = vector.broadcast %10 : vector<1x168xf32> to vector<60x168xf32>
    %40 = arith.addf %38, %39 : vector<60x168xf32>
    %cst_45 = arith.constant 0.000000e+00 : f32
    %41 = vector.broadcast %cst_45 : f32 to vector<60x168xf32>
    %42 = arith.maximumf %40, %41 : vector<60x168xf32>
    %43 = arith.truncf %42 : vector<60x168xf32> to vector<60x168xbf16>
    %cst_46 = arith.constant dense<0.000000e+00> : vector<28x168xf32>
    %44 = tpu.matmul %0, %43, %cst_46 {dimension_numbers = #tpu.dot_dimension_numbers<[1], [0], [0], [1], [0, 0, 1, 1], [], []>} : vector<28x60xbf16>, vector<60x168xbf16>, vector<28x168xf32> -> vector<28x168xf32>
    %cst_47 = arith.constant dense<0.000000e+00> : vector<28x168xf32>
    %45 = tpu.matmul %1, %43, %cst_47 {dimension_numbers = #tpu.dot_dimension_numbers<[1], [0], [0], [1], [0, 0, 1, 1], [], []>} : vector<28x60xbf16>, vector<60x168xbf16>, vector<28x168xf32> -> vector<28x168xf32>
    %46 = arith.maximumf %44, %45 : vector<28x168xf32>
    %47 = arith.truncf %46 : vector<28x168xf32> to vector<28x168xbf16>
    %cst_48 = arith.constant dense<0.000000e+00> : vector<28x84xf32>
    %48 = tpu.matmul %47, %4, %cst_48 {dimension_numbers = #tpu.dot_dimension_numbers<[1], [0], [0], [1], [0, 0, 1, 1], [], []>} : vector<28x168xbf16>, vector<168x84xbf16>, vector<28x84xf32> -> vector<28x84xf32>
    %cst_49 = arith.constant dense<0.000000e+00> : vector<28x84xf32>
    %49 = tpu.matmul %47, %5, %cst_49 {dimension_numbers = #tpu.dot_dimension_numbers<[1], [0], [0], [1], [0, 0, 1, 1], [], []>} : vector<28x168xbf16>, vector<168x84xbf16>, vector<28x84xf32> -> vector<28x84xf32>
    %50 = arith.maximumf %48, %49 : vector<28x84xf32>
    %51 = arith.truncf %50 : vector<28x84xf32> to vector<28x84xbf16>
    %52 = vector.extract_strided_slice %51 {offsets = [0, 0], sizes = [24, 84], strides = [1, 1]} : vector<28x84xbf16> to vector<24x84xbf16>
    %c0_50 = arith.constant 0 : index
    %c0_51 = arith.constant 0 : index
    %c0_52 = arith.constant 0 : index
    %53 = vector.load %arg3[%c0_50, %c0_51, %c0_52] : memref<5x84x160xbf16, #tpu.memory_space<vmem>>, vector<1x84x160xbf16>
    %54 = vector.shape_cast %53 : vector<1x84x160xbf16> to vector<84x160xbf16>
    %cst_53 = arith.constant dense<0.000000e+00> : vector<24x160xf32>
    %55 = tpu.matmul %52, %54, %cst_53 {dimension_numbers = #tpu.dot_dimension_numbers<[1], [0], [0], [1], [0, 0, 1, 1], [], []>} : vector<24x84xbf16>, vector<84x160xbf16>, vector<24x160xf32> -> vector<24x160xf32>
    %56 = vector.extract_strided_slice %51 {offsets = [1, 0], sizes = [24, 84], strides = [1, 1]} : vector<28x84xbf16> to vector<24x84xbf16>
    %c1_54 = arith.constant 1 : index
    %c0_55 = arith.constant 0 : index
    %c0_56 = arith.constant 0 : index
    %57 = vector.load %arg3[%c1_54, %c0_55, %c0_56] : memref<5x84x160xbf16, #tpu.memory_space<vmem>>, vector<1x84x160xbf16>
    %58 = vector.shape_cast %57 : vector<1x84x160xbf16> to vector<84x160xbf16>
    %cst_57 = arith.constant dense<0.000000e+00> : vector<24x160xf32>
    %59 = tpu.matmul %56, %58, %cst_57 {dimension_numbers = #tpu.dot_dimension_numbers<[1], [0], [0], [1], [0, 0, 1, 1], [], []>} : vector<24x84xbf16>, vector<84x160xbf16>, vector<24x160xf32> -> vector<24x160xf32>
    %60 = arith.addf %55, %59 : vector<24x160xf32>
    %61 = vector.extract_strided_slice %51 {offsets = [2, 0], sizes = [24, 84], strides = [1, 1]} : vector<28x84xbf16> to vector<24x84xbf16>
    %c2_58 = arith.constant 2 : index
    %c0_59 = arith.constant 0 : index
    %c0_60 = arith.constant 0 : index
    %62 = vector.load %arg3[%c2_58, %c0_59, %c0_60] : memref<5x84x160xbf16, #tpu.memory_space<vmem>>, vector<1x84x160xbf16>
    %63 = vector.shape_cast %62 : vector<1x84x160xbf16> to vector<84x160xbf16>
    %cst_61 = arith.constant dense<0.000000e+00> : vector<24x160xf32>
    %64 = tpu.matmul %61, %63, %cst_61 {dimension_numbers = #tpu.dot_dimension_numbers<[1], [0], [0], [1], [0, 0, 1, 1], [], []>} : vector<24x84xbf16>, vector<84x160xbf16>, vector<24x160xf32> -> vector<24x160xf32>
    %65 = arith.addf %60, %64 : vector<24x160xf32>
    %66 = vector.extract_strided_slice %51 {offsets = [3, 0], sizes = [24, 84], strides = [1, 1]} : vector<28x84xbf16> to vector<24x84xbf16>
    %c3_62 = arith.constant 3 : index
    %c0_63 = arith.constant 0 : index
    %c0_64 = arith.constant 0 : index
    %67 = vector.load %arg3[%c3_62, %c0_63, %c0_64] : memref<5x84x160xbf16, #tpu.memory_space<vmem>>, vector<1x84x160xbf16>
    %68 = vector.shape_cast %67 : vector<1x84x160xbf16> to vector<84x160xbf16>
    %cst_65 = arith.constant dense<0.000000e+00> : vector<24x160xf32>
    %69 = tpu.matmul %66, %68, %cst_65 {dimension_numbers = #tpu.dot_dimension_numbers<[1], [0], [0], [1], [0, 0, 1, 1], [], []>} : vector<24x84xbf16>, vector<84x160xbf16>, vector<24x160xf32> -> vector<24x160xf32>
    %70 = arith.addf %65, %69 : vector<24x160xf32>
    %71 = vector.extract_strided_slice %51 {offsets = [4, 0], sizes = [24, 84], strides = [1, 1]} : vector<28x84xbf16> to vector<24x84xbf16>
    %c4_66 = arith.constant 4 : index
    %c0_67 = arith.constant 0 : index
    %c0_68 = arith.constant 0 : index
    %72 = vector.load %arg3[%c4_66, %c0_67, %c0_68] : memref<5x84x160xbf16, #tpu.memory_space<vmem>>, vector<1x84x160xbf16>
    %73 = vector.shape_cast %72 : vector<1x84x160xbf16> to vector<84x160xbf16>
    %cst_69 = arith.constant dense<0.000000e+00> : vector<24x160xf32>
    %74 = tpu.matmul %71, %73, %cst_69 {dimension_numbers = #tpu.dot_dimension_numbers<[1], [0], [0], [1], [0, 0, 1, 1], [], []>} : vector<24x84xbf16>, vector<84x160xbf16>, vector<24x160xf32> -> vector<24x160xf32>
    %75 = arith.addf %70, %74 : vector<24x160xf32>
    %76 = vector.broadcast %11 : vector<1x160xf32> to vector<24x160xf32>
    %77 = arith.addf %75, %76 : vector<24x160xf32>
    %cst_70 = arith.constant 0.000000e+00 : f32
    %78 = vector.broadcast %cst_70 : f32 to vector<24x160xf32>
    %79 = arith.maximumf %77, %78 : vector<24x160xf32>
    %80 = arith.truncf %79 : vector<24x160xf32> to vector<24x160xbf16>
    %cst_71 = arith.constant dense<0.000000e+00> : vector<10x160xf32>
    %81 = tpu.matmul %2, %80, %cst_71 {dimension_numbers = #tpu.dot_dimension_numbers<[1], [0], [0], [1], [0, 0, 1, 1], [], []>} : vector<10x24xbf16>, vector<24x160xbf16>, vector<10x160xf32> -> vector<10x160xf32>
    %cst_72 = arith.constant dense<0.000000e+00> : vector<10x160xf32>
    %82 = tpu.matmul %3, %80, %cst_72 {dimension_numbers = #tpu.dot_dimension_numbers<[1], [0], [0], [1], [0, 0, 1, 1], [], []>} : vector<10x24xbf16>, vector<24x160xbf16>, vector<10x160xf32> -> vector<10x160xf32>
    %83 = arith.maximumf %81, %82 : vector<10x160xf32>
    %84 = arith.truncf %83 : vector<10x160xf32> to vector<10x160xbf16>
    %cst_73 = arith.constant dense<0.000000e+00> : vector<10x80xf32>
    %85 = tpu.matmul %84, %6, %cst_73 {dimension_numbers = #tpu.dot_dimension_numbers<[1], [0], [0], [1], [0, 0, 1, 1], [], []>} : vector<10x160xbf16>, vector<160x80xbf16>, vector<10x80xf32> -> vector<10x80xf32>
    %cst_74 = arith.constant dense<0.000000e+00> : vector<10x80xf32>
    %86 = tpu.matmul %84, %7, %cst_74 {dimension_numbers = #tpu.dot_dimension_numbers<[1], [0], [0], [1], [0, 0, 1, 1], [], []>} : vector<10x160xbf16>, vector<160x80xbf16>, vector<10x80xf32> -> vector<10x80xf32>
    %87 = arith.maximumf %85, %86 : vector<10x80xf32>
    %88 = arith.truncf %87 : vector<10x80xf32> to vector<10x80xbf16>
    %89 = vector.extract_strided_slice %88 {offsets = [0, 0], sizes = [2, 80], strides = [1, 1]} : vector<10x80xbf16> to vector<2x80xbf16>
    %c0_75 = arith.constant 0 : index
    %c0_76 = arith.constant 0 : index
    %c0_77 = arith.constant 0 : index
    %90 = vector.load %arg4[%c0_75, %c0_76, %c0_77] : memref<5x80x120xbf16, #tpu.memory_space<vmem>>, vector<1x80x120xbf16>
    %91 = vector.shape_cast %90 : vector<1x80x120xbf16> to vector<80x120xbf16>
    %cst_78 = arith.constant dense<0.000000e+00> : vector<2x120xf32>
    %92 = tpu.matmul %89, %91, %cst_78 {dimension_numbers = #tpu.dot_dimension_numbers<[1], [0], [0], [1], [0, 0, 1, 1], [], []>} : vector<2x80xbf16>, vector<80x120xbf16>, vector<2x120xf32> -> vector<2x120xf32>
    %93 = vector.extract_strided_slice %88 {offsets = [2, 0], sizes = [2, 80], strides = [1, 1]} : vector<10x80xbf16> to vector<2x80xbf16>
    %c1_79 = arith.constant 1 : index
    %c0_80 = arith.constant 0 : index
    %c0_81 = arith.constant 0 : index
    %94 = vector.load %arg4[%c1_79, %c0_80, %c0_81] : memref<5x80x120xbf16, #tpu.memory_space<vmem>>, vector<1x80x120xbf16>
    %95 = vector.shape_cast %94 : vector<1x80x120xbf16> to vector<80x120xbf16>
    %cst_82 = arith.constant dense<0.000000e+00> : vector<2x120xf32>
    %96 = tpu.matmul %93, %95, %cst_82 {dimension_numbers = #tpu.dot_dimension_numbers<[1], [0], [0], [1], [0, 0, 1, 1], [], []>} : vector<2x80xbf16>, vector<80x120xbf16>, vector<2x120xf32> -> vector<2x120xf32>
    %97 = arith.addf %92, %96 : vector<2x120xf32>
    %98 = vector.extract_strided_slice %88 {offsets = [4, 0], sizes = [2, 80], strides = [1, 1]} : vector<10x80xbf16> to vector<2x80xbf16>
    %c2_83 = arith.constant 2 : index
    %c0_84 = arith.constant 0 : index
    %c0_85 = arith.constant 0 : index
    %99 = vector.load %arg4[%c2_83, %c0_84, %c0_85] : memref<5x80x120xbf16, #tpu.memory_space<vmem>>, vector<1x80x120xbf16>
    %100 = vector.shape_cast %99 : vector<1x80x120xbf16> to vector<80x120xbf16>
    %cst_86 = arith.constant dense<0.000000e+00> : vector<2x120xf32>
    %101 = tpu.matmul %98, %100, %cst_86 {dimension_numbers = #tpu.dot_dimension_numbers<[1], [0], [0], [1], [0, 0, 1, 1], [], []>} : vector<2x80xbf16>, vector<80x120xbf16>, vector<2x120xf32> -> vector<2x120xf32>
    %102 = arith.addf %97, %101 : vector<2x120xf32>
    %103 = vector.extract_strided_slice %88 {offsets = [6, 0], sizes = [2, 80], strides = [1, 1]} : vector<10x80xbf16> to vector<2x80xbf16>
    %c3_87 = arith.constant 3 : index
    %c0_88 = arith.constant 0 : index
    %c0_89 = arith.constant 0 : index
    %104 = vector.load %arg4[%c3_87, %c0_88, %c0_89] : memref<5x80x120xbf16, #tpu.memory_space<vmem>>, vector<1x80x120xbf16>
    %105 = vector.shape_cast %104 : vector<1x80x120xbf16> to vector<80x120xbf16>
    %cst_90 = arith.constant dense<0.000000e+00> : vector<2x120xf32>
    %106 = tpu.matmul %103, %105, %cst_90 {dimension_numbers = #tpu.dot_dimension_numbers<[1], [0], [0], [1], [0, 0, 1, 1], [], []>} : vector<2x80xbf16>, vector<80x120xbf16>, vector<2x120xf32> -> vector<2x120xf32>
    %107 = arith.addf %102, %106 : vector<2x120xf32>
    %108 = vector.extract_strided_slice %88 {offsets = [8, 0], sizes = [2, 80], strides = [1, 1]} : vector<10x80xbf16> to vector<2x80xbf16>
    %c4_91 = arith.constant 4 : index
    %c0_92 = arith.constant 0 : index
    %c0_93 = arith.constant 0 : index
    %109 = vector.load %arg4[%c4_91, %c0_92, %c0_93] : memref<5x80x120xbf16, #tpu.memory_space<vmem>>, vector<1x80x120xbf16>
    %110 = vector.shape_cast %109 : vector<1x80x120xbf16> to vector<80x120xbf16>
    %cst_94 = arith.constant dense<0.000000e+00> : vector<2x120xf32>
    %111 = tpu.matmul %108, %110, %cst_94 {dimension_numbers = #tpu.dot_dimension_numbers<[1], [0], [0], [1], [0, 0, 1, 1], [], []>} : vector<2x80xbf16>, vector<80x120xbf16>, vector<2x120xf32> -> vector<2x120xf32>
    %112 = arith.addf %107, %111 : vector<2x120xf32>
    %113 = vector.broadcast %12 : vector<1x120xf32> to vector<2x120xf32>
    %114 = arith.addf %112, %113 : vector<2x120xf32>
    %cst_95 = arith.constant 0.000000e+00 : f32
    %115 = vector.broadcast %cst_95 : f32 to vector<2x120xf32>
    %116 = arith.maximumf %114, %115 : vector<2x120xf32>
    %117 = arith.truncf %116 : vector<2x120xf32> to vector<2x120xbf16>
    %cst_96 = arith.constant dense<0.000000e+00> : vector<2x84xf32>
    %118 = tpu.matmul %117, %8, %cst_96 {dimension_numbers = #tpu.dot_dimension_numbers<[1], [0], [0], [1], [0, 0, 1, 1], [], []>} : vector<2x120xbf16>, vector<120x84xbf16>, vector<2x84xf32> -> vector<2x84xf32>
    %119 = vector.broadcast %13 : vector<1x84xf32> to vector<2x84xf32>
    %120 = arith.addf %118, %119 : vector<2x84xf32>
    %cst_97 = arith.constant 0.000000e+00 : f32
    %121 = vector.broadcast %cst_97 : f32 to vector<2x84xf32>
    %122 = arith.maximumf %120, %121 : vector<2x84xf32>
    %123 = arith.truncf %122 : vector<2x84xf32> to vector<2x84xbf16>
    %cst_98 = arith.constant dense<0.000000e+00> : vector<2x10xf32>
    %124 = tpu.matmul %123, %9, %cst_98 {dimension_numbers = #tpu.dot_dimension_numbers<[1], [0], [0], [1], [0, 0, 1, 1], [], []>} : vector<2x84xbf16>, vector<84x10xbf16>, vector<2x10xf32> -> vector<2x10xf32>
    %125 = vector.broadcast %14 : vector<1x10xf32> to vector<2x10xf32>
    %126 = arith.addf %124, %125 : vector<2x10xf32>
    %c0_99 = arith.constant 0 : index
    %c0_100 = arith.constant 0 : index
    %127 = vector.load %arg7[%c0_99, %c0_100] : memref<2x10xf32, #tpu.memory_space<vmem>>, vector<2x10xf32>
    tpu.vector_store %arg7[%c0_99, %c0_100], %126 {strides = array<i32>} : memref<2x10xf32, #tpu.memory_space<vmem>>, vector<2x10xf32>,
    return
  }
  func.func @transform_0(%arg0: i32) -> (i32, i32) {
    %c0_i32 = arith.constant 0 : i32
    %c0_i32_0 = arith.constant 0 : i32
    return %arg0, %c0_i32 : i32, i32
  }
  func.func @transform_1(%arg0: i32) -> (i32, i32, i32) {
    %c0_i32 = arith.constant 0 : i32
    %c0_i32_0 = arith.constant 0 : i32
    %c0_i32_1 = arith.constant 0 : i32
    %c0_i32_2 = arith.constant 0 : i32
    return %c0_i32, %c0_i32_0, %c0_i32_1 : i32, i32, i32
  }
  func.func @transform_2(%arg0: i32) -> (i32, i32, i32) {
    %c0_i32 = arith.constant 0 : i32
    %c0_i32_0 = arith.constant 0 : i32
    %c0_i32_1 = arith.constant 0 : i32
    %c0_i32_2 = arith.constant 0 : i32
    return %c0_i32, %c0_i32_0, %c0_i32_1 : i32, i32, i32
  }
  func.func @transform_3(%arg0: i32) -> (i32, i32, i32) {
    %c0_i32 = arith.constant 0 : i32
    %c0_i32_0 = arith.constant 0 : i32
    %c0_i32_1 = arith.constant 0 : i32
    %c0_i32_2 = arith.constant 0 : i32
    return %c0_i32, %c0_i32_0, %c0_i32_1 : i32, i32, i32
  }
  func.func @transform_4(%arg0: i32) -> (i32, i32) {
    %c0_i32 = arith.constant 0 : i32
    %c0_i32_0 = arith.constant 0 : i32
    %c0_i32_1 = arith.constant 0 : i32
    return %c0_i32, %c0_i32_0 : i32, i32
  }
  func.func @transform_5(%arg0: i32) -> (i32, i32) {
    %c0_i32 = arith.constant 0 : i32
    %c0_i32_0 = arith.constant 0 : i32
    %c0_i32_1 = arith.constant 0 : i32
    return %c0_i32, %c0_i32_0 : i32, i32
  }
  func.func @transform_6(%arg0: i32) -> (i32, i32) {
    %c0_i32 = arith.constant 0 : i32
    %c0_i32_0 = arith.constant 0 : i32
    return %arg0, %c0_i32 : i32, i32
  }
}

</mosaic_0001>

<llo_original>
// kernel: net_forward.1
$region0: #{net_forward.1}
  #allocation0 [shape = 'u32[]', space=smem, size = 0x4, offset = 0x4, fixed_abs, tag = 'smem constant byte address 0x4 - core index']
  #allocation1 [shape = 'u32[144,128]{1,0:T(1,128)}', space=vmem, size = 0x12000, scoped, tag = 'internal scratch']
  %s0 = inlined_call_operand.vmem [shape: bf16[64,96], index: 0, kind: input, shape index: {}]
  %s1 = inlined_call_operand.vmem [shape: bf16[5,96,168], index: 1, kind: input, shape index: {}]
  %s2 = inlined_call_operand.vmem [shape: bf16[5,84,160], index: 2, kind: input, shape index: {}]
  %s3 = inlined_call_operand.vmem [shape: bf16[5,80,120], index: 3, kind: input, shape index: {}]
  %s4 = inlined_call_operand.vmem [shape: bf16[992,84], index: 4, kind: input, shape index: {}]
  %s5 = inlined_call_operand.vmem [shape: f32[5,168], index: 5, kind: input, shape index: {}]
  %s6 = inlined_call_operand.hbm [shape: f32[2,10], index: 6, kind: output, shape index: {}]
  %s7 = sld [smem:[#allocation0]]
  $region34: #{net_forward.1} parent=0
    _
  %s9 = ssub.s32 1, %s7
  %s10 = scalar_select 0, %s9, %s7
  $region1: #{net_forward.1} parent=0
    #allocation2 [shape = 'u8[1024]{0}', space=vmem, size = 0x400, scoped, tag = 'output window, operand 0, single buffered']
    #allocation3 [shape = 's32[1]{0}', space=sflag, size = 0x4, scoped, tag = 'scoped memory for net_forward.1']
    %11 = vsyncpa [#allocation3], 0
    // Predicated region
    $region2: #{net_forward.1} parent=1 // pred_check
      _
    $region3: #{net_forward.1} parent=1 // pred_check_branch
      %13 = sbr.rel (0) target = $region5
    $region4: #{net_forward.1} parent=1 // pred_region
      _
    $region5: #{net_forward.1} parent=1 // pred_fallthru
      _
    // Predicated region
    $region6: #{net_forward.1} parent=1 // pred_check
      _
    $region7: #{net_forward.1} parent=1 // pred_check_branch
      %15 = sbr.rel (0) target = $region9
    $region8: #{net_forward.1} parent=1 // pred_region
      _
    $region9: #{net_forward.1} parent=1 // pred_fallthru
      _
    // Predicated region
    $region10: #{net_forward.1} parent=1 // pred_check
      _
    $region11: #{net_forward.1} parent=1 // pred_check_branch
      %17 = sbr.rel (0) target = $region13
    $region12: #{net_forward.1} parent=1 // pred_region
      _
    $region13: #{net_forward.1} parent=1 // pred_fallthru
      _
    // Predicated region
    $region14: #{net_forward.1} parent=1 // pred_check
      _
    $region15: #{net_forward.1} parent=1 // pred_check_branch
      %19 = sbr.rel (0) target = $region17
    $region16: #{net_forward.1} parent=1 // pred_region
      _
    $region17: #{net_forward.1} parent=1 // pred_fallthru
      _
    // Predicated region
    $region18: #{net_forward.1} parent=1 // pred_check
      _
    $region19: #{net_forward.1} parent=1 // pred_check_branch
      %21 = sbr.rel (0) target = $region21
    $region20: #{net_forward.1} parent=1 // pred_region
      _
    $region21: #{net_forward.1} parent=1 // pred_fallthru
      _
    // Predicated region
    $region22: #{net_forward.1} parent=1 // pred_check
      _
    $region23: #{net_forward.1} parent=1 // pred_check_branch
      %23 = sbr.rel (0) target = $region25
    $region24: #{net_forward.1} parent=1 // pred_region
      _
    $region25: #{net_forward.1} parent=1 // pred_fallthru
      _
    %v25 = vld [vmem:[%s4] sm:$0xf]
    %v26 = vld [vmem:[%s4 + $0x4] sm:$0xf]
    %v27 = vld [vmem:[%s4 + $0x8] sm:$0xf]
    %v28 = vld [vmem:[%s4 + $0xc] sm:$0x3]
    %v29 = vld [vmem:[%s4 + $0x10] sm:$0xf]
    %v30 = vld [vmem:[%s4 + $0x14] sm:$0xf]
    %v31 = vld [vmem:[%s4 + $0x18] sm:$0xf]
    %v32 = vld [vmem:[%s4 + $0x1c] sm:$0x3]
    %v33 = vld [vmem:[%s4 + $0x20] sm:$0xf]
    %v34 = vld [vmem:[%s4 + $0x24] sm:$0x1]
    %v35 = vld [vmem:[%s4 + $0x28] sm:$0xf]
    %v36 = vld [vmem:[%s4 + $0x2c] sm:$0x1]
    %v37 = vld [vmem:[%s4 + $0x30] sm:$0xf]
    %v38 = vld [vmem:[%s4 + $0x34] sm:$0xf]
    %v39 = vld [vmem:[%s4 + $0x38] sm:$0xf]
    %v40 = vld [vmem:[%s4 + $0x3c] sm:$0xf]
    %v41 = vld [vmem:[%s4 + $0x40] sm:$0xf]
    %v42 = vld [vmem:[%s4 + $0x44] sm:$0xf]
    %v43 = vld [vmem:[%s4 + $0x48] sm:$0xf]
    %v44 = vld [vmem:[%s4 + $0x4c] sm:$0xf]
    %v45 = vld [vmem:[%s4 + $0x50] sm:$0xf]
    %v46 = vld [vmem:[%s4 + $0x54] sm:$0xf]
    %v47 = vld [vmem:[%s4 + $0x58] sm:$0xf]
    %v48 = vld [vmem:[%s4 + $0x5c] sm:$0xf]
    %v49 = vld [vmem:[%s4 + $0x60] sm:$0xf]
    %v50 = vld [vmem:[%s4 + $0x64] sm:$0xf]
    %v51 = vld [vmem:[%s4 + $0x68] sm:$0xf]
    %v52 = vld [vmem:[%s4 + $0x6c] sm:$0xf]
    %v53 = vld [vmem:[%s4 + $0x70] sm:$0xf]
    %v54 = vld [vmem:[%s4 + $0x74] sm:$0xf]
    %v55 = vld [vmem:[%s4 + $0x78] sm:$0xf]
    %v56 = vld [vmem:[%s4 + $0x7c] sm:$0xf]
    %v57 = vld [vmem:[%s4 + $0x80] sm:$0xf]
    %v58 = vld [vmem:[%s4 + $0x88] sm:$0xf]
    %v59 = vld [vmem:[%s4 + $0x8c] sm:$0xf]
    %v60 = vld [vmem:[%s4 + $0x90] sm:$0xf]
    %v61 = vld [vmem:[%s4 + $0x94] sm:$0xf]
    %v62 = vld [vmem:[%s4 + $0x98] sm:$0xf]
    %v63 = vld [vmem:[%s4 + $0x9c] sm:$0xf]
    %v64 = vld [vmem:[%s4 + $0xa0] sm:$0xf]
    %v65 = vld [vmem:[%s4 + $0xa4] sm:$0xf]
    %v66 = vld [vmem:[%s4 + $0xa8] sm:$0xf]
    %v67 = vld [vmem:[%s4 + $0xac] sm:$0xf]
    %v68 = vld [vmem:[%s4 + $0xb0] sm:$0xf]
    %v69 = vld [vmem:[%s4 + $0xb4] sm:$0xf]
    %v70 = vld [vmem:[%s4 + $0xb8] sm:$0xf]
    %v71 = vld [vmem:[%s4 + $0xbc] sm:$0xf]
    %v72 = vld [vmem:[%s4 + $0xc0] sm:$0xf]
    %v73 = vld [vmem:[%s4 + $0xc4] sm:$0xf]
    %v74 = vld [vmem:[%s4 + $0xc8] sm:$0xf]
    %v75 = vld [vmem:[%s4 + $0xcc] sm:$0xf]
    %v76 = vld [vmem:[%s4 + $0xd0] sm:$0xf]
    %v77 = vld [vmem:[%s4 + $0xd4] sm:$0xf]
    %v78 = vld [vmem:[%s4 + $0xd8] sm:$0xf]
    %v79 = vld [vmem:[%s4 + $0xe0] sm:$0xf]
    %v80 = vld [vmem:[%s4 + $0xe4] sm:$0xf]
    %v81 = vld [vmem:[%s4 + $0xe8] sm:$0xf]
    %v82 = vld [vmem:[%s4 + $0xec] sm:$0xf]
    %v83 = vld [vmem:[%s4 + $0xf0] sm:$0xf]
    %v84 = vld [vmem:[%s4 + $0xf4] sm:$0xf]
    %v85 = vld [vmem:[%s4 + $0xf8] sm:$0xf]
    %v86 = vld [vmem:[%s4 + $0xfc] sm:$0xf]
    %v87 = vld [vmem:[%s4 + $0x100] sm:$0xf]
    %v88 = vld [vmem:[%s4 + $0x104] sm:$0xf]
    %v89 = vld [vmem:[%s4 + $0x108] sm:$0xf]
    %v90 = vld [vmem:[%s4 + $0x10c] sm:$0xf]
    %v91 = vld [vmem:[%s4 + $0x110] sm:$0xf]
    %v92 = vld [vmem:[%s4 + $0x114] sm:$0xf]
    %v93 = vld [vmem:[%s4 + $0x118] sm:$0xf]
    %v94 = vld [vmem:[%s4 + $0x11c] sm:$0xf]
    %v95 = vld [vmem:[%s4 + $0x120] sm:$0xf]
    %v96 = vld [vmem:[%s4 + $0x124] sm:$0xf]
    %v97 = vld [vmem:[%s4 + $0x128] sm:$0xf]
    %v98 = vld [vmem:[%s4 + $0x12c] sm:$0xf]
    %v99 = vld [vmem:[%s4 + $0x130] sm:$0xf]
    %v100 = vld [vmem:[%s4 + $0x134] sm:$0xf]
    %v101 = vld [vmem:[%s4 + $0x138] sm:$0xf]
    %v102 = vld [vmem:[%s4 + $0x13c] sm:$0xf]
    %v103 = vld [vmem:[%s4 + $0x140] sm:$0xf]
    %v104 = vld [vmem:[%s4 + $0x144] sm:$0xf]
    %v105 = vld [vmem:[%s4 + $0x148] sm:$0xf]
    %v106 = vld [vmem:[%s4 + $0x14c] sm:$0xf]
    %v107 = vld [vmem:[%s4 + $0x150] sm:$0xf]
    %v108 = vld [vmem:[%s4 + $0x154] sm:$0xf]
    %v109 = vld [vmem:[%s4 + $0x158] sm:$0xf]
    %v110 = vld [vmem:[%s4 + $0x15c] sm:$0xf]
    %v111 = vld [vmem:[%s4 + $0x160] sm:$0xf]
    %v112 = vld [vmem:[%s4 + $0x164] sm:$0xf]
    %v113 = vld [vmem:[%s4 + $0x168] sm:$0xf]
    %v114 = vld [vmem:[%s4 + $0x16c] sm:$0xf]
    %v115 = vld [vmem:[%s4 + $0x170] sm:$0xf]
    %v116 = vld [vmem:[%s4 + $0x174] sm:$0xf]
    %v117 = vld [vmem:[%s4 + $0x178] sm:$0xf]
    %v118 = vld [vmem:[%s4 + $0x17c] sm:$0xf]
    %v119 = vld [vmem:[%s4 + $0x180] sm:$0xf]
    %v120 = vld [vmem:[%s4 + $0x184] sm:$0xf]
    %v121 = vld [vmem:[%s4 + $0x188] sm:$0xf]
    %v122 = vld [vmem:[%s4 + $0x18c] sm:$0xf]
    %v123 = vld [vmem:[%s4 + $0x190] sm:$0xf]
    %v124 = vld [vmem:[%s4 + $0x194] sm:$0xf]
    %v125 = vld [vmem:[%s4 + $0x198] sm:$0xf]
    %v126 = vld [vmem:[%s4 + $0x19c] sm:$0xf]
    %v127 = vld [vmem:[%s4 + $0x1a0] sm:$0xf]
    %v128 = vld [vmem:[%s4 + $0x1a4] sm:$0xf]
    %v129 = vld [vmem:[%s4 + $0x1a8] sm:$0xf]
    %v130 = vld [vmem:[%s4 + $0x1ac] sm:$0xf]
    %v131 = vld [vmem:[%s4 + $0x1b0] sm:$0xf]
    %v132 = vld [vmem:[%s4 + $0x1b4] sm:$0xf]
    %v133 = vld [vmem:[%s4 + $0x1b8] sm:$0xf]
    %v134 = vld [vmem:[%s4 + $0x1c0] sm:$0xf]
    %v135 = vld [vmem:[%s4 + $0x1c4] sm:$0xf]
    %v136 = vld [vmem:[%s4 + $0x1c8] sm:$0xf]
    %v137 = vld [vmem:[%s4 + $0x1cc] sm:$0xf]
    %v138 = vld [vmem:[%s4 + $0x1d0] sm:$0xf]
    %v139 = vld [vmem:[%s4 + $0x1d4] sm:$0xf]
    %v140 = vld [vmem:[%s4 + $0x1d8] sm:$0xf]
    %v141 = vld [vmem:[%s4 + $0x1dc] sm:$0xf]
    %v142 = vld [vmem:[%s4 + $0x1e0] sm:$0xf]
    %v143 = vld [vmem:[%s4 + $0x1e4] sm:$0xf]
    %v144 = vld [vmem:[%s4 + $0x1e8] sm:$0x3]
    %v145 = vld [vmem:[%s5] ss:$8 sm:$0x3]
    %s146 = scalar_lea.vmem %s5, 1
    %v147 = vld [vmem:[%s146] ss:$8 sm:$0x3]
    %v148 = vld [vmem:[%s5 + $0x2] ss:$0 sm:$0xff]
    %v149 = vld [vmem:[%s5 + $0x3] ss:$0 sm:$0xff]
    %v150 = vld [vmem:[%s5 + $0x4] ss:$0 sm:$0xff]
    %v151 = vld [vmem:[%s0] sm:$0xf]
    %v152 = vld [vmem:[%s0 + $0x4] sm:$0xf]
    %v153 = vld [vmem:[%s0 + $0x8] sm:$0xf]
    %v154 = vld [vmem:[%s0 + $0xc] sm:$0xf]
    %v155 = vld [vmem:[%s0 + $0x10] sm:$0xf]
    %v156 = vld [vmem:[%s0 + $0x14] sm:$0xf]
    %v157 = vld [vmem:[%s0 + $0x18] sm:$0xf]
    %v158 = vld [vmem:[%s0 + $0x1c] sm:$0x3]
    %v159 = vld [vmem:[%s1] sm:$0xff]
    %v160 = vld [vmem:[%s1 + $0x8] sm:$0xff]
    %v161 = vld [vmem:[%s1 + $0x10] sm:$0xff]
    %v162 = vld [vmem:[%s1 + $0x18] sm:$0xff]
    %v163 = vld [vmem:[%s1 + $0x20] sm:$0xff]
    %v164 = vld [vmem:[%s1 + $0x28] sm:$0xff]
    %v165 = vld [vmem:[%s1 + $0x30] sm:$0xff]
    %v166 = vld [vmem:[%s1 + $0x38] sm:$0xff]
    %v167 = vld [vmem:[%s1 + $0x40] sm:$0xff]
    %v168 = vld [vmem:[%s1 + $0x48] sm:$0xff]
    %v169 = vld [vmem:[%s1 + $0x50] sm:$0xff]
    %v170 = vld [vmem:[%s1 + $0x58] sm:$0xff]
    %v171 = vld [vmem:[%s0 + $0x1c] sm:$0x7]
    %s172 = scalar_lea.vmem %s1, 96
    %v173 = vld [vmem:[%s172] sm:$0xff]
    %v174 = vld [vmem:[%s172 + $0x8] sm:$0xff]
    %v175 = vld [vmem:[%s172 + $0x10] sm:$0xff]
    %v176 = vld [vmem:[%s172 + $0x18] sm:$0xff]
    %v177 = vld [vmem:[%s172 + $0x20] sm:$0xff]
    %v178 = vld [vmem:[%s172 + $0x28] sm:$0xff]
    %v179 = vld [vmem:[%s172 + $0x30] sm:$0xff]
    %v180 = vld [vmem:[%s172 + $0x38] sm:$0xff]
    %v181 = vld [vmem:[%s172 + $0x40] sm:$0xff]
    %v182 = vld [vmem:[%s172 + $0x48] sm:$0xff]
    %v183 = vld [vmem:[%s172 + $0x50] sm:$0xff]
    %v184 = vld [vmem:[%s172 + $0x58] sm:$0xff]
    %v193 = vunpack.c.l.b16 %v151
    %v194 = vunpack.c.l.b16 %v152
    %v195 = vunpack.c.l.b16 %v153
    %v196 = vunpack.c.l.b16 %v154
    %v197 = vunpack.c.l.b16 %v155
    %v198 = vunpack.c.l.b16 %v156
    %v199 = vunpack.c.l.b16 %v157
    %v200 = vunpack.c.l.b16 %v171
    %v201 = vpack.c.b16 %v194, %v193
    %v202 = vpack.c.b16 %v196, %v195
    %v203 = vpack.c.b16 %v198, %v197
    %v204 = vpack.c.b16 %v200, %v199
    %vm205 = vsmask.f32 7424
    %v207 = vshrl.u32 %v201, 16
    %v209 = vshll.u32 %v201, 16
    %v211 = vrot.slane %v209, 1
    %v212 = vor.u32 %v207, %v211
    %v214 = vshll.u32 %v202, 16
    %v216 = vrot.slane %v214, 1
    %v217 = vsel %vm205, %v212, %v216
    %v218 = vshrl.u32 %v202, 16
    %v220 = vor.u32 %v218, %v216
    %v222 = vshll.u32 %v203, 16
    %v224 = vrot.slane %v222, 1
    %v225 = vsel %vm205, %v220, %v224
    %v226 = vshrl.u32 %v203, 16
    %v228 = vor.u32 %v226, %v224
    %v230 = vshll.u32 %v204, 16
    %v232 = vrot.slane %v230, 1
    %v233 = vsel %vm205, %v228, %v232
    %v234 = vshrl.u32 %v204, 16
    %v236 = vor.u32 %v234, %v232
    %v249 = vunpack.c.l.b16 %v173
    %v250 = vunpack.c.h.b16 %v173
    %v251 = vunpack.c.l.b16 %v174
    %v252 = vunpack.c.h.b16 %v174
    %v253 = vunpack.c.l.b16 %v175
    %v254 = vunpack.c.h.b16 %v175
    %v255 = vunpack.c.l.b16 %v176
    %v256 = vunpack.c.h.b16 %v176
    %v257 = vunpack.c.l.b16 %v177
    %v258 = vunpack.c.h.b16 %v177
    %v259 = vunpack.c.l.b16 %v178
    %v260 = vunpack.c.h.b16 %v178
    %v261 = vunpack.c.l.b16 %v179
    %v262 = vunpack.c.h.b16 %v179
    %v263 = vunpack.c.l.b16 %v180
    %v264 = vunpack.c.h.b16 %v180
    %v265 = vunpack.c.l.b16 %v181
    %v266 = vunpack.c.h.b16 %v181
    %v267 = vunpack.c.l.b16 %v182
    %v268 = vunpack.c.h.b16 %v182
    %v269 = vunpack.c.l.b16 %v183
    %v270 = vunpack.c.h.b16 %v183
    %v271 = vunpack.c.l.b16 %v184
    %v272 = vunpack.c.h.b16 %v184
    %v273 = vpack.c.b16 %v251, %v249
    %v274 = vpack.c.b16 %v252, %v250
    %v275 = vpack.c.b16 %v255, %v253
    %v276 = vpack.c.b16 %v256, %v254
    %v277 = vpack.c.b16 %v259, %v257
    %v278 = vpack.c.b16 %v260, %v258
    %v279 = vpack.c.b16 %v263, %v261
    %v280 = vpack.c.b16 %v264, %v262
    %v281 = vpack.c.b16 %v267, %v265
    %v282 = vpack.c.b16 %v268, %v266
    %v283 = vpack.c.b16 %v271, %v269
    %v284 = vpack.c.b16 %v272, %v270
    %vm297 = vcmask 785408
    %v299 = vsel %vm297, %v217, 0
    %v302 = vsel %vm297, %v225, 0
    %v305 = vsel %vm297, %v233, 0
    %v308 = vsel %vm297, %v236, 0
    %310 = vmatprep.subr.bf16.mxu0 0
    %311 = vmatpush1.bf16.msra.mxu0 0
    %312 = vmatprep.subr.bf16.mxu0 0
    %313 = vmatpush1.bf16.msra.mxu0 0
    %314 = vmatprep.subr.bf16.mxu0 %v284
    %315 = vmatpush1.bf16.msra.mxu0 %v283
    %316 = vmatprep.subr.bf16.mxu0 %v282
    %317 = vmatpush1.bf16.msra.mxu0 %v281
    %318 = vmatprep.subr.bf16.mxu0 %v280
    %319 = vmatpush1.bf16.msra.mxu0 %v279
    %320 = vmatprep.subr.bf16.mxu0 %v278
    %321 = vmatpush1.bf16.msra.mxu0 %v277
    %322 = vmatprep.subr.bf16.mxu0 %v276
    %323 = vmatpush1.bf16.msra.mxu0 %v275
    %324 = vmatprep.subr.bf16.mxu0 %v274
    %325 = vmatpush1.bf16.msra.mxu0 %v273
    %326 = vmatprep.subr.bf16.mxu0 0
    %327 = vmatpush2.bf16.msra.mxu0 0
    %328 = vmatprep.subr.bf16.mxu0 0
    %329 = vmatpush2.bf16.msra.mxu0 0
    %330 = vmatprep.subr.bf16.mxu0 0
    %331 = vmatpush2.bf16.msra.mxu0 0
    %332 = vmatprep.subr.bf16.mxu0 0
    %333 = vmatpush2.bf16.msra.mxu0 0
    %334 = vmatprep.subr.bf16.mxu0 0
    %335 = vmatpush2.bf16.msra.mxu0 0
    %336 = vmatprep.subr.bf16.mxu0 0
    %337 = vmatpush2.bf16.msra.mxu0 0
    %338 = vmatprep.subr.bf16.mxu0 0
    %339 = vmatpush2.bf16.msra.mxu0 0
    %340 = vmatprep.subr.bf16.mxu0 0
    %341 = vmatpush2.bf16.msra.mxu0 0
    %342 = vmatprep.mubr.bf16.mxu0 0
    %343 = vmatmul.mubr.bf16.gmra.mxu0 %v299
    %v344 = vpop.f32.mrf.mxu0
    %v345 = vadd.f32 0.0, %v344
    %v346 = vpop.f32.mrf.mxu0
    %v347 = vadd.f32 0.0, %v346
    %v348 = vpop.f32.mrf.mxu0
    %v349 = vadd.f32 0.0, %v348
    %v350 = vpop.f32.mrf.mxu0
    %v351 = vadd.f32 0.0, %v350
    %352 = vmatprep.mubr.bf16.mxu0 0
    %353 = vmatmul.mubr.bf16.gmra.mxu0 %v302
    %v354 = vpop.f32.mrf.mxu0
    %v355 = vadd.f32 0.0, %v354
    %v356 = vpop.f32.mrf.mxu0
    %v357 = vadd.f32 0.0, %v356
    %v358 = vpop.f32.mrf.mxu0
    %v359 = vadd.f32 0.0, %v358
    %v360 = vpop.f32.mrf.mxu0
    %v361 = vadd.f32 0.0, %v360
    %362 = vmatprep.mubr.bf16.mxu0 0
    %363 = vmatmul.mubr.bf16.gmra.mxu0 %v305
    %v364 = vpop.f32.mrf.mxu0
    %v365 = vadd.f32 0.0, %v364
    %v366 = vpop.f32.mrf.mxu0
    %v367 = vadd.f32 0.0, %v366
    %v368 = vpop.f32.mrf.mxu0
    %v369 = vadd.f32 0.0, %v368
    %v370 = vpop.f32.mrf.mxu0
    %v371 = vadd.f32 0.0, %v370
    %372 = vmatprep.mubr.bf16.mxu0 0
    %373 = vmatmul.mubr.bf16.gmra.mxu0 %v308
    %v374 = vpop.f32.mrf.mxu0
    %v375 = vadd.f32 0.0, %v374
    %v376 = vpop.f32.mrf.mxu0
    %v377 = vadd.f32 0.0, %v376
    %v378 = vpop.f32.mrf.mxu0
    %v379 = vadd.f32 0.0, %v378
    %v380 = vpop.f32.mrf.mxu0
    %v381 = vadd.f32 0.0, %v380
    %382 = vdwg.mxu0
    %v384 = vunpack.c.l.b16 %v158
    %v385 = vpack.c.b16 %v384, %v199
    %v398 = vunpack.c.l.b16 %v159
    %v399 = vunpack.c.h.b16 %v159
    %v400 = vunpack.c.l.b16 %v160
    %v401 = vunpack.c.h.b16 %v160
    %v402 = vunpack.c.l.b16 %v161
    %v403 = vunpack.c.h.b16 %v161
    %v404 = vunpack.c.l.b16 %v162
    %v405 = vunpack.c.h.b16 %v162
    %v406 = vunpack.c.l.b16 %v163
    %v407 = vunpack.c.h.b16 %v163
    %v408 = vunpack.c.l.b16 %v164
    %v409 = vunpack.c.h.b16 %v164
    %v410 = vunpack.c.l.b16 %v165
    %v411 = vunpack.c.h.b16 %v165
    %v412 = vunpack.c.l.b16 %v166
    %v413 = vunpack.c.h.b16 %v166
    %v414 = vunpack.c.l.b16 %v167
    %v415 = vunpack.c.h.b16 %v167
    %v416 = vunpack.c.l.b16 %v168
    %v417 = vunpack.c.h.b16 %v168
    %v418 = vunpack.c.l.b16 %v169
    %v419 = vunpack.c.h.b16 %v169
    %v420 = vunpack.c.l.b16 %v170
    %v421 = vunpack.c.h.b16 %v170
    %v422 = vpack.c.b16 %v400, %v398
    %v423 = vpack.c.b16 %v401, %v399
    %v424 = vpack.c.b16 %v404, %v402
    %v425 = vpack.c.b16 %v405, %v403
    %v426 = vpack.c.b16 %v408, %v406
    %v427 = vpack.c.b16 %v409, %v407
    %v428 = vpack.c.b16 %v412, %v410
    %v429 = vpack.c.b16 %v413, %v411
    %v430 = vpack.c.b16 %v416, %v414
    %v431 = vpack.c.b16 %v417, %v415
    %v432 = vpack.c.b16 %v420, %v418
    %v433 = vpack.c.b16 %v421, %v419
    %v446 = vsel %vm297, %v201, 0
    %v448 = vsel %vm297, %v202, 0
    %v450 = vsel %vm297, %v203, 0
    %v453 = vsel %vm297, %v385, 0
    %455 = vmatprep.subr.bf16.mxu0 0
    %456 = vmatpush1.bf16.msra.mxu0 0
    %457 = vmatprep.subr.bf16.mxu0 0
    %458 = vmatpush1.bf16.msra.mxu0 0
    %459 = vmatprep.subr.bf16.mxu0 %v433
    %460 = vmatpush1.bf16.msra.mxu0 %v432
    %461 = vmatprep.subr.bf16.mxu0 %v431
    %462 = vmatpush1.bf16.msra.mxu0 %v430
    %463 = vmatprep.subr.bf16.mxu0 %v429
    %464 = vmatpush1.bf16.msra.mxu0 %v428
    %465 = vmatprep.subr.bf16.mxu0 %v427
    %466 = vmatpush1.bf16.msra.mxu0 %v426
    %467 = vmatprep.subr.bf16.mxu0 %v425
    %468 = vmatpush1.bf16.msra.mxu0 %v424
    %469 = vmatprep.subr.bf16.mxu0 %v423
    %470 = vmatpush1.bf16.msra.mxu0 %v422
    %471 = vmatprep.subr.bf16.mxu0 0
    %472 = vmatpush2.bf16.msra.mxu0 0
    %473 = vmatprep.subr.bf16.mxu0 0
    %474 = vmatpush2.bf16.msra.mxu0 0
    %475 = vmatprep.subr.bf16.mxu0 0
    %476 = vmatpush2.bf16.msra.mxu0 0
    %477 = vmatprep.subr.bf16.mxu0 0
    %478 = vmatpush2.bf16.msra.mxu0 0
    %479 = vmatprep.subr.bf16.mxu0 0
    %480 = vmatpush2.bf16.msra.mxu0 0
    %481 = vmatprep.subr.bf16.mxu0 0
    %482 = vmatpush2.bf16.msra.mxu0 0
    %483 = vmatprep.subr.bf16.mxu0 0
    %484 = vmatpush2.bf16.msra.mxu0 0
    %485 = vmatprep.subr.bf16.mxu0 0
    %486 = vmatpush2.bf16.msra.mxu0 0
    %487 = vmatprep.mubr.bf16.mxu0 0
    %488 = vmatmul.mubr.bf16.gmra.mxu0 %v446
    %v489 = vpop.f32.mrf.mxu0
    %v490 = vadd.f32 %v345, %v489
    %v491 = vpop.f32.mrf.mxu0
    %v492 = vadd.f32 %v347, %v491
    %v493 = vpop.f32.mrf.mxu0
    %v494 = vadd.f32 %v349, %v493
    %v495 = vpop.f32.mrf.mxu0
    %v496 = vadd.f32 %v351, %v495
    %497 = vmatprep.mubr.bf16.mxu0 0
    %498 = vmatmul.mubr.bf16.gmra.mxu0 %v448
    %v499 = vpop.f32.mrf.mxu0
    %v500 = vadd.f32 %v355, %v499
    %v501 = vpop.f32.mrf.mxu0
    %v502 = vadd.f32 %v357, %v501
    %v503 = vpop.f32.mrf.mxu0
    %v504 = vadd.f32 %v359, %v503
    %v505 = vpop.f32.mrf.mxu0
    %v506 = vadd.f32 %v361, %v505
    %507 = vmatprep.mubr.bf16.mxu0 0
    %508 = vmatmul.mubr.bf16.gmra.mxu0 %v450
    %v509 = vpop.f32.mrf.mxu0
    %v510 = vadd.f32 %v365, %v509
    %v511 = vpop.f32.mrf.mxu0
    %v512 = vadd.f32 %v367, %v511
    %v513 = vpop.f32.mrf.mxu0
    %v514 = vadd.f32 %v369, %v513
    %v515 = vpop.f32.mrf.mxu0
    %v516 = vadd.f32 %v371, %v515
    %517 = vmatprep.mubr.bf16.mxu0 0
    %518 = vmatmul.mubr.bf16.gmra.mxu0 %v453
    %v519 = vpop.f32.mrf.mxu0
    %v520 = vadd.f32 %v375, %v519
    %v521 = vpop.f32.mrf.mxu0
    %v522 = vadd.f32 %v377, %v521
    %v523 = vpop.f32.mrf.mxu0
    %v524 = vadd.f32 %v379, %v523
    %v525 = vpop.f32.mrf.mxu0
    %v526 = vadd.f32 %v381, %v525
    %527 = vdwg.mxu0
    %v528 = vld [vmem:[%s0] sm:$0xe]
    %s529 = scalar_lea.vmem %s1, 192
    %v530 = vld [vmem:[%s529] sm:$0xff]
    %v531 = vld [vmem:[%s529 + $0x8] sm:$0xff]
    %v532 = vld [vmem:[%s529 + $0x10] sm:$0xff]
    %v533 = vld [vmem:[%s529 + $0x18] sm:$0xff]
    %v534 = vld [vmem:[%s529 + $0x20] sm:$0xff]
    %v535 = vld [vmem:[%s529 + $0x28] sm:$0xff]
    %v536 = vld [vmem:[%s529 + $0x30] sm:$0xff]
    %v537 = vld [vmem:[%s529 + $0x38] sm:$0xff]
    %v538 = vld [vmem:[%s529 + $0x40] sm:$0xff]
    %v539 = vld [vmem:[%s529 + $0x48] sm:$0xff]
    %v540 = vld [vmem:[%s529 + $0x50] sm:$0xff]
    %v541 = vld [vmem:[%s529 + $0x58] sm:$0xff]
    %v543 = vunpack.c.l.b16 %v528
    %v544 = vpack.c.b16 %v194, %v543
    %vm545 = vcmask 1046528
    %v546 = vrot.slane %v544, 1
    %v547 = vrot.slane %v202, 1
    %v548 = vsel %vm545, %v546, %v547
    %v549 = vrot.slane %v203, 1
    %v550 = vsel %vm545, %v547, %v549
    %v551 = vrot.slane %v204, 1
    %v552 = vsel %vm545, %v549, %v551
    %v565 = vunpack.c.l.b16 %v530
    %v566 = vunpack.c.h.b16 %v530
    %v567 = vunpack.c.l.b16 %v531
    %v568 = vunpack.c.h.b16 %v531
    %v569 = vunpack.c.l.b16 %v532
    %v570 = vunpack.c.h.b16 %v532
    %v571 = vunpack.c.l.b16 %v533
    %v572 = vunpack.c.h.b16 %v533
    %v573 = vunpack.c.l.b16 %v534
    %v574 = vunpack.c.h.b16 %v534
    %v575 = vunpack.c.l.b16 %v535
    %v576 = vunpack.c.h.b16 %v535
    %v577 = vunpack.c.l.b16 %v536
    %v578 = vunpack.c.h.b16 %v536
    %v579 = vunpack.c.l.b16 %v537
    %v580 = vunpack.c.h.b16 %v537
    %v581 = vunpack.c.l.b16 %v538
    %v582 = vunpack.c.h.b16 %v538
    %v583 = vunpack.c.l.b16 %v539
    %v584 = vunpack.c.h.b16 %v539
    %v585 = vunpack.c.l.b16 %v540
    %v586 = vunpack.c.h.b16 %v540
    %v587 = vunpack.c.l.b16 %v541
    %v588 = vunpack.c.h.b16 %v541
    %v589 = vpack.c.b16 %v567, %v565
    %v590 = vpack.c.b16 %v568, %v566
    %v591 = vpack.c.b16 %v571, %v569
    %v592 = vpack.c.b16 %v572, %v570
    %v593 = vpack.c.b16 %v575, %v573
    %v594 = vpack.c.b16 %v576, %v574
    %v595 = vpack.c.b16 %v579, %v577
    %v596 = vpack.c.b16 %v580, %v578
    %v597 = vpack.c.b16 %v583, %v581
    %v598 = vpack.c.b16 %v584, %v582
    %v599 = vpack.c.b16 %v587, %v585
    %v600 = vpack.c.b16 %v588, %v586
    %v614 = vsel %vm297, %v548, 0
    %v617 = vsel %vm297, %v550, 0
    %v620 = vsel %vm297, %v552, 0
    %v623 = vsel %vm297, %v551, 0
    %625 = vmatprep.subr.bf16.mxu0 0
    %626 = vmatpush1.bf16.msra.mxu0 0
    %627 = vmatprep.subr.bf16.mxu0 0
    %628 = vmatpush1.bf16.msra.mxu0 0
    %629 = vmatprep.subr.bf16.mxu0 %v600
    %630 = vmatpush1.bf16.msra.mxu0 %v599
    %631 = vmatprep.subr.bf16.mxu0 %v598
    %632 = vmatpush1.bf16.msra.mxu0 %v597
    %633 = vmatprep.subr.bf16.mxu0 %v596
    %634 = vmatpush1.bf16.msra.mxu0 %v595
    %635 = vmatprep.subr.bf16.mxu0 %v594
    %636 = vmatpush1.bf16.msra.mxu0 %v593
    %637 = vmatprep.subr.bf16.mxu0 %v592
    %638 = vmatpush1.bf16.msra.mxu0 %v591
    %639 = vmatprep.subr.bf16.mxu0 %v590
    %640 = vmatpush1.bf16.msra.mxu0 %v589
    %641 = vmatprep.subr.bf16.mxu0 0
    %642 = vmatpush2.bf16.msra.mxu0 0
    %643 = vmatprep.subr.bf16.mxu0 0
    %644 = vmatpush2.bf16.msra.mxu0 0
    %645 = vmatprep.subr.bf16.mxu0 0
    %646 = vmatpush2.bf16.msra.mxu0 0
    %647 = vmatprep.subr.bf16.mxu0 0
    %648 = vmatpush2.bf16.msra.mxu0 0
    %649 = vmatprep.subr.bf16.mxu0 0
    %650 = vmatpush2.bf16.msra.mxu0 0
    %651 = vmatprep.subr.bf16.mxu0 0
    %652 = vmatpush2.bf16.msra.mxu0 0
    %653 = vmatprep.subr.bf16.mxu0 0
    %654 = vmatpush2.bf16.msra.mxu0 0
    %655 = vmatprep.subr.bf16.mxu0 0
    %656 = vmatpush2.bf16.msra.mxu0 0
    %657 = vmatprep.mubr.bf16.mxu0 0
    %658 = vmatmul.mubr.bf16.gmra.mxu0 %v614
    %v659 = vpop.f32.mrf.mxu0
    %v660 = vadd.f32 0.0, %v659
    %v661 = vpop.f32.mrf.mxu0
    %v662 = vadd.f32 0.0, %v661
    %v663 = vpop.f32.mrf.mxu0
    %v664 = vadd.f32 0.0, %v663
    %v665 = vpop.f32.mrf.mxu0
    %v666 = vadd.f32 0.0, %v665
    %667 = vmatprep.mubr.bf16.mxu0 0
    %668 = vmatmul.mubr.bf16.gmra.mxu0 %v617
    %v669 = vpop.f32.mrf.mxu0
    %v670 = vadd.f32 0.0, %v669
    %v671 = vpop.f32.mrf.mxu0
    %v672 = vadd.f32 0.0, %v671
    %v673 = vpop.f32.mrf.mxu0
    %v674 = vadd.f32 0.0, %v673
    %v675 = vpop.f32.mrf.mxu0
    %v676 = vadd.f32 0.0, %v675
    %677 = vmatprep.mubr.bf16.mxu0 0
    %678 = vmatmul.mubr.bf16.gmra.mxu0 %v620
    %v679 = vpop.f32.mrf.mxu0
    %v680 = vadd.f32 0.0, %v679
    %v681 = vpop.f32.mrf.mxu0
    %v682 = vadd.f32 0.0, %v681
    %v683 = vpop.f32.mrf.mxu0
    %v684 = vadd.f32 0.0, %v683
    %v685 = vpop.f32.mrf.mxu0
    %v686 = vadd.f32 0.0, %v685
    %687 = vmatprep.mubr.bf16.mxu0 0
    %688 = vmatmul.mubr.bf16.gmra.mxu0 %v623
    %v689 = vpop.f32.mrf.mxu0
    %v690 = vadd.f32 0.0, %v689
    %v691 = vpop.f32.mrf.mxu0
    %v692 = vadd.f32 0.0, %v691
    %v693 = vpop.f32.mrf.mxu0
    %v694 = vadd.f32 0.0, %v693
    %v695 = vpop.f32.mrf.mxu0
    %v696 = vadd.f32 0.0, %v695
    %697 = vdwg.mxu0
    %v698 = vadd.f32 %v490, %v660
    %v699 = vadd.f32 %v492, %v662
    %v700 = vadd.f32 %v494, %v664
    %v701 = vadd.f32 %v496, %v666
    %v702 = vadd.f32 %v500, %v670
    %v703 = vadd.f32 %v502, %v672
    %v704 = vadd.f32 %v504, %v674
    %v705 = vadd.f32 %v506, %v676
    %v706 = vadd.f32 %v510, %v680
    %v707 = vadd.f32 %v512, %v682
    %v708 = vadd.f32 %v514, %v684
    %v709 = vadd.f32 %v516, %v686
    %v710 = vadd.f32 %v520, %v690
    %v711 = vadd.f32 %v522, %v692
    %v712 = vadd.f32 %v524, %v694
    %v713 = vadd.f32 %v526, %v696
    %v714 = vld [vmem:[%s0 + $0x1c] sm:$0xf]
    %s715 = scalar_lea.vmem %s1, 288
    %v716 = vld [vmem:[%s715] sm:$0xff]
    %v717 = vld [vmem:[%s715 + $0x8] sm:$0xff]
    %v718 = vld [vmem:[%s715 + $0x10] sm:$0xff]
    %v719 = vld [vmem:[%s715 + $0x18] sm:$0xff]
    %v720 = vld [vmem:[%s715 + $0x20] sm:$0xff]
    %v721 = vld [vmem:[%s715 + $0x28] sm:$0xff]
    %v722 = vld [vmem:[%s715 + $0x30] sm:$0xff]
    %v723 = vld [vmem:[%s715 + $0x38] sm:$0xff]
    %v724 = vld [vmem:[%s715 + $0x40] sm:$0xff]
    %v725 = vld [vmem:[%s715 + $0x48] sm:$0xff]
    %v726 = vld [vmem:[%s715 + $0x50] sm:$0xff]
    %v727 = vld [vmem:[%s715 + $0x58] sm:$0xff]
    %v729 = vunpack.c.l.b16 %v714
    %v730 = vpack.c.b16 %v729, %v199
    %vm731 = vsmask.f32 6400
    %v733 = vshrl.u32 %v544, 16
    %v735 = vrot.slane %v733, 1
    %v736 = vshll.u32 %v544, 16
    %v738 = vrot.slane %v736, 2
    %v739 = vor.u32 %v735, %v738
    %v740 = vrot.slane %v218, 1
    %v741 = vrot.slane %v214, 2
    %v742 = vor.u32 %v740, %v741
    %v743 = vsel %vm731, %v739, %v742
    %v744 = vrot.slane %v226, 1
    %v745 = vrot.slane %v222, 2
    %v746 = vor.u32 %v744, %v745
    %v747 = vsel %vm731, %v742, %v746
    %v749 = vshrl.u32 %v730, 16
    %v751 = vrot.slane %v749, 1
    %v752 = vshll.u32 %v730, 16
    %v754 = vrot.slane %v752, 2
    %v755 = vor.u32 %v751, %v754
    %v756 = vsel %vm731, %v746, %v755
    %v769 = vunpack.c.l.b16 %v716
    %v770 = vunpack.c.h.b16 %v716
    %v771 = vunpack.c.l.b16 %v717
    %v772 = vunpack.c.h.b16 %v717
    %v773 = vunpack.c.l.b16 %v718
    %v774 = vunpack.c.h.b16 %v718
    %v775 = vunpack.c.l.b16 %v719
    %v776 = vunpack.c.h.b16 %v719
    %v777 = vunpack.c.l.b16 %v720
    %v778 = vunpack.c.h.b16 %v720
    %v779 = vunpack.c.l.b16 %v721
    %v780 = vunpack.c.h.b16 %v721
    %v781 = vunpack.c.l.b16 %v722
    %v782 = vunpack.c.h.b16 %v722
    %v783 = vunpack.c.l.b16 %v723
    %v784 = vunpack.c.h.b16 %v723
    %v785 = vunpack.c.l.b16 %v724
    %v786 = vunpack.c.h.b16 %v724
    %v787 = vunpack.c.l.b16 %v725
    %v788 = vunpack.c.h.b16 %v725
    %v789 = vunpack.c.l.b16 %v726
    %v790 = vunpack.c.h.b16 %v726
    %v791 = vunpack.c.l.b16 %v727
    %v792 = vunpack.c.h.b16 %v727
    %v793 = vpack.c.b16 %v771, %v769
    %v794 = vpack.c.b16 %v772, %v770
    %v795 = vpack.c.b16 %v775, %v773
    %v796 = vpack.c.b16 %v776, %v774
    %v797 = vpack.c.b16 %v779, %v777
    %v798 = vpack.c.b16 %v780, %v778
    %v799 = vpack.c.b16 %v783, %v781
    %v800 = vpack.c.b16 %v784, %v782
    %v801 = vpack.c.b16 %v787, %v785
    %v802 = vpack.c.b16 %v788, %v786
    %v803 = vpack.c.b16 %v791, %v789
    %v804 = vpack.c.b16 %v792, %v790
    %v818 = vsel %vm297, %v743, 0
    %v821 = vsel %vm297, %v747, 0
    %v824 = vsel %vm297, %v756, 0
    %v827 = vsel %vm297, %v755, 0
    %829 = vmatprep.subr.bf16.mxu0 0
    %830 = vmatpush1.bf16.msra.mxu0 0
    %831 = vmatprep.subr.bf16.mxu0 0
    %832 = vmatpush1.bf16.msra.mxu0 0
    %833 = vmatprep.subr.bf16.mxu0 %v804
    %834 = vmatpush1.bf16.msra.mxu0 %v803
    %835 = vmatprep.subr.bf16.mxu0 %v802
    %836 = vmatpush1.bf16.msra.mxu0 %v801
    %837 = vmatprep.subr.bf16.mxu0 %v800
    %838 = vmatpush1.bf16.msra.mxu0 %v799
    %839 = vmatprep.subr.bf16.mxu0 %v798
    %840 = vmatpush1.bf16.msra.mxu0 %v797
    %841 = vmatprep.subr.bf16.mxu0 %v796
    %842 = vmatpush1.bf16.msra.mxu0 %v795
    %843 = vmatprep.subr.bf16.mxu0 %v794
    %844 = vmatpush1.bf16.msra.mxu0 %v793
    %845 = vmatprep.subr.bf16.mxu0 0
    %846 = vmatpush2.bf16.msra.mxu0 0
    %847 = vmatprep.subr.bf16.mxu0 0
    %848 = vmatpush2.bf16.msra.mxu0 0
    %849 = vmatprep.subr.bf16.mxu0 0
    %850 = vmatpush2.bf16.msra.mxu0 0
    %851 = vmatprep.subr.bf16.mxu0 0
    %852 = vmatpush2.bf16.msra.mxu0 0
    %853 = vmatprep.subr.bf16.mxu0 0
    %854 = vmatpush2.bf16.msra.mxu0 0
    %855 = vmatprep.subr.bf16.mxu0 0
    %856 = vmatpush2.bf16.msra.mxu0 0
    %857 = vmatprep.subr.bf16.mxu0 0
    %858 = vmatpush2.bf16.msra.mxu0 0
    %859 = vmatprep.subr.bf16.mxu0 0
    %860 = vmatpush2.bf16.msra.mxu0 0
    %861 = vmatprep.mubr.bf16.mxu0 0
    %862 = vmatmul.mubr.bf16.gmra.mxu0 %v818
    %v863 = vpop.f32.mrf.mxu0
    %v864 = vadd.f32 0.0, %v863
    %v865 = vpop.f32.mrf.mxu0
    %v866 = vadd.f32 0.0, %v865
    %v867 = vpop.f32.mrf.mxu0
    %v868 = vadd.f32 0.0, %v867
    %v869 = vpop.f32.mrf.mxu0
    %v870 = vadd.f32 0.0, %v869
    %871 = vmatprep.mubr.bf16.mxu0 0
    %872 = vmatmul.mubr.bf16.gmra.mxu0 %v821
    %v873 = vpop.f32.mrf.mxu0
    %v874 = vadd.f32 0.0, %v873
    %v875 = vpop.f32.mrf.mxu0
    %v876 = vadd.f32 0.0, %v875
    %v877 = vpop.f32.mrf.mxu0
    %v878 = vadd.f32 0.0, %v877
    %v879 = vpop.f32.mrf.mxu0
    %v880 = vadd.f32 0.0, %v879
    %881 = vmatprep.mubr.bf16.mxu0 0
    %882 = vmatmul.mubr.bf16.gmra.mxu0 %v824
    %v883 = vpop.f32.mrf.mxu0
    %v884 = vadd.f32 0.0, %v883
    %v885 = vpop.f32.mrf.mxu0
    %v886 = vadd.f32 0.0, %v885
    %v887 = vpop.f32.mrf.mxu0
    %v888 = vadd.f32 0.0, %v887
    %v889 = vpop.f32.mrf.mxu0
    %v890 = vadd.f32 0.0, %v889
    %891 = vmatprep.mubr.bf16.mxu0 0
    %892 = vmatmul.mubr.bf16.gmra.mxu0 %v827
    %v893 = vpop.f32.mrf.mxu0
    %v894 = vadd.f32 0.0, %v893
    %v895 = vpop.f32.mrf.mxu0
    %v896 = vadd.f32 0.0, %v895
    %v897 = vpop.f32.mrf.mxu0
    %v898 = vadd.f32 0.0, %v897
    %v899 = vpop.f32.mrf.mxu0
    %v900 = vadd.f32 0.0, %v899
    %901 = vdwg.mxu0
    %v902 = vadd.f32 %v698, %v864
    %v903 = vadd.f32 %v699, %v866
    %v904 = vadd.f32 %v700, %v868
    %v905 = vadd.f32 %v701, %v870
    %v906 = vadd.f32 %v702, %v874
    %v907 = vadd.f32 %v703, %v876
    %v908 = vadd.f32 %v704, %v878
    %v909 = vadd.f32 %v705, %v880
    %v910 = vadd.f32 %v706, %v884
    %v911 = vadd.f32 %v707, %v886
    %v912 = vadd.f32 %v708, %v888
    %v913 = vadd.f32 %v709, %v890
    %v914 = vadd.f32 %v710, %v894
    %v915 = vadd.f32 %v711, %v896
    %v916 = vadd.f32 %v712, %v898
    %v917 = vadd.f32 %v713, %v900
    %v918 = vld [vmem:[%s0] sm:$0xc]
    %s919 = scalar_lea.vmem %s1, 384
    %v920 = vld [vmem:[%s919] sm:$0xff]
    %v921 = vld [vmem:[%s919 + $0x8] sm:$0xff]
    %v922 = vld [vmem:[%s919 + $0x10] sm:$0xff]
    %v923 = vld [vmem:[%s919 + $0x18] sm:$0xff]
    %v924 = vld [vmem:[%s919 + $0x20] sm:$0xff]
    %v925 = vld [vmem:[%s919 + $0x28] sm:$0xff]
    %v926 = vld [vmem:[%s919 + $0x30] sm:$0xff]
    %v927 = vld [vmem:[%s919 + $0x38] sm:$0xff]
    %v928 = vld [vmem:[%s919 + $0x40] sm:$0xff]
    %v929 = vld [vmem:[%s919 + $0x48] sm:$0xff]
    %v930 = vld [vmem:[%s919 + $0x50] sm:$0xff]
    %v931 = vld [vmem:[%s919 + $0x58] sm:$0xff]
    %v933 = vunpack.c.l.b16 %v918
    %v934 = vpack.c.b16 %v194, %v933
    %vm935 = vcmask 1045504
    %v936 = vrot.slane %v934, 2
    %v937 = vrot.slane %v202, 2
    %v938 = vsel %vm935, %v936, %v937
    %v939 = vrot.slane %v203, 2
    %v940 = vsel %vm935, %v937, %v939
    %v941 = vrot.slane %v730, 2
    %v942 = vsel %vm935, %v939, %v941
    %v955 = vunpack.c.l.b16 %v920
    %v956 = vunpack.c.h.b16 %v920
    %v957 = vunpack.c.l.b16 %v921
    %v958 = vunpack.c.h.b16 %v921
    %v959 = vunpack.c.l.b16 %v922
    %v960 = vunpack.c.h.b16 %v922
    %v961 = vunpack.c.l.b16 %v923
    %v962 = vunpack.c.h.b16 %v923
    %v963 = vunpack.c.l.b16 %v924
    %v964 = vunpack.c.h.b16 %v924
    %v965 = vunpack.c.l.b16 %v925
    %v966 = vunpack.c.h.b16 %v925
    %v967 = vunpack.c.l.b16 %v926
    %v968 = vunpack.c.h.b16 %v926
    %v969 = vunpack.c.l.b16 %v927
    %v970 = vunpack.c.h.b16 %v927
    %v971 = vunpack.c.l.b16 %v928
    %v972 = vunpack.c.h.b16 %v928
    %v973 = vunpack.c.l.b16 %v929
    %v974 = vunpack.c.h.b16 %v929
    %v975 = vunpack.c.l.b16 %v930
    %v976 = vunpack.c.h.b16 %v930
    %v977 = vunpack.c.l.b16 %v931
    %v978 = vunpack.c.h.b16 %v931
    %v979 = vpack.c.b16 %v957, %v955
    %v980 = vpack.c.b16 %v958, %v956
    %v981 = vpack.c.b16 %v961, %v959
    %v982 = vpack.c.b16 %v962, %v960
    %v983 = vpack.c.b16 %v965, %v963
    %v984 = vpack.c.b16 %v966, %v964
    %v985 = vpack.c.b16 %v969, %v967
    %v986 = vpack.c.b16 %v970, %v968
    %v987 = vpack.c.b16 %v973, %v971
    %v988 = vpack.c.b16 %v974, %v972
    %v989 = vpack.c.b16 %v977, %v975
    %v990 = vpack.c.b16 %v978, %v976
    %v1004 = vsel %vm297, %v938, 0
    %v1007 = vsel %vm297, %v940, 0
    %v1010 = vsel %vm297, %v942, 0
    %v1013 = vsel %vm297, %v941, 0
    %1015 = vmatprep.subr.bf16.mxu0 0
    %1016 = vmatpush1.bf16.msra.mxu0 0
    %1017 = vmatprep.subr.bf16.mxu0 0
    %1018 = vmatpush1.bf16.msra.mxu0 0
    %1019 = vmatprep.subr.bf16.mxu0 %v990
    %1020 = vmatpush1.bf16.msra.mxu0 %v989
    %1021 = vmatprep.subr.bf16.mxu0 %v988
    %1022 = vmatpush1.bf16.msra.mxu0 %v987
    %1023 = vmatprep.subr.bf16.mxu0 %v986
    %1024 = vmatpush1.bf16.msra.mxu0 %v985
    %1025 = vmatprep.subr.bf16.mxu0 %v984
    %1026 = vmatpush1.bf16.msra.mxu0 %v983
    %1027 = vmatprep.subr.bf16.mxu0 %v982
    %1028 = vmatpush1.bf16.msra.mxu0 %v981
    %1029 = vmatprep.subr.bf16.mxu0 %v980
    %1030 = vmatpush1.bf16.msra.mxu0 %v979
    %1031 = vmatprep.subr.bf16.mxu0 0
    %1032 = vmatpush2.bf16.msra.mxu0 0
    %1033 = vmatprep.subr.bf16.mxu0 0
    %1034 = vmatpush2.bf16.msra.mxu0 0
    %1035 = vmatprep.subr.bf16.mxu0 0
    %1036 = vmatpush2.bf16.msra.mxu0 0
    %1037 = vmatprep.subr.bf16.mxu0 0
    %1038 = vmatpush2.bf16.msra.mxu0 0
    %1039 = vmatprep.subr.bf16.mxu0 0
    %1040 = vmatpush2.bf16.msra.mxu0 0
    %1041 = vmatprep.subr.bf16.mxu0 0
    %1042 = vmatpush2.bf16.msra.mxu0 0
    %1043 = vmatprep.subr.bf16.mxu0 0
    %1044 = vmatpush2.bf16.msra.mxu0 0
    %1045 = vmatprep.subr.bf16.mxu0 0
    %1046 = vmatpush2.bf16.msra.mxu0 0
    %1047 = vmatprep.mubr.bf16.mxu0 0
    %1048 = vmatmul.mubr.bf16.gmra.mxu0 %v1004
    %v1049 = vpop.f32.mrf.mxu0
    %v1050 = vadd.f32 0.0, %v1049
    %v1051 = vpop.f32.mrf.mxu0
    %v1052 = vadd.f32 0.0, %v1051
    %v1053 = vpop.f32.mrf.mxu0
    %v1054 = vadd.f32 0.0, %v1053
    %v1055 = vpop.f32.mrf.mxu0
    %v1056 = vadd.f32 0.0, %v1055
    %1057 = vmatprep.mubr.bf16.mxu0 0
    %1058 = vmatmul.mubr.bf16.gmra.mxu0 %v1007
    %v1059 = vpop.f32.mrf.mxu0
    %v1060 = vadd.f32 0.0, %v1059
    %v1061 = vpop.f32.mrf.mxu0
    %v1062 = vadd.f32 0.0, %v1061
    %v1063 = vpop.f32.mrf.mxu0
    %v1064 = vadd.f32 0.0, %v1063
    %v1065 = vpop.f32.mrf.mxu0
    %v1066 = vadd.f32 0.0, %v1065
    %1067 = vmatprep.mubr.bf16.mxu0 0
    %1068 = vmatmul.mubr.bf16.gmra.mxu0 %v1010
    %v1069 = vpop.f32.mrf.mxu0
    %v1070 = vadd.f32 0.0, %v1069
    %v1071 = vpop.f32.mrf.mxu0
    %v1072 = vadd.f32 0.0, %v1071
    %v1073 = vpop.f32.mrf.mxu0
    %v1074 = vadd.f32 0.0, %v1073
    %v1075 = vpop.f32.mrf.mxu0
    %v1076 = vadd.f32 0.0, %v1075
    %1077 = vmatprep.mubr.bf16.mxu0 0
    %1078 = vmatmul.mubr.bf16.gmra.mxu0 %v1013
    %v1079 = vpop.f32.mrf.mxu0
    %v1080 = vadd.f32 0.0, %v1079
    %v1081 = vpop.f32.mrf.mxu0
    %v1082 = vadd.f32 0.0, %v1081
    %v1083 = vpop.f32.mrf.mxu0
    %v1084 = vadd.f32 0.0, %v1083
    %v1085 = vpop.f32.mrf.mxu0
    %v1086 = vadd.f32 0.0, %v1085
    %1087 = vdwg.mxu0
    %v1088 = vadd.f32 %v902, %v1050
    %v1089 = vadd.f32 %v903, %v1052
    %v1090 = vadd.f32 %v904, %v1054
    %v1091 = vadd.f32 %v905, %v1056
    %v1092 = vadd.f32 %v906, %v1060
    %v1093 = vadd.f32 %v907, %v1062
    %v1094 = vadd.f32 %v908, %v1064
    %v1095 = vadd.f32 %v909, %v1066
    %v1096 = vadd.f32 %v910, %v1070
    %v1097 = vadd.f32 %v911, %v1072
    %v1098 = vadd.f32 %v912, %v1074
    %v1099 = vadd.f32 %v913, %v1076
    %v1100 = vadd.f32 %v914, %v1080
    %v1101 = vadd.f32 %v915, %v1082
    %v1102 = vadd.f32 %v916, %v1084
    %v1103 = vadd.f32 %v917, %v1086
    %v1105 = vlaneseq
    %v1106 = vshrl.u32 %v1105, 7
    %v1107 = vsub.s32 0, %v1106
    %v1108 = vrot.slane %v145, %v1107
    %v1109 = vlaneseq
    %v1110 = vshrl.u32 %v1109, 7
    %v1111 = vsub.s32 1, %v1110
    %v1112 = vrot.slane %v145, %v1111
    %v1115 = vadd.f32 %v1088, %v1108
    %v1116 = vadd.f32 %v1089, %v1112
    %v1117 = vadd.f32 %v1090, %v1108
    %v1118 = vadd.f32 %v1091, %v1112
    %v1119 = vadd.f32 %v1092, %v1108
    %v1120 = vadd.f32 %v1093, %v1112
    %v1121 = vadd.f32 %v1094, %v1108
    %v1122 = vadd.f32 %v1095, %v1112
    %v1123 = vadd.f32 %v1096, %v1108
    %v1124 = vadd.f32 %v1097, %v1112
    %v1125 = vadd.f32 %v1098, %v1108
    %v1126 = vadd.f32 %v1099, %v1112
    %v1127 = vadd.f32 %v1100, %v1108
    %v1128 = vadd.f32 %v1101, %v1112
    %v1129 = vadd.f32 %v1102, %v1108
    %v1130 = vadd.f32 %v1103, %v1112
    %v1131 = vmax.f32 %v1115, 0.0
    %v1132 = vmax.f32 %v1116, 0.0
    %v1133 = vmax.f32 %v1117, 0.0
    %v1134 = vmax.f32 %v1118, 0.0
    %v1135 = vmax.f32 %v1119, 0.0
    %v1136 = vmax.f32 %v1120, 0.0
    %v1137 = vmax.f32 %v1121, 0.0
    %v1138 = vmax.f32 %v1122, 0.0
    %v1139 = vmax.f32 %v1123, 0.0
    %v1140 = vmax.f32 %v1124, 0.0
    %v1141 = vmax.f32 %v1125, 0.0
    %v1142 = vmax.f32 %v1126, 0.0
    %v1143 = vmax.f32 %v1127, 0.0
    %v1144 = vmax.f32 %v1128, 0.0
    %v1145 = vmax.f32 %v1129, 0.0
    %v1146 = vmax.f32 %v1130, 0.0
    %v1147 = vpack.c.bf16 %v1133, %v1131
    %v1148 = vpack.c.bf16 %v1134, %v1132
    %v1149 = vpack.c.bf16 %v1137, %v1135
    %v1150 = vpack.c.bf16 %v1138, %v1136
    %v1151 = vpack.c.bf16 %v1141, %v1139
    %v1152 = vpack.c.bf16 %v1142, %v1140
    %v1153 = vpack.c.bf16 %v1145, %v1143
    %v1154 = vpack.c.bf16 %v1146, %v1144
    %v1159 = vunpack.c.l.b16 %v25
    %v1160 = vunpack.c.l.b16 %v26
    %v1161 = vunpack.c.l.b16 %v27
    %v1162 = vunpack.c.l.b16 %v28
    %v1163 = vpack.c.b16 %v1160, %v1159
    %v1164 = vpack.c.b16 %v1162, %v1161
    %vm1165 = vcmask 490496
    %v1167 = vsel %vm1165, %v1163, 0
    %v1170 = vsel %vm1165, %v1164, 0
    %vm1172 = vcmask 1045504
    %v1174 = vsel %vm1172, %v1153, 0
    %v1177 = vsel %vm1172, %v1154, 0
    %1179 = vmatprep.subr.bf16.mxu0 0
    %1180 = vmatpush1.bf16.msra.mxu0 0
    %1181 = vmatprep.subr.bf16.mxu0 0
    %1182 = vmatpush1.bf16.msra.mxu0 0
    %1183 = vmatprep.subr.bf16.mxu0 0
    %1184 = vmatpush1.bf16.msra.mxu0 0
    %1185 = vmatprep.subr.bf16.mxu0 0
    %1186 = vmatpush1.bf16.msra.mxu0 0
    %1187 = vmatprep.subr.bf16.mxu0 %v1177
    %1188 = vmatpush1.bf16.msra.mxu0 %v1174
    %1189 = vmatprep.subr.bf16.mxu0 %v1152
    %1190 = vmatpush1.bf16.msra.mxu0 %v1151
    %1191 = vmatprep.subr.bf16.mxu0 %v1150
    %1192 = vmatpush1.bf16.msra.mxu0 %v1149
    %1193 = vmatprep.subr.bf16.mxu0 %v1148
    %1194 = vmatpush1.bf16.msra.mxu0 %v1147
    %1195 = vmatprep.subr.bf16.mxu0 0
    %1196 = vmatpush2.bf16.msra.mxu0 0
    %1197 = vmatprep.subr.bf16.mxu0 0
    %1198 = vmatpush2.bf16.msra.mxu0 0
    %1199 = vmatprep.subr.bf16.mxu0 0
    %1200 = vmatpush2.bf16.msra.mxu0 0
    %1201 = vmatprep.subr.bf16.mxu0 0
    %1202 = vmatpush2.bf16.msra.mxu0 0
    %1203 = vmatprep.subr.bf16.mxu0 0
    %1204 = vmatpush2.bf16.msra.mxu0 0
    %1205 = vmatprep.subr.bf16.mxu0 0
    %1206 = vmatpush2.bf16.msra.mxu0 0
    %1207 = vmatprep.subr.bf16.mxu0 0
    %1208 = vmatpush2.bf16.msra.mxu0 0
    %1209 = vmatprep.subr.bf16.mxu0 0
    %1210 = vmatpush2.bf16.msra.mxu0 0
    %1211 = vmatprep.mubr.bf16.mxu0 0
    %1212 = vmatmul.mubr.bf16.gmra.mxu0 %v1167
    %v1213 = vpop.f32.mrf.mxu0
    %v1214 = vadd.f32 0.0, %v1213
    %v1215 = vpop.f32.mrf.mxu0
    %v1216 = vadd.f32 0.0, %v1215
    %v1217 = vpop.f32.mrf.mxu0
    %v1218 = vadd.f32 0.0, %v1217
    %v1219 = vpop.f32.mrf.mxu0
    %v1220 = vadd.f32 0.0, %v1219
    %1221 = vmatprep.mubr.bf16.mxu0 0
    %1222 = vmatmul.mubr.bf16.gmra.mxu0 %v1170
    %v1223 = vpop.f32.mrf.mxu0
    %v1224 = vadd.f32 0.0, %v1223
    %v1225 = vpop.f32.mrf.mxu0
    %v1226 = vadd.f32 0.0, %v1225
    %v1227 = vpop.f32.mrf.mxu0
    %v1228 = vadd.f32 0.0, %v1227
    %v1229 = vpop.f32.mrf.mxu0
    %v1230 = vadd.f32 0.0, %v1229
    %1231 = vdwg.mxu0
    %v1236 = vunpack.c.l.b16 %v29
    %v1237 = vunpack.c.l.b16 %v30
    %v1238 = vunpack.c.l.b16 %v31
    %v1239 = vunpack.c.l.b16 %v32
    %v1240 = vpack.c.b16 %v1237, %v1236
    %v1241 = vpack.c.b16 %v1239, %v1238
    %v1243 = vsel %vm1165, %v1240, 0
    %v1246 = vsel %vm1165, %v1241, 0
    %1248 = vmatprep.subr.bf16.mxu0 0
    %1249 = vmatpush1.bf16.msra.mxu0 0
    %1250 = vmatprep.subr.bf16.mxu0 0
    %1251 = vmatpush1.bf16.msra.mxu0 0
    %1252 = vmatprep.subr.bf16.mxu0 0
    %1253 = vmatpush1.bf16.msra.mxu0 0
    %1254 = vmatprep.subr.bf16.mxu0 0
    %1255 = vmatpush1.bf16.msra.mxu0 0
    %1256 = vmatprep.subr.bf16.mxu0 %v1177
    %1257 = vmatpush1.bf16.msra.mxu0 %v1174
    %1258 = vmatprep.subr.bf16.mxu0 %v1152
    %1259 = vmatpush1.bf16.msra.mxu0 %v1151
    %1260 = vmatprep.subr.bf16.mxu0 %v1150
    %1261 = vmatpush1.bf16.msra.mxu0 %v1149
    %1262 = vmatprep.subr.bf16.mxu0 %v1148
    %1263 = vmatpush1.bf16.msra.mxu0 %v1147
    %1264 = vmatprep.subr.bf16.mxu0 0
    %1265 = vmatpush2.bf16.msra.mxu0 0
    %1266 = vmatprep.subr.bf16.mxu0 0
    %1267 = vmatpush2.bf16.msra.mxu0 0
    %1268 = vmatprep.subr.bf16.mxu0 0
    %1269 = vmatpush2.bf16.msra.mxu0 0
    %1270 = vmatprep.subr.bf16.mxu0 0
    %1271 = vmatpush2.bf16.msra.mxu0 0
    %1272 = vmatprep.subr.bf16.mxu0 0
    %1273 = vmatpush2.bf16.msra.mxu0 0
    %1274 = vmatprep.subr.bf16.mxu0 0
    %1275 = vmatpush2.bf16.msra.mxu0 0
    %1276 = vmatprep.subr.bf16.mxu0 0
    %1277 = vmatpush2.bf16.msra.mxu0 0
    %1278 = vmatprep.subr.bf16.mxu0 0
    %1279 = vmatpush2.bf16.msra.mxu0 0
    %1280 = vmatprep.mubr.bf16.mxu0 0
    %1281 = vmatmul.mubr.bf16.gmra.mxu0 %v1243
    %v1282 = vpop.f32.mrf.mxu0
    %v1283 = vadd.f32 0.0, %v1282
    %v1284 = vpop.f32.mrf.mxu0
    %v1285 = vadd.f32 0.0, %v1284
    %v1286 = vpop.f32.mrf.mxu0
    %v1287 = vadd.f32 0.0, %v1286
    %v1288 = vpop.f32.mrf.mxu0
    %v1289 = vadd.f32 0.0, %v1288
    %1290 = vmatprep.mubr.bf16.mxu0 0
    %1291 = vmatmul.mubr.bf16.gmra.mxu0 %v1246
    %v1292 = vpop.f32.mrf.mxu0
    %v1293 = vadd.f32 0.0, %v1292
    %v1294 = vpop.f32.mrf.mxu0
    %v1295 = vadd.f32 0.0, %v1294
    %v1296 = vpop.f32.mrf.mxu0
    %v1297 = vadd.f32 0.0, %v1296
    %v1298 = vpop.f32.mrf.mxu0
    %v1299 = vadd.f32 0.0, %v1298
    %1300 = vdwg.mxu0
    %v1301 = vmax.f32 %v1214, %v1283
    %v1302 = vmax.f32 %v1216, %v1285
    %v1303 = vmax.f32 %v1218, %v1287
    %v1304 = vmax.f32 %v1220, %v1289
    %v1305 = vmax.f32 %v1224, %v1293
    %v1306 = vmax.f32 %v1226, %v1295
    %v1307 = vmax.f32 %v1228, %v1297
    %v1308 = vmax.f32 %v1230, %v1299
    %v1309 = vpack.c.bf16 %v1303, %v1301
    %v1310 = vpack.c.bf16 %v1304, %v1302
    %v1311 = vpack.c.bf16 %v1307, %v1305
    %v1312 = vpack.c.bf16 %v1308, %v1306
    %v1334 = vunpack.c.l.b16 %v37
    %v1335 = vunpack.c.l.b16 %v38
    %v1336 = vunpack.c.l.b16 %v39
    %v1337 = vunpack.c.l.b16 %v40
    %v1338 = vunpack.c.l.b16 %v41
    %v1339 = vunpack.c.l.b16 %v42
    %v1340 = vunpack.c.l.b16 %v43
    %v1341 = vunpack.c.l.b16 %v44
    %v1342 = vunpack.c.l.b16 %v45
    %v1343 = vunpack.c.l.b16 %v46
    %v1344 = vunpack.c.l.b16 %v47
    %v1345 = vunpack.c.l.b16 %v48
    %v1346 = vunpack.c.l.b16 %v49
    %v1347 = vunpack.c.l.b16 %v50
    %v1348 = vunpack.c.l.b16 %v51
    %v1349 = vunpack.c.l.b16 %v52
    %v1350 = vunpack.c.l.b16 %v53
    %v1351 = vunpack.c.l.b16 %v54
    %v1352 = vunpack.c.l.b16 %v55
    %v1353 = vunpack.c.l.b16 %v56
    %v1354 = vunpack.c.l.b16 %v57
    %v1355 = vpack.c.b16 %v1335, %v1334
    %v1356 = vpack.c.b16 %v1337, %v1336
    %v1357 = vpack.c.b16 %v1339, %v1338
    %v1358 = vpack.c.b16 %v1341, %v1340
    %v1359 = vpack.c.b16 %v1343, %v1342
    %v1360 = vpack.c.b16 %v1345, %v1344
    %v1361 = vpack.c.b16 %v1347, %v1346
    %v1362 = vpack.c.b16 %v1349, %v1348
    %v1363 = vpack.c.b16 %v1351, %v1350
    %v1364 = vpack.c.b16 %v1353, %v1352
    %v1365 = vpack.c.b16 %v1354, %v1354
    %vm1376 = vcmask 326656
    %v1378 = vsel %vm1376, %v1310, 0
    %v1381 = vsel %vm1376, %v1312, 0
    %vm1383 = vcmask 1043456
    %v1385 = vsel %vm1383, %v1365, 0
    %1387 = vmatprep.subr.bf16.mxu0 0
    %1388 = vmatpush1.bf16.msra.mxu0 %v1362
    %1389 = vmatprep.subr.bf16.mxu0 0
    %1390 = vmatpush1.bf16.msra.mxu0 %v1361
    %1391 = vmatprep.subr.bf16.mxu0 0
    %1392 = vmatpush1.bf16.msra.mxu0 %v1360
    %1393 = vmatprep.subr.bf16.mxu0 0
    %1394 = vmatpush1.bf16.msra.mxu0 %v1359
    %1395 = vmatprep.subr.bf16.mxu0 0
    %1396 = vmatpush1.bf16.msra.mxu0 %v1358
    %1397 = vmatprep.subr.bf16.mxu0 0
    %1398 = vmatpush1.bf16.msra.mxu0 %v1357
    %1399 = vmatprep.subr.bf16.mxu0 0
    %1400 = vmatpush1.bf16.msra.mxu0 %v1356
    %1401 = vmatprep.subr.bf16.mxu0 0
    %1402 = vmatpush1.bf16.msra.mxu0 %v1355
    %1403 = vmatprep.subr.bf16.mxu0 0
    %1404 = vmatpush2.bf16.msra.mxu0 0
    %1405 = vmatprep.subr.bf16.mxu0 0
    %1406 = vmatpush2.bf16.msra.mxu0 0
    %1407 = vmatprep.subr.bf16.mxu0 0
    %1408 = vmatpush2.bf16.msra.mxu0 0
    %1409 = vmatprep.subr.bf16.mxu0 0
    %1410 = vmatpush2.bf16.msra.mxu0 0
    %1411 = vmatprep.subr.bf16.mxu0 0
    %1412 = vmatpush2.bf16.msra.mxu0 0
    %1413 = vmatprep.subr.bf16.mxu0 0
    %1414 = vmatpush2.bf16.msra.mxu0 %v1385
    %1415 = vmatprep.subr.bf16.mxu0 0
    %1416 = vmatpush2.bf16.msra.mxu0 %v1364
    %1417 = vmatprep.subr.bf16.mxu0 0
    %1418 = vmatpush2.bf16.msra.mxu0 %v1363
    %1419 = vmatprep.mubr.bf16.mxu0 %v1378
    %1420 = vmatmul.mubr.bf16.gmra.mxu0 %v1309
    %v1421 = vpop.f32.mrf.mxu0
    %v1422 = vadd.f32 0.0, %v1421
    %v1423 = vpop.f32.mrf.mxu0
    %v1424 = vpop.f32.mrf.mxu0
    %v1425 = vadd.f32 0.0, %v1424
    %v1426 = vpop.f32.mrf.mxu0
    %1427 = vmatprep.mubr.bf16.mxu0 %v1381
    %1428 = vmatmul.mubr.bf16.gmra.mxu0 %v1311
    %v1429 = vpop.f32.mrf.mxu0
    %v1430 = vadd.f32 0.0, %v1429
    %v1431 = vpop.f32.mrf.mxu0
    %v1432 = vpop.f32.mrf.mxu0
    %v1433 = vadd.f32 0.0, %v1432
    %v1434 = vpop.f32.mrf.mxu0
    %1435 = vdwg.mxu0
    %v1457 = vunpack.c.l.b16 %v58
    %v1458 = vunpack.c.l.b16 %v59
    %v1459 = vunpack.c.l.b16 %v60
    %v1460 = vunpack.c.l.b16 %v61
    %v1461 = vunpack.c.l.b16 %v62
    %v1462 = vunpack.c.l.b16 %v63
    %v1463 = vunpack.c.l.b16 %v64
    %v1464 = vunpack.c.l.b16 %v65
    %v1465 = vunpack.c.l.b16 %v66
    %v1466 = vunpack.c.l.b16 %v67
    %v1467 = vunpack.c.l.b16 %v68
    %v1468 = vunpack.c.l.b16 %v69
    %v1469 = vunpack.c.l.b16 %v70
    %v1470 = vunpack.c.l.b16 %v71
    %v1471 = vunpack.c.l.b16 %v72
    %v1472 = vunpack.c.l.b16 %v73
    %v1473 = vunpack.c.l.b16 %v74
    %v1474 = vunpack.c.l.b16 %v75
    %v1475 = vunpack.c.l.b16 %v76
    %v1476 = vunpack.c.l.b16 %v77
    %v1477 = vunpack.c.l.b16 %v78
    %v1478 = vpack.c.b16 %v1458, %v1457
    %v1479 = vpack.c.b16 %v1460, %v1459
    %v1480 = vpack.c.b16 %v1462, %v1461
    %v1481 = vpack.c.b16 %v1464, %v1463
    %v1482 = vpack.c.b16 %v1466, %v1465
    %v1483 = vpack.c.b16 %v1468, %v1467
    %v1484 = vpack.c.b16 %v1470, %v1469
    %v1485 = vpack.c.b16 %v1472, %v1471
    %v1486 = vpack.c.b16 %v1474, %v1473
    %v1487 = vpack.c.b16 %v1476, %v1475
    %v1488 = vpack.c.b16 %v1477, %v1477
    %v1500 = vsel %vm1383, %v1488, 0
    %1502 = vmatprep.subr.bf16.mxu0 0
    %1503 = vmatpush1.bf16.msra.mxu0 %v1485
    %1504 = vmatprep.subr.bf16.mxu0 0
    %1505 = vmatpush1.bf16.msra.mxu0 %v1484
    %1506 = vmatprep.subr.bf16.mxu0 0
    %1507 = vmatpush1.bf16.msra.mxu0 %v1483
    %1508 = vmatprep.subr.bf16.mxu0 0
    %1509 = vmatpush1.bf16.msra.mxu0 %v1482
    %1510 = vmatprep.subr.bf16.mxu0 0
    %1511 = vmatpush1.bf16.msra.mxu0 %v1481
    %1512 = vmatprep.subr.bf16.mxu0 0
    %1513 = vmatpush1.bf16.msra.mxu0 %v1480
    %1514 = vmatprep.subr.bf16.mxu0 0
    %1515 = vmatpush1.bf16.msra.mxu0 %v1479
    %1516 = vmatprep.subr.bf16.mxu0 0
    %1517 = vmatpush1.bf16.msra.mxu0 %v1478
    %1518 = vmatprep.subr.bf16.mxu0 0
    %1519 = vmatpush2.bf16.msra.mxu0 0
    %1520 = vmatprep.subr.bf16.mxu0 0
    %1521 = vmatpush2.bf16.msra.mxu0 0
    %1522 = vmatprep.subr.bf16.mxu0 0
    %1523 = vmatpush2.bf16.msra.mxu0 0
    %1524 = vmatprep.subr.bf16.mxu0 0
    %1525 = vmatpush2.bf16.msra.mxu0 0
    %1526 = vmatprep.subr.bf16.mxu0 0
    %1527 = vmatpush2.bf16.msra.mxu0 0
    %1528 = vmatprep.subr.bf16.mxu0 0
    %1529 = vmatpush2.bf16.msra.mxu0 %v1500
    %1530 = vmatprep.subr.bf16.mxu0 0
    %1531 = vmatpush2.bf16.msra.mxu0 %v1487
    %1532 = vmatprep.subr.bf16.mxu0 0
    %1533 = vmatpush2.bf16.msra.mxu0 %v1486
    %1534 = vmatprep.mubr.bf16.mxu0 %v1378
    %1535 = vmatmul.mubr.bf16.gmra.mxu0 %v1309
    %v1536 = vpop.f32.mrf.mxu0
    %v1537 = vadd.f32 0.0, %v1536
    %v1538 = vpop.f32.mrf.mxu0
    %v1539 = vpop.f32.mrf.mxu0
    %v1540 = vadd.f32 0.0, %v1539
    %v1541 = vpop.f32.mrf.mxu0
    %1542 = vmatprep.mubr.bf16.mxu0 %v1381
    %1543 = vmatmul.mubr.bf16.gmra.mxu0 %v1311
    %v1544 = vpop.f32.mrf.mxu0
    %v1545 = vadd.f32 0.0, %v1544
    %v1546 = vpop.f32.mrf.mxu0
    %v1547 = vpop.f32.mrf.mxu0
    %v1548 = vadd.f32 0.0, %v1547
    %v1549 = vpop.f32.mrf.mxu0
    %1550 = vdwg.mxu0
    %v1551 = vmax.f32 %v1422, %v1537
    %v1552 = vmax.f32 %v1425, %v1540
    %v1553 = vmax.f32 %v1430, %v1545
    %v1554 = vmax.f32 %v1433, %v1548
    %v1555 = vpack.c.bf16 %v1552, %v1551
    %v1556 = vpack.c.bf16 %v1554, %v1553
    %v1557 = vld [vmem:[%s2] sm:$0xff]
    %v1558 = vld [vmem:[%s2 + $0x8] sm:$0xff]
    %v1559 = vld [vmem:[%s2 + $0x10] sm:$0xff]
    %v1560 = vld [vmem:[%s2 + $0x18] sm:$0xff]
    %v1561 = vld [vmem:[%s2 + $0x20] sm:$0xff]
    %v1562 = vld [vmem:[%s2 + $0x28] sm:$0xff]
    %v1563 = vld [vmem:[%s2 + $0x30] sm:$0xff]
    %v1564 = vld [vmem:[%s2 + $0x38] sm:$0xff]
    %v1565 = vld [vmem:[%s2 + $0x40] sm:$0xff]
    %v1566 = vld [vmem:[%s2 + $0x48] sm:$0xff]
    %v1567 = vld [vmem:[%s2 + $0x50] sm:$0x33]
    %s1568 = scalar_lea.vmem %s2, 88
    %v1569 = vld [vmem:[%s1568] sm:$0xff]
    %v1570 = vld [vmem:[%s1568 + $0x8] sm:$0xff]
    %v1571 = vld [vmem:[%s1568 + $0x10] sm:$0xff]
    %v1572 = vld [vmem:[%s1568 + $0x18] sm:$0xff]
    %v1573 = vld [vmem:[%s1568 + $0x20] sm:$0xff]
    %v1574 = vld [vmem:[%s1568 + $0x28] sm:$0xff]
    %v1575 = vld [vmem:[%s1568 + $0x30] sm:$0xff]
    %v1576 = vld [vmem:[%s1568 + $0x38] sm:$0xff]
    %v1577 = vld [vmem:[%s1568 + $0x40] sm:$0xff]
    %v1578 = vld [vmem:[%s1568 + $0x48] sm:$0xff]
    %v1579 = vld [vmem:[%s1568 + $0x50] sm:$0x33]
    %v1581 = vshrl.u32 %v1555, 16
    %v1583 = vshll.u32 %v1555, 16
    %v1585 = vrot.slane %v1583, 1
    %v1586 = vor.u32 %v1581, %v1585
    %v1588 = vshll.u32 %v1556, 16
    %v1590 = vrot.slane %v1588, 1
    %v1591 = vsel %vm205, %v1586, %v1590
    %v1592 = vshrl.u32 %v1556, 16
    %v1594 = vor.u32 %v1592, %v1590
    %v1606 = vunpack.c.l.b16 %v1569
    %v1607 = vunpack.c.h.b16 %v1569
    %v1608 = vunpack.c.l.b16 %v1570
    %v1609 = vunpack.c.h.b16 %v1570
    %v1610 = vunpack.c.l.b16 %v1571
    %v1611 = vunpack.c.h.b16 %v1571
    %v1612 = vunpack.c.l.b16 %v1572
    %v1613 = vunpack.c.h.b16 %v1572
    %v1614 = vunpack.c.l.b16 %v1573
    %v1615 = vunpack.c.h.b16 %v1573
    %v1616 = vunpack.c.l.b16 %v1574
    %v1617 = vunpack.c.h.b16 %v1574
    %v1618 = vunpack.c.l.b16 %v1575
    %v1619 = vunpack.c.h.b16 %v1575
    %v1620 = vunpack.c.l.b16 %v1576
    %v1621 = vunpack.c.h.b16 %v1576
    %v1622 = vunpack.c.l.b16 %v1577
    %v1623 = vunpack.c.h.b16 %v1577
    %v1624 = vunpack.c.l.b16 %v1578
    %v1625 = vunpack.c.h.b16 %v1578
    %v1626 = vunpack.c.l.b16 %v1579
    %v1627 = vunpack.c.h.b16 %v1579
    %v1628 = vpack.c.b16 %v1608, %v1606
    %v1629 = vpack.c.b16 %v1609, %v1607
    %v1630 = vpack.c.b16 %v1612, %v1610
    %v1631 = vpack.c.b16 %v1613, %v1611
    %v1632 = vpack.c.b16 %v1616, %v1614
    %v1633 = vpack.c.b16 %v1617, %v1615
    %v1634 = vpack.c.b16 %v1620, %v1618
    %v1635 = vpack.c.b16 %v1621, %v1619
    %v1636 = vpack.c.b16 %v1624, %v1622
    %v1637 = vpack.c.b16 %v1625, %v1623
    %v1638 = vpack.c.b16 %v1626, %v1626
    %v1639 = vpack.c.b16 %v1627, %v1627
    %vm1650 = vcmask 687104
    %v1652 = vsel %vm1650, %v1591, 0
    %v1655 = vsel %vm1650, %v1594, 0
    %vm1657 = vcmask 1041408
    %v1659 = vsel %vm1657, %v1638, 0
    %v1662 = vsel %vm1657, %v1639, 0
    %1664 = vmatprep.subr.bf16.mxu0 0
    %1665 = vmatpush1.bf16.msra.mxu0 0
    %1666 = vmatprep.subr.bf16.mxu0 0
    %1667 = vmatpush1.bf16.msra.mxu0 0
    %1668 = vmatprep.subr.bf16.mxu0 %v1662
    %1669 = vmatpush1.bf16.msra.mxu0 %v1659
    %1670 = vmatprep.subr.bf16.mxu0 %v1637
    %1671 = vmatpush1.bf16.msra.mxu0 %v1636
    %1672 = vmatprep.subr.bf16.mxu0 %v1635
    %1673 = vmatpush1.bf16.msra.mxu0 %v1634
    %1674 = vmatprep.subr.bf16.mxu0 %v1633
    %1675 = vmatpush1.bf16.msra.mxu0 %v1632
    %1676 = vmatprep.subr.bf16.mxu0 %v1631
    %1677 = vmatpush1.bf16.msra.mxu0 %v1630
    %1678 = vmatprep.subr.bf16.mxu0 %v1629
    %1679 = vmatpush1.bf16.msra.mxu0 %v1628
    %1680 = vmatprep.subr.bf16.mxu0 0
    %1681 = vmatpush2.bf16.msra.mxu0 0
    %1682 = vmatprep.subr.bf16.mxu0 0
    %1683 = vmatpush2.bf16.msra.mxu0 0
    %1684 = vmatprep.subr.bf16.mxu0 0
    %1685 = vmatpush2.bf16.msra.mxu0 0
    %1686 = vmatprep.subr.bf16.mxu0 0
    %1687 = vmatpush2.bf16.msra.mxu0 0
    %1688 = vmatprep.subr.bf16.mxu0 0
    %1689 = vmatpush2.bf16.msra.mxu0 0
    %1690 = vmatprep.subr.bf16.mxu0 0
    %1691 = vmatpush2.bf16.msra.mxu0 0
    %1692 = vmatprep.subr.bf16.mxu0 0
    %1693 = vmatpush2.bf16.msra.mxu0 0
    %1694 = vmatprep.subr.bf16.mxu0 0
    %1695 = vmatpush2.bf16.msra.mxu0 0
    %1696 = vmatprep.mubr.bf16.mxu0 0
    %1697 = vmatmul.mubr.bf16.gmra.mxu0 %v1652
    %v1698 = vpop.f32.mrf.mxu0
    %v1699 = vadd.f32 0.0, %v1698
    %v1700 = vpop.f32.mrf.mxu0
    %v1701 = vadd.f32 0.0, %v1700
    %v1702 = vpop.f32.mrf.mxu0
    %v1703 = vadd.f32 0.0, %v1702
    %v1704 = vpop.f32.mrf.mxu0
    %v1705 = vadd.f32 0.0, %v1704
    %1706 = vmatprep.mubr.bf16.mxu0 0
    %1707 = vmatmul.mubr.bf16.gmra.mxu0 %v1655
    %v1708 = vpop.f32.mrf.mxu0
    %v1709 = vadd.f32 0.0, %v1708
    %v1710 = vpop.f32.mrf.mxu0
    %v1711 = vadd.f32 0.0, %v1710
    %v1712 = vpop.f32.mrf.mxu0
    %v1713 = vpop.f32.mrf.mxu0
    %1714 = vdwg.mxu0
    %v1726 = vunpack.c.l.b16 %v1557
    %v1727 = vunpack.c.h.b16 %v1557
    %v1728 = vunpack.c.l.b16 %v1558
    %v1729 = vunpack.c.h.b16 %v1558
    %v1730 = vunpack.c.l.b16 %v1559
    %v1731 = vunpack.c.h.b16 %v1559
    %v1732 = vunpack.c.l.b16 %v1560
    %v1733 = vunpack.c.h.b16 %v1560
    %v1734 = vunpack.c.l.b16 %v1561
    %v1735 = vunpack.c.h.b16 %v1561
    %v1736 = vunpack.c.l.b16 %v1562
    %v1737 = vunpack.c.h.b16 %v1562
    %v1738 = vunpack.c.l.b16 %v1563
    %v1739 = vunpack.c.h.b16 %v1563
    %v1740 = vunpack.c.l.b16 %v1564
    %v1741 = vunpack.c.h.b16 %v1564
    %v1742 = vunpack.c.l.b16 %v1565
    %v1743 = vunpack.c.h.b16 %v1565
    %v1744 = vunpack.c.l.b16 %v1566
    %v1745 = vunpack.c.h.b16 %v1566
    %v1746 = vunpack.c.l.b16 %v1567
    %v1747 = vunpack.c.h.b16 %v1567
    %v1748 = vpack.c.b16 %v1728, %v1726
    %v1749 = vpack.c.b16 %v1729, %v1727
    %v1750 = vpack.c.b16 %v1732, %v1730
    %v1751 = vpack.c.b16 %v1733, %v1731
    %v1752 = vpack.c.b16 %v1736, %v1734
    %v1753 = vpack.c.b16 %v1737, %v1735
    %v1754 = vpack.c.b16 %v1740, %v1738
    %v1755 = vpack.c.b16 %v1741, %v1739
    %v1756 = vpack.c.b16 %v1744, %v1742
    %v1757 = vpack.c.b16 %v1745, %v1743
    %v1758 = vpack.c.b16 %v1746, %v1746
    %v1759 = vpack.c.b16 %v1747, %v1747
    %v1770 = vsel %vm1650, %v1555, 0
    %v1772 = vsel %vm1650, %v1556, 0
    %v1775 = vsel %vm1657, %v1758, 0
    %v1778 = vsel %vm1657, %v1759, 0
    %1780 = vmatprep.subr.bf16.mxu0 0
    %1781 = vmatpush1.bf16.msra.mxu0 0
    %1782 = vmatprep.subr.bf16.mxu0 0
    %1783 = vmatpush1.bf16.msra.mxu0 0
    %1784 = vmatprep.subr.bf16.mxu0 %v1778
    %1785 = vmatpush1.bf16.msra.mxu0 %v1775
    %1786 = vmatprep.subr.bf16.mxu0 %v1757
    %1787 = vmatpush1.bf16.msra.mxu0 %v1756
    %1788 = vmatprep.subr.bf16.mxu0 %v1755
    %1789 = vmatpush1.bf16.msra.mxu0 %v1754
    %1790 = vmatprep.subr.bf16.mxu0 %v1753
    %1791 = vmatpush1.bf16.msra.mxu0 %v1752
    %1792 = vmatprep.subr.bf16.mxu0 %v1751
    %1793 = vmatpush1.bf16.msra.mxu0 %v1750
    %1794 = vmatprep.subr.bf16.mxu0 %v1749
    %1795 = vmatpush1.bf16.msra.mxu0 %v1748
    %1796 = vmatprep.subr.bf16.mxu0 0
    %1797 = vmatpush2.bf16.msra.mxu0 0
    %1798 = vmatprep.subr.bf16.mxu0 0
    %1799 = vmatpush2.bf16.msra.mxu0 0
    %1800 = vmatprep.subr.bf16.mxu0 0
    %1801 = vmatpush2.bf16.msra.mxu0 0
    %1802 = vmatprep.subr.bf16.mxu0 0
    %1803 = vmatpush2.bf16.msra.mxu0 0
    %1804 = vmatprep.subr.bf16.mxu0 0
    %1805 = vmatpush2.bf16.msra.mxu0 0
    %1806 = vmatprep.subr.bf16.mxu0 0
    %1807 = vmatpush2.bf16.msra.mxu0 0
    %1808 = vmatprep.subr.bf16.mxu0 0
    %1809 = vmatpush2.bf16.msra.mxu0 0
    %1810 = vmatprep.subr.bf16.mxu0 0
    %1811 = vmatpush2.bf16.msra.mxu0 0
    %1812 = vmatprep.mubr.bf16.mxu0 0
    %1813 = vmatmul.mubr.bf16.gmra.mxu0 %v1770
    %v1814 = vpop.f32.mrf.mxu0
    %v1815 = vadd.f32 %v1699, %v1814
    %v1816 = vpop.f32.mrf.mxu0
    %v1817 = vadd.f32 %v1701, %v1816
    %v1818 = vpop.f32.mrf.mxu0
    %v1819 = vadd.f32 %v1703, %v1818
    %v1820 = vpop.f32.mrf.mxu0
    %v1821 = vadd.f32 %v1705, %v1820
    %1822 = vmatprep.mubr.bf16.mxu0 0
    %1823 = vmatmul.mubr.bf16.gmra.mxu0 %v1772
    %v1824 = vpop.f32.mrf.mxu0
    %v1825 = vadd.f32 %v1709, %v1824
    %v1826 = vpop.f32.mrf.mxu0
    %v1827 = vadd.f32 %v1711, %v1826
    %v1828 = vpop.f32.mrf.mxu0
    %v1829 = vpop.f32.mrf.mxu0
    %1830 = vdwg.mxu0
    %s1831 = scalar_lea.vmem %s2, 176
    %v1832 = vld [vmem:[%s1831] sm:$0xff]
    %v1833 = vld [vmem:[%s1831 + $0x8] sm:$0xff]
    %v1834 = vld [vmem:[%s1831 + $0x10] sm:$0xff]
    %v1835 = vld [vmem:[%s1831 + $0x18] sm:$0xff]
    %v1836 = vld [vmem:[%s1831 + $0x20] sm:$0xff]
    %v1837 = vld [vmem:[%s1831 + $0x28] sm:$0xff]
    %v1838 = vld [vmem:[%s1831 + $0x30] sm:$0xff]
    %v1839 = vld [vmem:[%s1831 + $0x38] sm:$0xff]
    %v1840 = vld [vmem:[%s1831 + $0x40] sm:$0xff]
    %v1841 = vld [vmem:[%s1831 + $0x48] sm:$0xff]
    %v1842 = vld [vmem:[%s1831 + $0x50] sm:$0x33]
    %v1845 = vrot.slane %v1555, 1
    %v1846 = vrot.slane %v1556, 1
    %v1847 = vsel %vm545, %v1845, %v1846
    %v1859 = vunpack.c.l.b16 %v1832
    %v1860 = vunpack.c.h.b16 %v1832
    %v1861 = vunpack.c.l.b16 %v1833
    %v1862 = vunpack.c.h.b16 %v1833
    %v1863 = vunpack.c.l.b16 %v1834
    %v1864 = vunpack.c.h.b16 %v1834
    %v1865 = vunpack.c.l.b16 %v1835
    %v1866 = vunpack.c.h.b16 %v1835
    %v1867 = vunpack.c.l.b16 %v1836
    %v1868 = vunpack.c.h.b16 %v1836
    %v1869 = vunpack.c.l.b16 %v1837
    %v1870 = vunpack.c.h.b16 %v1837
    %v1871 = vunpack.c.l.b16 %v1838
    %v1872 = vunpack.c.h.b16 %v1838
    %v1873 = vunpack.c.l.b16 %v1839
    %v1874 = vunpack.c.h.b16 %v1839
    %v1875 = vunpack.c.l.b16 %v1840
    %v1876 = vunpack.c.h.b16 %v1840
    %v1877 = vunpack.c.l.b16 %v1841
    %v1878 = vunpack.c.h.b16 %v1841
    %v1879 = vunpack.c.l.b16 %v1842
    %v1880 = vunpack.c.h.b16 %v1842
    %v1881 = vpack.c.b16 %v1861, %v1859
    %v1882 = vpack.c.b16 %v1862, %v1860
    %v1883 = vpack.c.b16 %v1865, %v1863
    %v1884 = vpack.c.b16 %v1866, %v1864
    %v1885 = vpack.c.b16 %v1869, %v1867
    %v1886 = vpack.c.b16 %v1870, %v1868
    %v1887 = vpack.c.b16 %v1873, %v1871
    %v1888 = vpack.c.b16 %v1874, %v1872
    %v1889 = vpack.c.b16 %v1877, %v1875
    %v1890 = vpack.c.b16 %v1878, %v1876
    %v1891 = vpack.c.b16 %v1879, %v1879
    %v1892 = vpack.c.b16 %v1880, %v1880
    %v1904 = vsel %vm1650, %v1847, 0
    %v1907 = vsel %vm1650, %v1846, 0
    %v1910 = vsel %vm1657, %v1891, 0
    %v1913 = vsel %vm1657, %v1892, 0
    %1915 = vmatprep.subr.bf16.mxu0 0
    %1916 = vmatpush1.bf16.msra.mxu0 0
    %1917 = vmatprep.subr.bf16.mxu0 0
    %1918 = vmatpush1.bf16.msra.mxu0 0
    %1919 = vmatprep.subr.bf16.mxu0 %v1913
    %1920 = vmatpush1.bf16.msra.mxu0 %v1910
    %1921 = vmatprep.subr.bf16.mxu0 %v1890
    %1922 = vmatpush1.bf16.msra.mxu0 %v1889
    %1923 = vmatprep.subr.bf16.mxu0 %v1888
    %1924 = vmatpush1.bf16.msra.mxu0 %v1887
    %1925 = vmatprep.subr.bf16.mxu0 %v1886
    %1926 = vmatpush1.bf16.msra.mxu0 %v1885
    %1927 = vmatprep.subr.bf16.mxu0 %v1884
    %1928 = vmatpush1.bf16.msra.mxu0 %v1883
    %1929 = vmatprep.subr.bf16.mxu0 %v1882
    %1930 = vmatpush1.bf16.msra.mxu0 %v1881
    %1931 = vmatprep.subr.bf16.mxu0 0
    %1932 = vmatpush2.bf16.msra.mxu0 0
    %1933 = vmatprep.subr.bf16.mxu0 0
    %1934 = vmatpush2.bf16.msra.mxu0 0
    %1935 = vmatprep.subr.bf16.mxu0 0
    %1936 = vmatpush2.bf16.msra.mxu0 0
    %1937 = vmatprep.subr.bf16.mxu0 0
    %1938 = vmatpush2.bf16.msra.mxu0 0
    %1939 = vmatprep.subr.bf16.mxu0 0
    %1940 = vmatpush2.bf16.msra.mxu0 0
    %1941 = vmatprep.subr.bf16.mxu0 0
    %1942 = vmatpush2.bf16.msra.mxu0 0
    %1943 = vmatprep.subr.bf16.mxu0 0
    %1944 = vmatpush2.bf16.msra.mxu0 0
    %1945 = vmatprep.subr.bf16.mxu0 0
    %1946 = vmatpush2.bf16.msra.mxu0 0
    %1947 = vmatprep.mubr.bf16.mxu0 0
    %1948 = vmatmul.mubr.bf16.gmra.mxu0 %v1904
    %v1949 = vpop.f32.mrf.mxu0
    %v1950 = vadd.f32 0.0, %v1949
    %v1951 = vpop.f32.mrf.mxu0
    %v1952 = vadd.f32 0.0, %v1951
    %v1953 = vpop.f32.mrf.mxu0
    %v1954 = vadd.f32 0.0, %v1953
    %v1955 = vpop.f32.mrf.mxu0
    %v1956 = vadd.f32 0.0, %v1955
    %1957 = vmatprep.mubr.bf16.mxu0 0
    %1958 = vmatmul.mubr.bf16.gmra.mxu0 %v1907
    %v1959 = vpop.f32.mrf.mxu0
    %v1960 = vadd.f32 0.0, %v1959
    %v1961 = vpop.f32.mrf.mxu0
    %v1962 = vadd.f32 0.0, %v1961
    %v1963 = vpop.f32.mrf.mxu0
    %v1964 = vpop.f32.mrf.mxu0
    %1965 = vdwg.mxu0
    %v1966 = vadd.f32 %v1815, %v1950
    %v1967 = vadd.f32 %v1817, %v1952
    %v1968 = vadd.f32 %v1819, %v1954
    %v1969 = vadd.f32 %v1821, %v1956
    %v1970 = vadd.f32 %v1825, %v1960
    %v1971 = vadd.f32 %v1827, %v1962
    %s1972 = scalar_lea.vmem %s2, 264
    %v1973 = vld [vmem:[%s1972] sm:$0xff]
    %v1974 = vld [vmem:[%s1972 + $0x8] sm:$0xff]
    %v1975 = vld [vmem:[%s1972 + $0x10] sm:$0xff]
    %v1976 = vld [vmem:[%s1972 + $0x18] sm:$0xff]
    %v1977 = vld [vmem:[%s1972 + $0x20] sm:$0xff]
    %v1978 = vld [vmem:[%s1972 + $0x28] sm:$0xff]
    %v1979 = vld [vmem:[%s1972 + $0x30] sm:$0xff]
    %v1980 = vld [vmem:[%s1972 + $0x38] sm:$0xff]
    %v1981 = vld [vmem:[%s1972 + $0x40] sm:$0xff]
    %v1982 = vld [vmem:[%s1972 + $0x48] sm:$0xff]
    %v1983 = vld [vmem:[%s1972 + $0x50] sm:$0x33]
    %v1984 = vrot.slane %v1581, 1
    %v1985 = vrot.slane %v1583, 2
    %v1986 = vor.u32 %v1984, %v1985
    %v1987 = vrot.slane %v1592, 1
    %v1988 = vrot.slane %v1588, 2
    %v1989 = vor.u32 %v1987, %v1988
    %v1990 = vsel %vm731, %v1986, %v1989
    %v2002 = vunpack.c.l.b16 %v1973
    %v2003 = vunpack.c.h.b16 %v1973
    %v2004 = vunpack.c.l.b16 %v1974
    %v2005 = vunpack.c.h.b16 %v1974
    %v2006 = vunpack.c.l.b16 %v1975
    %v2007 = vunpack.c.h.b16 %v1975
    %v2008 = vunpack.c.l.b16 %v1976
    %v2009 = vunpack.c.h.b16 %v1976
    %v2010 = vunpack.c.l.b16 %v1977
    %v2011 = vunpack.c.h.b16 %v1977
    %v2012 = vunpack.c.l.b16 %v1978
    %v2013 = vunpack.c.h.b16 %v1978
    %v2014 = vunpack.c.l.b16 %v1979
    %v2015 = vunpack.c.h.b16 %v1979
    %v2016 = vunpack.c.l.b16 %v1980
    %v2017 = vunpack.c.h.b16 %v1980
    %v2018 = vunpack.c.l.b16 %v1981
    %v2019 = vunpack.c.h.b16 %v1981
    %v2020 = vunpack.c.l.b16 %v1982
    %v2021 = vunpack.c.h.b16 %v1982
    %v2022 = vunpack.c.l.b16 %v1983
    %v2023 = vunpack.c.h.b16 %v1983
    %v2024 = vpack.c.b16 %v2004, %v2002
    %v2025 = vpack.c.b16 %v2005, %v2003
    %v2026 = vpack.c.b16 %v2008, %v2006
    %v2027 = vpack.c.b16 %v2009, %v2007
    %v2028 = vpack.c.b16 %v2012, %v2010
    %v2029 = vpack.c.b16 %v2013, %v2011
    %v2030 = vpack.c.b16 %v2016, %v2014
    %v2031 = vpack.c.b16 %v2017, %v2015
    %v2032 = vpack.c.b16 %v2020, %v2018
    %v2033 = vpack.c.b16 %v2021, %v2019
    %v2034 = vpack.c.b16 %v2022, %v2022
    %v2035 = vpack.c.b16 %v2023, %v2023
    %v2047 = vsel %vm1650, %v1990, 0
    %v2050 = vsel %vm1650, %v1989, 0
    %v2053 = vsel %vm1657, %v2034, 0
    %v2056 = vsel %vm1657, %v2035, 0
    %2058 = vmatprep.subr.bf16.mxu0 0
    %2059 = vmatpush1.bf16.msra.mxu0 0
    %2060 = vmatprep.subr.bf16.mxu0 0
    %2061 = vmatpush1.bf16.msra.mxu0 0
    %2062 = vmatprep.subr.bf16.mxu0 %v2056
    %2063 = vmatpush1.bf16.msra.mxu0 %v2053
    %2064 = vmatprep.subr.bf16.mxu0 %v2033
    %2065 = vmatpush1.bf16.msra.mxu0 %v2032
    %2066 = vmatprep.subr.bf16.mxu0 %v2031
    %2067 = vmatpush1.bf16.msra.mxu0 %v2030
    %2068 = vmatprep.subr.bf16.mxu0 %v2029
    %2069 = vmatpush1.bf16.msra.mxu0 %v2028
    %2070 = vmatprep.subr.bf16.mxu0 %v2027
    %2071 = vmatpush1.bf16.msra.mxu0 %v2026
    %2072 = vmatprep.subr.bf16.mxu0 %v2025
    %2073 = vmatpush1.bf16.msra.mxu0 %v2024
    %2074 = vmatprep.subr.bf16.mxu0 0
    %2075 = vmatpush2.bf16.msra.mxu0 0
    %2076 = vmatprep.subr.bf16.mxu0 0
    %2077 = vmatpush2.bf16.msra.mxu0 0
    %2078 = vmatprep.subr.bf16.mxu0 0
    %2079 = vmatpush2.bf16.msra.mxu0 0
    %2080 = vmatprep.subr.bf16.mxu0 0
    %2081 = vmatpush2.bf16.msra.mxu0 0
    %2082 = vmatprep.subr.bf16.mxu0 0
    %2083 = vmatpush2.bf16.msra.mxu0 0
    %2084 = vmatprep.subr.bf16.mxu0 0
    %2085 = vmatpush2.bf16.msra.mxu0 0
    %2086 = vmatprep.subr.bf16.mxu0 0
    %2087 = vmatpush2.bf16.msra.mxu0 0
    %2088 = vmatprep.subr.bf16.mxu0 0
    %2089 = vmatpush2.bf16.msra.mxu0 0
    %2090 = vmatprep.mubr.bf16.mxu0 0
    %2091 = vmatmul.mubr.bf16.gmra.mxu0 %v2047
    %v2092 = vpop.f32.mrf.mxu0
    %v2093 = vadd.f32 0.0, %v2092
    %v2094 = vpop.f32.mrf.mxu0
    %v2095 = vadd.f32 0.0, %v2094
    %v2096 = vpop.f32.mrf.mxu0
    %v2097 = vadd.f32 0.0, %v2096
    %v2098 = vpop.f32.mrf.mxu0
    %v2099 = vadd.f32 0.0, %v2098
    %2100 = vmatprep.mubr.bf16.mxu0 0
    %2101 = vmatmul.mubr.bf16.gmra.mxu0 %v2050
    %v2102 = vpop.f32.mrf.mxu0
    %v2103 = vadd.f32 0.0, %v2102
    %v2104 = vpop.f32.mrf.mxu0
    %v2105 = vadd.f32 0.0, %v2104
    %v2106 = vpop.f32.mrf.mxu0
    %v2107 = vpop.f32.mrf.mxu0
    %2108 = vdwg.mxu0
    %v2109 = vadd.f32 %v1966, %v2093
    %v2110 = vadd.f32 %v1967, %v2095
    %v2111 = vadd.f32 %v1968, %v2097
    %v2112 = vadd.f32 %v1969, %v2099
    %v2113 = vadd.f32 %v1970, %v2103
    %v2114 = vadd.f32 %v1971, %v2105
    %s2115 = scalar_lea.vmem %s2, 352
    %v2116 = vld [vmem:[%s2115] sm:$0xff]
    %v2117 = vld [vmem:[%s2115 + $0x8] sm:$0xff]
    %v2118 = vld [vmem:[%s2115 + $0x10] sm:$0xff]
    %v2119 = vld [vmem:[%s2115 + $0x18] sm:$0xff]
    %v2120 = vld [vmem:[%s2115 + $0x20] sm:$0xff]
    %v2121 = vld [vmem:[%s2115 + $0x28] sm:$0xff]
    %v2122 = vld [vmem:[%s2115 + $0x30] sm:$0xff]
    %v2123 = vld [vmem:[%s2115 + $0x38] sm:$0xff]
    %v2124 = vld [vmem:[%s2115 + $0x40] sm:$0xff]
    %v2125 = vld [vmem:[%s2115 + $0x48] sm:$0xff]
    %v2126 = vld [vmem:[%s2115 + $0x50] sm:$0x33]
    %v2127 = vrot.slane %v1555, 2
    %v2128 = vrot.slane %v1556, 2
    %v2129 = vsel %vm935, %v2127, %v2128
    %v2141 = vunpack.c.l.b16 %v2116
    %v2142 = vunpack.c.h.b16 %v2116
    %v2143 = vunpack.c.l.b16 %v2117
    %v2144 = vunpack.c.h.b16 %v2117
    %v2145 = vunpack.c.l.b16 %v2118
    %v2146 = vunpack.c.h.b16 %v2118
    %v2147 = vunpack.c.l.b16 %v2119
    %v2148 = vunpack.c.h.b16 %v2119
    %v2149 = vunpack.c.l.b16 %v2120
    %v2150 = vunpack.c.h.b16 %v2120
    %v2151 = vunpack.c.l.b16 %v2121
    %v2152 = vunpack.c.h.b16 %v2121
    %v2153 = vunpack.c.l.b16 %v2122
    %v2154 = vunpack.c.h.b16 %v2122
    %v2155 = vunpack.c.l.b16 %v2123
    %v2156 = vunpack.c.h.b16 %v2123
    %v2157 = vunpack.c.l.b16 %v2124
    %v2158 = vunpack.c.h.b16 %v2124
    %v2159 = vunpack.c.l.b16 %v2125
    %v2160 = vunpack.c.h.b16 %v2125
    %v2161 = vunpack.c.l.b16 %v2126
    %v2162 = vunpack.c.h.b16 %v2126
    %v2163 = vpack.c.b16 %v2143, %v2141
    %v2164 = vpack.c.b16 %v2144, %v2142
    %v2165 = vpack.c.b16 %v2147, %v2145
    %v2166 = vpack.c.b16 %v2148, %v2146
    %v2167 = vpack.c.b16 %v2151, %v2149
    %v2168 = vpack.c.b16 %v2152, %v2150
    %v2169 = vpack.c.b16 %v2155, %v2153
    %v2170 = vpack.c.b16 %v2156, %v2154
    %v2171 = vpack.c.b16 %v2159, %v2157
    %v2172 = vpack.c.b16 %v2160, %v2158
    %v2173 = vpack.c.b16 %v2161, %v2161
    %v2174 = vpack.c.b16 %v2162, %v2162
    %v2186 = vsel %vm1650, %v2129, 0
    %v2189 = vsel %vm1650, %v2128, 0
    %v2192 = vsel %vm1657, %v2173, 0
    %v2195 = vsel %vm1657, %v2174, 0
    %2197 = vmatprep.subr.bf16.mxu0 0
    %2198 = vmatpush1.bf16.msra.mxu0 0
    %2199 = vmatprep.subr.bf16.mxu0 0
    %2200 = vmatpush1.bf16.msra.mxu0 0
    %2201 = vmatprep.subr.bf16.mxu0 %v2195
    %2202 = vmatpush1.bf16.msra.mxu0 %v2192
    %2203 = vmatprep.subr.bf16.mxu0 %v2172
    %2204 = vmatpush1.bf16.msra.mxu0 %v2171
    %2205 = vmatprep.subr.bf16.mxu0 %v2170
    %2206 = vmatpush1.bf16.msra.mxu0 %v2169
    %2207 = vmatprep.subr.bf16.mxu0 %v2168
    %2208 = vmatpush1.bf16.msra.mxu0 %v2167
    %2209 = vmatprep.subr.bf16.mxu0 %v2166
    %2210 = vmatpush1.bf16.msra.mxu0 %v2165
    %2211 = vmatprep.subr.bf16.mxu0 %v2164
    %2212 = vmatpush1.bf16.msra.mxu0 %v2163
    %2213 = vmatprep.subr.bf16.mxu0 0
    %2214 = vmatpush2.bf16.msra.mxu0 0
    %2215 = vmatprep.subr.bf16.mxu0 0
    %2216 = vmatpush2.bf16.msra.mxu0 0
    %2217 = vmatprep.subr.bf16.mxu0 0
    %2218 = vmatpush2.bf16.msra.mxu0 0
    %2219 = vmatprep.subr.bf16.mxu0 0
    %2220 = vmatpush2.bf16.msra.mxu0 0
    %2221 = vmatprep.subr.bf16.mxu0 0
    %2222 = vmatpush2.bf16.msra.mxu0 0
    %2223 = vmatprep.subr.bf16.mxu0 0
    %2224 = vmatpush2.bf16.msra.mxu0 0
    %2225 = vmatprep.subr.bf16.mxu0 0
    %2226 = vmatpush2.bf16.msra.mxu0 0
    %2227 = vmatprep.subr.bf16.mxu0 0
    %2228 = vmatpush2.bf16.msra.mxu0 0
    %2229 = vmatprep.mubr.bf16.mxu0 0
    %2230 = vmatmul.mubr.bf16.gmra.mxu0 %v2186
    %v2231 = vpop.f32.mrf.mxu0
    %v2232 = vadd.f32 0.0, %v2231
    %v2233 = vpop.f32.mrf.mxu0
    %v2234 = vadd.f32 0.0, %v2233
    %v2235 = vpop.f32.mrf.mxu0
    %v2236 = vadd.f32 0.0, %v2235
    %v2237 = vpop.f32.mrf.mxu0
    %v2238 = vadd.f32 0.0, %v2237
    %2239 = vmatprep.mubr.bf16.mxu0 0
    %2240 = vmatmul.mubr.bf16.gmra.mxu0 %v2189
    %v2241 = vpop.f32.mrf.mxu0
    %v2242 = vadd.f32 0.0, %v2241
    %v2243 = vpop.f32.mrf.mxu0
    %v2244 = vadd.f32 0.0, %v2243
    %v2245 = vpop.f32.mrf.mxu0
    %v2246 = vpop.f32.mrf.mxu0
    %2247 = vdwg.mxu0
    %v2248 = vadd.f32 %v2109, %v2232
    %v2249 = vadd.f32 %v2110, %v2234
    %v2250 = vadd.f32 %v2111, %v2236
    %v2251 = vadd.f32 %v2112, %v2238
    %v2252 = vadd.f32 %v2113, %v2242
    %v2253 = vadd.f32 %v2114, %v2244
    %v2255 = vlaneseq
    %v2256 = vshrl.u32 %v2255, 7
    %v2257 = vsub.s32 0, %v2256
    %v2258 = vrot.slane %v147, %v2257
    %v2259 = vlaneseq
    %v2260 = vshrl.u32 %v2259, 7
    %v2261 = vsub.s32 1, %v2260
    %v2262 = vrot.slane %v147, %v2261
    %v2265 = vadd.f32 %v2248, %v2258
    %v2266 = vadd.f32 %v2249, %v2262
    %v2267 = vadd.f32 %v2250, %v2258
    %v2268 = vadd.f32 %v2251, %v2262
    %v2269 = vadd.f32 %v2252, %v2258
    %v2270 = vadd.f32 %v2253, %v2262
    %v2271 = vmax.f32 %v2265, 0.0
    %v2272 = vmax.f32 %v2266, 0.0
    %v2273 = vmax.f32 %v2267, 0.0
    %v2274 = vmax.f32 %v2268, 0.0
    %v2275 = vmax.f32 %v2269, 0.0
    %v2276 = vmax.f32 %v2270, 0.0
    %v2277 = vpack.c.bf16 %v2273, %v2271
    %v2278 = vpack.c.bf16 %v2274, %v2272
    %v2279 = vpack.c.bf16 %v2275, %v2275
    %v2280 = vpack.c.bf16 %v2276, %v2276
    %v2283 = vunpack.c.l.b16 %v33
    %v2284 = vunpack.c.l.b16 %v34
    %v2285 = vpack.c.b16 %v2284, %v2283
    %vm2286 = vcmask 195584
    %v2288 = vsel %vm2286, %v2285, 0
    %v2291 = vsel %vm1383, %v2279, 0
    %v2294 = vsel %vm1383, %v2280, 0
    %2296 = vmatprep.subr.bf16.mxu0 0
    %2297 = vmatpush1.bf16.msra.mxu0 0
    %2298 = vmatprep.subr.bf16.mxu0 0
    %2299 = vmatpush1.bf16.msra.mxu0 0
    %2300 = vmatprep.subr.bf16.mxu0 0
    %2301 = vmatpush1.bf16.msra.mxu0 0
    %2302 = vmatprep.subr.bf16.mxu0 0
    %2303 = vmatpush1.bf16.msra.mxu0 0
    %2304 = vmatprep.subr.bf16.mxu0 0
    %2305 = vmatpush1.bf16.msra.mxu0 0
    %2306 = vmatprep.subr.bf16.mxu0 0
    %2307 = vmatpush1.bf16.msra.mxu0 0
    %2308 = vmatprep.subr.bf16.mxu0 %v2294
    %2309 = vmatpush1.bf16.msra.mxu0 %v2291
    %2310 = vmatprep.subr.bf16.mxu0 %v2278
    %2311 = vmatpush1.bf16.msra.mxu0 %v2277
    %2312 = vmatprep.subr.bf16.mxu0 0
    %2313 = vmatpush2.bf16.msra.mxu0 0
    %2314 = vmatprep.subr.bf16.mxu0 0
    %2315 = vmatpush2.bf16.msra.mxu0 0
    %2316 = vmatprep.subr.bf16.mxu0 0
    %2317 = vmatpush2.bf16.msra.mxu0 0
    %2318 = vmatprep.subr.bf16.mxu0 0
    %2319 = vmatpush2.bf16.msra.mxu0 0
    %2320 = vmatprep.subr.bf16.mxu0 0
    %2321 = vmatpush2.bf16.msra.mxu0 0
    %2322 = vmatprep.subr.bf16.mxu0 0
    %2323 = vmatpush2.bf16.msra.mxu0 0
    %2324 = vmatprep.subr.bf16.mxu0 0
    %2325 = vmatpush2.bf16.msra.mxu0 0
    %2326 = vmatprep.subr.bf16.mxu0 0
    %2327 = vmatpush2.bf16.msra.mxu0 0
    %2328 = vmatprep.mubr.bf16.mxu0 0
    %2329 = vmatmul.mubr.bf16.gmra.mxu0 %v2288
    %v2330 = vpop.f32.mrf.mxu0
    %v2331 = vadd.f32 0.0, %v2330
    %v2332 = vpop.f32.mrf.mxu0
    %v2333 = vadd.f32 0.0, %v2332
    %v2334 = vpop.f32.mrf.mxu0
    %v2335 = vadd.f32 0.0, %v2334
    %v2336 = vpop.f32.mrf.mxu0
    %v2337 = vadd.f32 0.0, %v2336
    %2338 = vdwg.mxu0
    %v2341 = vunpack.c.l.b16 %v35
    %v2342 = vunpack.c.l.b16 %v36
    %v2343 = vpack.c.b16 %v2342, %v2341
    %v2345 = vsel %vm2286, %v2343, 0
    %2347 = vmatprep.subr.bf16.mxu0 0
    %2348 = vmatpush1.bf16.msra.mxu0 0
    %2349 = vmatprep.subr.bf16.mxu0 0
    %2350 = vmatpush1.bf16.msra.mxu0 0
    %2351 = vmatprep.subr.bf16.mxu0 0
    %2352 = vmatpush1.bf16.msra.mxu0 0
    %2353 = vmatprep.subr.bf16.mxu0 0
    %2354 = vmatpush1.bf16.msra.mxu0 0
    %2355 = vmatprep.subr.bf16.mxu0 0
    %2356 = vmatpush1.bf16.msra.mxu0 0
    %2357 = vmatprep.subr.bf16.mxu0 0
    %2358 = vmatpush1.bf16.msra.mxu0 0
    %2359 = vmatprep.subr.bf16.mxu0 %v2294
    %2360 = vmatpush1.bf16.msra.mxu0 %v2291
    %2361 = vmatprep.subr.bf16.mxu0 %v2278
    %2362 = vmatpush1.bf16.msra.mxu0 %v2277
    %2363 = vmatprep.subr.bf16.mxu0 0
    %2364 = vmatpush2.bf16.msra.mxu0 0
    %2365 = vmatprep.subr.bf16.mxu0 0
    %2366 = vmatpush2.bf16.msra.mxu0 0
    %2367 = vmatprep.subr.bf16.mxu0 0
    %2368 = vmatpush2.bf16.msra.mxu0 0
    %2369 = vmatprep.subr.bf16.mxu0 0
    %2370 = vmatpush2.bf16.msra.mxu0 0
    %2371 = vmatprep.subr.bf16.mxu0 0
    %2372 = vmatpush2.bf16.msra.mxu0 0
    %2373 = vmatprep.subr.bf16.mxu0 0
    %2374 = vmatpush2.bf16.msra.mxu0 0
    %2375 = vmatprep.subr.bf16.mxu0 0
    %2376 = vmatpush2.bf16.msra.mxu0 0
    %2377 = vmatprep.subr.bf16.mxu0 0
    %2378 = vmatpush2.bf16.msra.mxu0 0
    %2379 = vmatprep.mubr.bf16.mxu0 0
    %2380 = vmatmul.mubr.bf16.gmra.mxu0 %v2345
    %v2381 = vpop.f32.mrf.mxu0
    %v2382 = vadd.f32 0.0, %v2381
    %v2383 = vpop.f32.mrf.mxu0
    %v2384 = vadd.f32 0.0, %v2383
    %v2385 = vpop.f32.mrf.mxu0
    %v2386 = vadd.f32 0.0, %v2385
    %v2387 = vpop.f32.mrf.mxu0
    %v2388 = vadd.f32 0.0, %v2387
    %2389 = vdwg.mxu0
    %v2390 = vmax.f32 %v2331, %v2382
    %v2391 = vmax.f32 %v2333, %v2384
    %v2392 = vmax.f32 %v2335, %v2386
    %v2393 = vmax.f32 %v2337, %v2388
    %v2394 = vpack.c.bf16 %v2392, %v2390
    %v2395 = vpack.c.bf16 %v2393, %v2391
    %v2416 = vunpack.c.l.b16 %v79
    %v2417 = vunpack.c.l.b16 %v80
    %v2418 = vunpack.c.l.b16 %v81
    %v2419 = vunpack.c.l.b16 %v82
    %v2420 = vunpack.c.l.b16 %v83
    %v2421 = vunpack.c.l.b16 %v84
    %v2422 = vunpack.c.l.b16 %v85
    %v2423 = vunpack.c.l.b16 %v86
    %v2424 = vunpack.c.l.b16 %v87
    %v2425 = vunpack.c.l.b16 %v88
    %v2426 = vunpack.c.l.b16 %v89
    %v2427 = vunpack.c.l.b16 %v90
    %v2428 = vunpack.c.l.b16 %v91
    %v2429 = vunpack.c.l.b16 %v92
    %v2430 = vunpack.c.l.b16 %v93
    %v2431 = vunpack.c.l.b16 %v94
    %v2432 = vunpack.c.l.b16 %v95
    %v2433 = vunpack.c.l.b16 %v96
    %v2434 = vunpack.c.l.b16 %v97
    %v2435 = vunpack.c.l.b16 %v98
    %v2436 = vpack.c.b16 %v2417, %v2416
    %v2437 = vpack.c.b16 %v2419, %v2418
    %v2438 = vpack.c.b16 %v2421, %v2420
    %v2439 = vpack.c.b16 %v2423, %v2422
    %v2440 = vpack.c.b16 %v2425, %v2424
    %v2441 = vpack.c.b16 %v2427, %v2426
    %v2442 = vpack.c.b16 %v2429, %v2428
    %v2443 = vpack.c.b16 %v2431, %v2430
    %v2444 = vpack.c.b16 %v2433, %v2432
    %v2445 = vpack.c.b16 %v2435, %v2434
    %vm2456 = vcmask 261120
    %v2458 = vsel %vm2456, %v2395, 0
    %2460 = vmatprep.subr.bf16.mxu0 0
    %2461 = vmatpush1.bf16.msra.mxu0 %v2443
    %2462 = vmatprep.subr.bf16.mxu0 0
    %2463 = vmatpush1.bf16.msra.mxu0 %v2442
    %2464 = vmatprep.subr.bf16.mxu0 0
    %2465 = vmatpush1.bf16.msra.mxu0 %v2441
    %2466 = vmatprep.subr.bf16.mxu0 0
    %2467 = vmatpush1.bf16.msra.mxu0 %v2440
    %2468 = vmatprep.subr.bf16.mxu0 0
    %2469 = vmatpush1.bf16.msra.mxu0 %v2439
    %2470 = vmatprep.subr.bf16.mxu0 0
    %2471 = vmatpush1.bf16.msra.mxu0 %v2438
    %2472 = vmatprep.subr.bf16.mxu0 0
    %2473 = vmatpush1.bf16.msra.mxu0 %v2437
    %2474 = vmatprep.subr.bf16.mxu0 0
    %2475 = vmatpush1.bf16.msra.mxu0 %v2436
    %2476 = vmatprep.subr.bf16.mxu0 0
    %2477 = vmatpush2.bf16.msra.mxu0 0
    %2478 = vmatprep.subr.bf16.mxu0 0
    %2479 = vmatpush2.bf16.msra.mxu0 0
    %2480 = vmatprep.subr.bf16.mxu0 0
    %2481 = vmatpush2.bf16.msra.mxu0 0
    %2482 = vmatprep.subr.bf16.mxu0 0
    %2483 = vmatpush2.bf16.msra.mxu0 0
    %2484 = vmatprep.subr.bf16.mxu0 0
    %2485 = vmatpush2.bf16.msra.mxu0 0
    %2486 = vmatprep.subr.bf16.mxu0 0
    %2487 = vmatpush2.bf16.msra.mxu0 0
    %2488 = vmatprep.subr.bf16.mxu0 0
    %2489 = vmatpush2.bf16.msra.mxu0 %v2445
    %2490 = vmatprep.subr.bf16.mxu0 0
    %2491 = vmatpush2.bf16.msra.mxu0 %v2444
    %2492 = vmatprep.mubr.bf16.mxu0 %v2458
    %2493 = vmatmul.mubr.bf16.gmra.mxu0 %v2394
    %v2494 = vpop.f32.mrf.mxu0
    %v2495 = vadd.f32 0.0, %v2494
    %v2496 = vpop.f32.mrf.mxu0
    %v2497 = vpop.f32.mrf.mxu0
    %v2498 = vadd.f32 0.0, %v2497
    %v2499 = vpop.f32.mrf.mxu0
    %2500 = vdwg.mxu0
    %v2521 = vunpack.c.l.b16 %v99
    %v2522 = vunpack.c.l.b16 %v100
    %v2523 = vunpack.c.l.b16 %v101
    %v2524 = vunpack.c.l.b16 %v102
    %v2525 = vunpack.c.l.b16 %v103
    %v2526 = vunpack.c.l.b16 %v104
    %v2527 = vunpack.c.l.b16 %v105
    %v2528 = vunpack.c.l.b16 %v106
    %v2529 = vunpack.c.l.b16 %v107
    %v2530 = vunpack.c.l.b16 %v108
    %v2531 = vunpack.c.l.b16 %v109
    %v2532 = vunpack.c.l.b16 %v110
    %v2533 = vunpack.c.l.b16 %v111
    %v2534 = vunpack.c.l.b16 %v112
    %v2535 = vunpack.c.l.b16 %v113
    %v2536 = vunpack.c.l.b16 %v114
    %v2537 = vunpack.c.l.b16 %v115
    %v2538 = vunpack.c.l.b16 %v116
    %v2539 = vunpack.c.l.b16 %v117
    %v2540 = vunpack.c.l.b16 %v118
    %v2541 = vpack.c.b16 %v2522, %v2521
    %v2542 = vpack.c.b16 %v2524, %v2523
    %v2543 = vpack.c.b16 %v2526, %v2525
    %v2544 = vpack.c.b16 %v2528, %v2527
    %v2545 = vpack.c.b16 %v2530, %v2529
    %v2546 = vpack.c.b16 %v2532, %v2531
    %v2547 = vpack.c.b16 %v2534, %v2533
    %v2548 = vpack.c.b16 %v2536, %v2535
    %v2549 = vpack.c.b16 %v2538, %v2537
    %v2550 = vpack.c.b16 %v2540, %v2539
    %2561 = vmatprep.subr.bf16.mxu0 0
    %2562 = vmatpush1.bf16.msra.mxu0 %v2548
    %2563 = vmatprep.subr.bf16.mxu0 0
    %2564 = vmatpush1.bf16.msra.mxu0 %v2547
    %2565 = vmatprep.subr.bf16.mxu0 0
    %2566 = vmatpush1.bf16.msra.mxu0 %v2546
    %2567 = vmatprep.subr.bf16.mxu0 0
    %2568 = vmatpush1.bf16.msra.mxu0 %v2545
    %2569 = vmatprep.subr.bf16.mxu0 0
    %2570 = vmatpush1.bf16.msra.mxu0 %v2544
    %2571 = vmatprep.subr.bf16.mxu0 0
    %2572 = vmatpush1.bf16.msra.mxu0 %v2543
    %2573 = vmatprep.subr.bf16.mxu0 0
    %2574 = vmatpush1.bf16.msra.mxu0 %v2542
    %2575 = vmatprep.subr.bf16.mxu0 0
    %2576 = vmatpush1.bf16.msra.mxu0 %v2541
    %2577 = vmatprep.subr.bf16.mxu0 0
    %2578 = vmatpush2.bf16.msra.mxu0 0
    %2579 = vmatprep.subr.bf16.mxu0 0
    %2580 = vmatpush2.bf16.msra.mxu0 0
    %2581 = vmatprep.subr.bf16.mxu0 0
    %2582 = vmatpush2.bf16.msra.mxu0 0
    %2583 = vmatprep.subr.bf16.mxu0 0
    %2584 = vmatpush2.bf16.msra.mxu0 0
    %2585 = vmatprep.subr.bf16.mxu0 0
    %2586 = vmatpush2.bf16.msra.mxu0 0
    %2587 = vmatprep.subr.bf16.mxu0 0
    %2588 = vmatpush2.bf16.msra.mxu0 0
    %2589 = vmatprep.subr.bf16.mxu0 0
    %2590 = vmatpush2.bf16.msra.mxu0 %v2550
    %2591 = vmatprep.subr.bf16.mxu0 0
    %2592 = vmatpush2.bf16.msra.mxu0 %v2549
    %2593 = vmatprep.mubr.bf16.mxu0 %v2458
    %2594 = vmatmul.mubr.bf16.gmra.mxu0 %v2394
    %v2595 = vpop.f32.mrf.mxu0
    %v2596 = vadd.f32 0.0, %v2595
    %v2597 = vpop.f32.mrf.mxu0
    %v2598 = vpop.f32.mrf.mxu0
    %v2599 = vadd.f32 0.0, %v2598
    %v2600 = vpop.f32.mrf.mxu0
    %2601 = vdwg.mxu0
    %v2602 = vmax.f32 %v2495, %v2596
    %v2603 = vmax.f32 %v2498, %v2599
    %v2604 = vpack.c.bf16 %v2603, %v2602
    %v2605 = vld [vmem:[%s3] sm:$0xf]
    %v2606 = vld [vmem:[%s3 + $0x4] sm:$0xf]
    %v2607 = vld [vmem:[%s3 + $0x8] sm:$0xf]
    %v2608 = vld [vmem:[%s3 + $0xc] sm:$0xf]
    %v2609 = vld [vmem:[%s3 + $0x10] sm:$0xf]
    %v2610 = vld [vmem:[%s3 + $0x14] sm:$0xf]
    %v2611 = vld [vmem:[%s3 + $0x18] sm:$0xf]
    %v2612 = vld [vmem:[%s3 + $0x1c] sm:$0xf]
    %v2613 = vld [vmem:[%s3 + $0x20] sm:$0xf]
    %v2614 = vld [vmem:[%s3 + $0x24] sm:$0xf]
    %s2615 = scalar_lea.vmem %s3, 40
    %v2616 = vld [vmem:[%s2615] sm:$0xf]
    %v2617 = vld [vmem:[%s2615 + $0x4] sm:$0xf]
    %v2618 = vld [vmem:[%s2615 + $0x8] sm:$0xf]
    %v2619 = vld [vmem:[%s2615 + $0xc] sm:$0xf]
    %v2620 = vld [vmem:[%s2615 + $0x10] sm:$0xf]
    %v2621 = vld [vmem:[%s2615 + $0x14] sm:$0xf]
    %v2622 = vld [vmem:[%s2615 + $0x18] sm:$0xf]
    %v2623 = vld [vmem:[%s2615 + $0x1c] sm:$0xf]
    %v2624 = vld [vmem:[%s2615 + $0x20] sm:$0xf]
    %v2625 = vld [vmem:[%s2615 + $0x24] sm:$0xf]
    %v2627 = vrot.slane %v2604, 1
    %v2638 = vunpack.c.l.b16 %v2616
    %v2639 = vunpack.c.l.b16 %v2617
    %v2640 = vunpack.c.l.b16 %v2618
    %v2641 = vunpack.c.l.b16 %v2619
    %v2642 = vunpack.c.l.b16 %v2620
    %v2643 = vunpack.c.l.b16 %v2621
    %v2644 = vunpack.c.l.b16 %v2622
    %v2645 = vunpack.c.l.b16 %v2623
    %v2646 = vunpack.c.l.b16 %v2624
    %v2647 = vunpack.c.l.b16 %v2625
    %v2648 = vpack.c.b16 %v2639, %v2638
    %v2649 = vpack.c.b16 %v2641, %v2640
    %v2650 = vpack.c.b16 %v2643, %v2642
    %v2651 = vpack.c.b16 %v2645, %v2644
    %v2652 = vpack.c.b16 %v2647, %v2646
    %vm2658 = vcmask 654336
    %v2660 = vsel %vm2658, %v2627, 0
    %2662 = vmatprep.subr.bf16.mxu0 0
    %2663 = vmatpush1.bf16.msra.mxu0 0
    %2664 = vmatprep.subr.bf16.mxu0 0
    %2665 = vmatpush1.bf16.msra.mxu0 0
    %2666 = vmatprep.subr.bf16.mxu0 0
    %2667 = vmatpush1.bf16.msra.mxu0 0
    %2668 = vmatprep.subr.bf16.mxu0 0
    %2669 = vmatpush1.bf16.msra.mxu0 %v2652
    %2670 = vmatprep.subr.bf16.mxu0 0
    %2671 = vmatpush1.bf16.msra.mxu0 %v2651
    %2672 = vmatprep.subr.bf16.mxu0 0
    %2673 = vmatpush1.bf16.msra.mxu0 %v2650
    %2674 = vmatprep.subr.bf16.mxu0 0
    %2675 = vmatpush1.bf16.msra.mxu0 %v2649
    %2676 = vmatprep.subr.bf16.mxu0 0
    %2677 = vmatpush1.bf16.msra.mxu0 %v2648
    %2678 = vmatprep.subr.bf16.mxu0 0
    %2679 = vmatpush2.bf16.msra.mxu0 0
    %2680 = vmatprep.subr.bf16.mxu0 0
    %2681 = vmatpush2.bf16.msra.mxu0 0
    %2682 = vmatprep.subr.bf16.mxu0 0
    %2683 = vmatpush2.bf16.msra.mxu0 0
    %2684 = vmatprep.subr.bf16.mxu0 0
    %2685 = vmatpush2.bf16.msra.mxu0 0
    %2686 = vmatprep.subr.bf16.mxu0 0
    %2687 = vmatpush2.bf16.msra.mxu0 0
    %2688 = vmatprep.subr.bf16.mxu0 0
    %2689 = vmatpush2.bf16.msra.mxu0 0
    %2690 = vmatprep.subr.bf16.mxu0 0
    %2691 = vmatpush2.bf16.msra.mxu0 0
    %2692 = vmatprep.subr.bf16.mxu0 0
    %2693 = vmatpush2.bf16.msra.mxu0 0
    %2694 = vmatprep.mubr.bf16.mxu0 0
    %2695 = vmatmul.mubr.bf16.gmra.mxu0 %v2660
    %v2696 = vpop.f32.mrf.mxu0
    %v2697 = vadd.f32 0.0, %v2696
    %v2698 = vpop.f32.mrf.mxu0
    %v2699 = vpop.f32.mrf.mxu0
    %v2700 = vpop.f32.mrf.mxu0
    %2701 = vdwg.mxu0
    %v2712 = vunpack.c.l.b16 %v2605
    %v2713 = vunpack.c.l.b16 %v2606
    %v2714 = vunpack.c.l.b16 %v2607
    %v2715 = vunpack.c.l.b16 %v2608
    %v2716 = vunpack.c.l.b16 %v2609
    %v2717 = vunpack.c.l.b16 %v2610
    %v2718 = vunpack.c.l.b16 %v2611
    %v2719 = vunpack.c.l.b16 %v2612
    %v2720 = vunpack.c.l.b16 %v2613
    %v2721 = vunpack.c.l.b16 %v2614
    %v2722 = vpack.c.b16 %v2713, %v2712
    %v2723 = vpack.c.b16 %v2715, %v2714
    %v2724 = vpack.c.b16 %v2717, %v2716
    %v2725 = vpack.c.b16 %v2719, %v2718
    %v2726 = vpack.c.b16 %v2721, %v2720
    %v2733 = vsel %vm2658, %v2604, 0
    %2735 = vmatprep.subr.bf16.mxu0 0
    %2736 = vmatpush1.bf16.msra.mxu0 0
    %2737 = vmatprep.subr.bf16.mxu0 0
    %2738 = vmatpush1.bf16.msra.mxu0 0
    %2739 = vmatprep.subr.bf16.mxu0 0
    %2740 = vmatpush1.bf16.msra.mxu0 0
    %2741 = vmatprep.subr.bf16.mxu0 0
    %2742 = vmatpush1.bf16.msra.mxu0 %v2726
    %2743 = vmatprep.subr.bf16.mxu0 0
    %2744 = vmatpush1.bf16.msra.mxu0 %v2725
    %2745 = vmatprep.subr.bf16.mxu0 0
    %2746 = vmatpush1.bf16.msra.mxu0 %v2724
    %2747 = vmatprep.subr.bf16.mxu0 0
    %2748 = vmatpush1.bf16.msra.mxu0 %v2723
    %2749 = vmatprep.subr.bf16.mxu0 0
    %2750 = vmatpush1.bf16.msra.mxu0 %v2722
    %2751 = vmatprep.subr.bf16.mxu0 0
    %2752 = vmatpush2.bf16.msra.mxu0 0
    %2753 = vmatprep.subr.bf16.mxu0 0
    %2754 = vmatpush2.bf16.msra.mxu0 0
    %2755 = vmatprep.subr.bf16.mxu0 0
    %2756 = vmatpush2.bf16.msra.mxu0 0
    %2757 = vmatprep.subr.bf16.mxu0 0
    %2758 = vmatpush2.bf16.msra.mxu0 0
    %2759 = vmatprep.subr.bf16.mxu0 0
    %2760 = vmatpush2.bf16.msra.mxu0 0
    %2761 = vmatprep.subr.bf16.mxu0 0
    %2762 = vmatpush2.bf16.msra.mxu0 0
    %2763 = vmatprep.subr.bf16.mxu0 0
    %2764 = vmatpush2.bf16.msra.mxu0 0
    %2765 = vmatprep.subr.bf16.mxu0 0
    %2766 = vmatpush2.bf16.msra.mxu0 0
    %2767 = vmatprep.mubr.bf16.mxu0 0
    %2768 = vmatmul.mubr.bf16.gmra.mxu0 %v2733
    %v2769 = vpop.f32.mrf.mxu0
    %v2770 = vadd.f32 %v2697, %v2769
    %v2771 = vpop.f32.mrf.mxu0
    %v2772 = vpop.f32.mrf.mxu0
    %v2773 = vpop.f32.mrf.mxu0
    %2774 = vdwg.mxu0
    %s2775 = scalar_lea.vmem %s3, 80
    %v2776 = vld [vmem:[%s2775] sm:$0xf]
    %v2777 = vld [vmem:[%s2775 + $0x4] sm:$0xf]
    %v2778 = vld [vmem:[%s2775 + $0x8] sm:$0xf]
    %v2779 = vld [vmem:[%s2775 + $0xc] sm:$0xf]
    %v2780 = vld [vmem:[%s2775 + $0x10] sm:$0xf]
    %v2781 = vld [vmem:[%s2775 + $0x14] sm:$0xf]
    %v2782 = vld [vmem:[%s2775 + $0x18] sm:$0xf]
    %v2783 = vld [vmem:[%s2775 + $0x1c] sm:$0xf]
    %v2784 = vld [vmem:[%s2775 + $0x20] sm:$0xf]
    %v2785 = vld [vmem:[%s2775 + $0x24] sm:$0xf]
    %v2786 = vrot.slane %v2604, 2
    %v2797 = vunpack.c.l.b16 %v2776
    %v2798 = vunpack.c.l.b16 %v2777
    %v2799 = vunpack.c.l.b16 %v2778
    %v2800 = vunpack.c.l.b16 %v2779
    %v2801 = vunpack.c.l.b16 %v2780
    %v2802 = vunpack.c.l.b16 %v2781
    %v2803 = vunpack.c.l.b16 %v2782
    %v2804 = vunpack.c.l.b16 %v2783
    %v2805 = vunpack.c.l.b16 %v2784
    %v2806 = vunpack.c.l.b16 %v2785
    %v2807 = vpack.c.b16 %v2798, %v2797
    %v2808 = vpack.c.b16 %v2800, %v2799
    %v2809 = vpack.c.b16 %v2802, %v2801
    %v2810 = vpack.c.b16 %v2804, %v2803
    %v2811 = vpack.c.b16 %v2806, %v2805
    %v2818 = vsel %vm2658, %v2786, 0
    %2820 = vmatprep.subr.bf16.mxu0 0
    %2821 = vmatpush1.bf16.msra.mxu0 0
    %2822 = vmatprep.subr.bf16.mxu0 0
    %2823 = vmatpush1.bf16.msra.mxu0 0
    %2824 = vmatprep.subr.bf16.mxu0 0
    %2825 = vmatpush1.bf16.msra.mxu0 0
    %2826 = vmatprep.subr.bf16.mxu0 0
    %2827 = vmatpush1.bf16.msra.mxu0 %v2811
    %2828 = vmatprep.subr.bf16.mxu0 0
    %2829 = vmatpush1.bf16.msra.mxu0 %v2810
    %2830 = vmatprep.subr.bf16.mxu0 0
    %2831 = vmatpush1.bf16.msra.mxu0 %v2809
    %2832 = vmatprep.subr.bf16.mxu0 0
    %2833 = vmatpush1.bf16.msra.mxu0 %v2808
    %2834 = vmatprep.subr.bf16.mxu0 0
    %2835 = vmatpush1.bf16.msra.mxu0 %v2807
    %2836 = vmatprep.subr.bf16.mxu0 0
    %2837 = vmatpush2.bf16.msra.mxu0 0
    %2838 = vmatprep.subr.bf16.mxu0 0
    %2839 = vmatpush2.bf16.msra.mxu0 0
    %2840 = vmatprep.subr.bf16.mxu0 0
    %2841 = vmatpush2.bf16.msra.mxu0 0
    %2842 = vmatprep.subr.bf16.mxu0 0
    %2843 = vmatpush2.bf16.msra.mxu0 0
    %2844 = vmatprep.subr.bf16.mxu0 0
    %2845 = vmatpush2.bf16.msra.mxu0 0
    %2846 = vmatprep.subr.bf16.mxu0 0
    %2847 = vmatpush2.bf16.msra.mxu0 0
    %2848 = vmatprep.subr.bf16.mxu0 0
    %2849 = vmatpush2.bf16.msra.mxu0 0
    %2850 = vmatprep.subr.bf16.mxu0 0
    %2851 = vmatpush2.bf16.msra.mxu0 0
    %2852 = vmatprep.mubr.bf16.mxu0 0
    %2853 = vmatmul.mubr.bf16.gmra.mxu0 %v2818
    %v2854 = vpop.f32.mrf.mxu0
    %v2855 = vadd.f32 0.0, %v2854
    %v2856 = vpop.f32.mrf.mxu0
    %v2857 = vpop.f32.mrf.mxu0
    %v2858 = vpop.f32.mrf.mxu0
    %2859 = vdwg.mxu0
    %v2860 = vadd.f32 %v2770, %v2855
    %s2861 = scalar_lea.vmem %s3, 120
    %v2862 = vld [vmem:[%s2861] sm:$0xf]
    %v2863 = vld [vmem:[%s2861 + $0x4] sm:$0xf]
    %v2864 = vld [vmem:[%s2861 + $0x8] sm:$0xf]
    %v2865 = vld [vmem:[%s2861 + $0xc] sm:$0xf]
    %v2866 = vld [vmem:[%s2861 + $0x10] sm:$0xf]
    %v2867 = vld [vmem:[%s2861 + $0x14] sm:$0xf]
    %v2868 = vld [vmem:[%s2861 + $0x18] sm:$0xf]
    %v2869 = vld [vmem:[%s2861 + $0x1c] sm:$0xf]
    %v2870 = vld [vmem:[%s2861 + $0x20] sm:$0xf]
    %v2871 = vld [vmem:[%s2861 + $0x24] sm:$0xf]
    %v2872 = vrot.slane %v2604, 3
    %v2883 = vunpack.c.l.b16 %v2862
    %v2884 = vunpack.c.l.b16 %v2863
    %v2885 = vunpack.c.l.b16 %v2864
    %v2886 = vunpack.c.l.b16 %v2865
    %v2887 = vunpack.c.l.b16 %v2866
    %v2888 = vunpack.c.l.b16 %v2867
    %v2889 = vunpack.c.l.b16 %v2868
    %v2890 = vunpack.c.l.b16 %v2869
    %v2891 = vunpack.c.l.b16 %v2870
    %v2892 = vunpack.c.l.b16 %v2871
    %v2893 = vpack.c.b16 %v2884, %v2883
    %v2894 = vpack.c.b16 %v2886, %v2885
    %v2895 = vpack.c.b16 %v2888, %v2887
    %v2896 = vpack.c.b16 %v2890, %v2889
    %v2897 = vpack.c.b16 %v2892, %v2891
    %v2904 = vsel %vm2658, %v2872, 0
    %2906 = vmatprep.subr.bf16.mxu0 0
    %2907 = vmatpush1.bf16.msra.mxu0 0
    %2908 = vmatprep.subr.bf16.mxu0 0
    %2909 = vmatpush1.bf16.msra.mxu0 0
    %2910 = vmatprep.subr.bf16.mxu0 0
    %2911 = vmatpush1.bf16.msra.mxu0 0
    %2912 = vmatprep.subr.bf16.mxu0 0
    %2913 = vmatpush1.bf16.msra.mxu0 %v2897
    %2914 = vmatprep.subr.bf16.mxu0 0
    %2915 = vmatpush1.bf16.msra.mxu0 %v2896
    %2916 = vmatprep.subr.bf16.mxu0 0
    %2917 = vmatpush1.bf16.msra.mxu0 %v2895
    %2918 = vmatprep.subr.bf16.mxu0 0
    %2919 = vmatpush1.bf16.msra.mxu0 %v2894
    %2920 = vmatprep.subr.bf16.mxu0 0
    %2921 = vmatpush1.bf16.msra.mxu0 %v2893
    %2922 = vmatprep.subr.bf16.mxu0 0
    %2923 = vmatpush2.bf16.msra.mxu0 0
    %2924 = vmatprep.subr.bf16.mxu0 0
    %2925 = vmatpush2.bf16.msra.mxu0 0
    %2926 = vmatprep.subr.bf16.mxu0 0
    %2927 = vmatpush2.bf16.msra.mxu0 0
    %2928 = vmatprep.subr.bf16.mxu0 0
    %2929 = vmatpush2.bf16.msra.mxu0 0
    %2930 = vmatprep.subr.bf16.mxu0 0
    %2931 = vmatpush2.bf16.msra.mxu0 0
    %2932 = vmatprep.subr.bf16.mxu0 0
    %2933 = vmatpush2.bf16.msra.mxu0 0
    %2934 = vmatprep.subr.bf16.mxu0 0
    %2935 = vmatpush2.bf16.msra.mxu0 0
    %2936 = vmatprep.subr.bf16.mxu0 0
    %2937 = vmatpush2.bf16.msra.mxu0 0
    %2938 = vmatprep.mubr.bf16.mxu0 0
    %2939 = vmatmul.mubr.bf16.gmra.mxu0 %v2904
    %v2940 = vpop.f32.mrf.mxu0
    %v2941 = vadd.f32 0.0, %v2940
    %v2942 = vpop.f32.mrf.mxu0
    %v2943 = vpop.f32.mrf.mxu0
    %v2944 = vpop.f32.mrf.mxu0
    %2945 = vdwg.mxu0
    %v2946 = vadd.f32 %v2860, %v2941
    %s2947 = scalar_lea.vmem %s3, 160
    %v2948 = vld [vmem:[%s2947] sm:$0xf]
    %v2949 = vld [vmem:[%s2947 + $0x4] sm:$0xf]
    %v2950 = vld [vmem:[%s2947 + $0x8] sm:$0xf]
    %v2951 = vld [vmem:[%s2947 + $0xc] sm:$0xf]
    %v2952 = vld [vmem:[%s2947 + $0x10] sm:$0xf]
    %v2953 = vld [vmem:[%s2947 + $0x14] sm:$0xf]
    %v2954 = vld [vmem:[%s2947 + $0x18] sm:$0xf]
    %v2955 = vld [vmem:[%s2947 + $0x1c] sm:$0xf]
    %v2956 = vld [vmem:[%s2947 + $0x20] sm:$0xf]
    %v2957 = vld [vmem:[%s2947 + $0x24] sm:$0xf]
    %v2958 = vrot.slane %v2604, 4
    %v2969 = vunpack.c.l.b16 %v2948
    %v2970 = vunpack.c.l.b16 %v2949
    %v2971 = vunpack.c.l.b16 %v2950
    %v2972 = vunpack.c.l.b16 %v2951
    %v2973 = vunpack.c.l.b16 %v2952
    %v2974 = vunpack.c.l.b16 %v2953
    %v2975 = vunpack.c.l.b16 %v2954
    %v2976 = vunpack.c.l.b16 %v2955
    %v2977 = vunpack.c.l.b16 %v2956
    %v2978 = vunpack.c.l.b16 %v2957
    %v2979 = vpack.c.b16 %v2970, %v2969
    %v2980 = vpack.c.b16 %v2972, %v2971
    %v2981 = vpack.c.b16 %v2974, %v2973
    %v2982 = vpack.c.b16 %v2976, %v2975
    %v2983 = vpack.c.b16 %v2978, %v2977
    %v2990 = vsel %vm2658, %v2958, 0
    %2992 = vmatprep.subr.bf16.mxu0 0
    %2993 = vmatpush1.bf16.msra.mxu0 0
    %2994 = vmatprep.subr.bf16.mxu0 0
    %2995 = vmatpush1.bf16.msra.mxu0 0
    %2996 = vmatprep.subr.bf16.mxu0 0
    %2997 = vmatpush1.bf16.msra.mxu0 0
    %2998 = vmatprep.subr.bf16.mxu0 0
    %2999 = vmatpush1.bf16.msra.mxu0 %v2983
    %3000 = vmatprep.subr.bf16.mxu0 0
    %3001 = vmatpush1.bf16.msra.mxu0 %v2982
    %3002 = vmatprep.subr.bf16.mxu0 0
    %3003 = vmatpush1.bf16.msra.mxu0 %v2981
    %3004 = vmatprep.subr.bf16.mxu0 0
    %3005 = vmatpush1.bf16.msra.mxu0 %v2980
    %3006 = vmatprep.subr.bf16.mxu0 0
    %3007 = vmatpush1.bf16.msra.mxu0 %v2979
    %3008 = vmatprep.subr.bf16.mxu0 0
    %3009 = vmatpush2.bf16.msra.mxu0 0
    %3010 = vmatprep.subr.bf16.mxu0 0
    %3011 = vmatpush2.bf16.msra.mxu0 0
    %3012 = vmatprep.subr.bf16.mxu0 0
    %3013 = vmatpush2.bf16.msra.mxu0 0
    %3014 = vmatprep.subr.bf16.mxu0 0
    %3015 = vmatpush2.bf16.msra.mxu0 0
    %3016 = vmatprep.subr.bf16.mxu0 0
    %3017 = vmatpush2.bf16.msra.mxu0 0
    %3018 = vmatprep.subr.bf16.mxu0 0
    %3019 = vmatpush2.bf16.msra.mxu0 0
    %3020 = vmatprep.subr.bf16.mxu0 0
    %3021 = vmatpush2.bf16.msra.mxu0 0
    %3022 = vmatprep.subr.bf16.mxu0 0
    %3023 = vmatpush2.bf16.msra.mxu0 0
    %3024 = vmatprep.mubr.bf16.mxu0 0
    %3025 = vmatmul.mubr.bf16.gmra.mxu0 %v2990
    %v3026 = vpop.f32.mrf.mxu0
    %v3027 = vadd.f32 0.0, %v3026
    %v3028 = vpop.f32.mrf.mxu0
    %v3029 = vpop.f32.mrf.mxu0
    %v3030 = vpop.f32.mrf.mxu0
    %3031 = vdwg.mxu0
    %v3032 = vadd.f32 %v2946, %v3027
    %v3033 = vadd.f32 %v3032, %v148
    %v3034 = vmax.f32 %v3033, 0.0
    %v3035 = vpack.c.bf16 %v3034, %v3034
    %v3051 = vunpack.c.l.b16 %v119
    %v3052 = vunpack.c.l.b16 %v120
    %v3053 = vunpack.c.l.b16 %v121
    %v3054 = vunpack.c.l.b16 %v122
    %v3055 = vunpack.c.l.b16 %v123
    %v3056 = vunpack.c.l.b16 %v124
    %v3057 = vunpack.c.l.b16 %v125
    %v3058 = vunpack.c.l.b16 %v126
    %v3059 = vunpack.c.l.b16 %v127
    %v3060 = vunpack.c.l.b16 %v128
    %v3061 = vunpack.c.l.b16 %v129
    %v3062 = vunpack.c.l.b16 %v130
    %v3063 = vunpack.c.l.b16 %v131
    %v3064 = vunpack.c.l.b16 %v132
    %v3065 = vunpack.c.l.b16 %v133
    %v3066 = vpack.c.b16 %v3052, %v3051
    %v3067 = vpack.c.b16 %v3054, %v3053
    %v3068 = vpack.c.b16 %v3056, %v3055
    %v3069 = vpack.c.b16 %v3058, %v3057
    %v3070 = vpack.c.b16 %v3060, %v3059
    %v3071 = vpack.c.b16 %v3062, %v3061
    %v3072 = vpack.c.b16 %v3064, %v3063
    %v3073 = vpack.c.b16 %v3065, %v3065
    %vm3081 = vcmask 982016
    %v3083 = vsel %vm3081, %v3035, 0
    %v3086 = vsel %vm1383, %v3073, 0
    %3088 = vmatprep.subr.bf16.mxu0 0
    %3089 = vmatpush1.bf16.msra.mxu0 %v3086
    %3090 = vmatprep.subr.bf16.mxu0 0
    %3091 = vmatpush1.bf16.msra.mxu0 %v3072
    %3092 = vmatprep.subr.bf16.mxu0 0
    %3093 = vmatpush1.bf16.msra.mxu0 %v3071
    %3094 = vmatprep.subr.bf16.mxu0 0
    %3095 = vmatpush1.bf16.msra.mxu0 %v3070
    %3096 = vmatprep.subr.bf16.mxu0 0
    %3097 = vmatpush1.bf16.msra.mxu0 %v3069
    %3098 = vmatprep.subr.bf16.mxu0 0
    %3099 = vmatpush1.bf16.msra.mxu0 %v3068
    %3100 = vmatprep.subr.bf16.mxu0 0
    %3101 = vmatpush1.bf16.msra.mxu0 %v3067
    %3102 = vmatprep.subr.bf16.mxu0 0
    %3103 = vmatpush1.bf16.msra.mxu0 %v3066
    %3104 = vmatprep.subr.bf16.mxu0 0
    %3105 = vmatpush2.bf16.msra.mxu0 0
    %3106 = vmatprep.subr.bf16.mxu0 0
    %3107 = vmatpush2.bf16.msra.mxu0 0
    %3108 = vmatprep.subr.bf16.mxu0 0
    %3109 = vmatpush2.bf16.msra.mxu0 0
    %3110 = vmatprep.subr.bf16.mxu0 0
    %3111 = vmatpush2.bf16.msra.mxu0 0
    %3112 = vmatprep.subr.bf16.mxu0 0
    %3113 = vmatpush2.bf16.msra.mxu0 0
    %3114 = vmatprep.subr.bf16.mxu0 0
    %3115 = vmatpush2.bf16.msra.mxu0 0
    %3116 = vmatprep.subr.bf16.mxu0 0
    %3117 = vmatpush2.bf16.msra.mxu0 0
    %3118 = vmatprep.subr.bf16.mxu0 0
    %3119 = vmatpush2.bf16.msra.mxu0 0
    %3120 = vmatprep.mubr.bf16.mxu0 0
    %3121 = vmatmul.mubr.bf16.gmra.mxu0 %v3083
    %v3122 = vpop.f32.mrf.mxu0
    %v3123 = vadd.f32 %v149, %v3122
    %v3124 = vpop.f32.mrf.mxu0
    %v3125 = vpop.f32.mrf.mxu0
    %v3126 = vpop.f32.mrf.mxu0
    %3127 = vdwg.mxu0
    %v3128 = vmax.f32 %v3123, 0.0
    %v3129 = vpack.c.bf16 %v3128, %v3128
    %v3141 = vunpack.c.l.b16 %v134
    %v3142 = vunpack.c.l.b16 %v135
    %v3143 = vunpack.c.l.b16 %v136
    %v3144 = vunpack.c.l.b16 %v137
    %v3145 = vunpack.c.l.b16 %v138
    %v3146 = vunpack.c.l.b16 %v139
    %v3147 = vunpack.c.l.b16 %v140
    %v3148 = vunpack.c.l.b16 %v141
    %v3149 = vunpack.c.l.b16 %v142
    %v3150 = vunpack.c.l.b16 %v143
    %v3151 = vunpack.c.l.b16 %v144
    %v3152 = vpack.c.b16 %v3142, %v3141
    %v3153 = vpack.c.b16 %v3144, %v3143
    %v3154 = vpack.c.b16 %v3146, %v3145
    %v3155 = vpack.c.b16 %v3148, %v3147
    %v3156 = vpack.c.b16 %v3150, %v3149
    %v3157 = vpack.c.b16 %v3151, %v3151
    %v3164 = vsel %vm1650, %v3129, 0
    %v3167 = vsel %vm1657, %v3157, 0
    %3169 = vmatprep.subr.bf16.mxu0 0
    %3170 = vmatpush1.bf16.msra.mxu0 0
    %3171 = vmatprep.subr.bf16.mxu0 0
    %3172 = vmatpush1.bf16.msra.mxu0 0
    %3173 = vmatprep.subr.bf16.mxu0 0
    %3174 = vmatpush1.bf16.msra.mxu0 %v3167
    %3175 = vmatprep.subr.bf16.mxu0 0
    %3176 = vmatpush1.bf16.msra.mxu0 %v3156
    %3177 = vmatprep.subr.bf16.mxu0 0
    %3178 = vmatpush1.bf16.msra.mxu0 %v3155
    %3179 = vmatprep.subr.bf16.mxu0 0
    %3180 = vmatpush1.bf16.msra.mxu0 %v3154
    %3181 = vmatprep.subr.bf16.mxu0 0
    %3182 = vmatpush1.bf16.msra.mxu0 %v3153
    %3183 = vmatprep.subr.bf16.mxu0 0
    %3184 = vmatpush1.bf16.msra.mxu0 %v3152
    %3185 = vmatprep.subr.bf16.mxu0 0
    %3186 = vmatpush2.bf16.msra.mxu0 0
    %3187 = vmatprep.subr.bf16.mxu0 0
    %3188 = vmatpush2.bf16.msra.mxu0 0
    %3189 = vmatprep.subr.bf16.mxu0 0
    %3190 = vmatpush2.bf16.msra.mxu0 0
    %3191 = vmatprep.subr.bf16.mxu0 0
    %3192 = vmatpush2.bf16.msra.mxu0 0
    %3193 = vmatprep.subr.bf16.mxu0 0
    %3194 = vmatpush2.bf16.msra.mxu0 0
    %3195 = vmatprep.subr.bf16.mxu0 0
    %3196 = vmatpush2.bf16.msra.mxu0 0
    %3197 = vmatprep.subr.bf16.mxu0 0
    %3198 = vmatpush2.bf16.msra.mxu0 0
    %3199 = vmatprep.subr.bf16.mxu0 0
    %3200 = vmatpush2.bf16.msra.mxu0 0
    %3201 = vmatprep.mubr.bf16.mxu0 0
    %3202 = vmatmul.mubr.bf16.gmra.mxu0 %v3164
    %v3203 = vpop.f32.mrf.mxu0
    %v3204 = vadd.f32 %v150, %v3203
    %v3205 = vpop.f32.mrf.mxu0
    %v3206 = vpop.f32.mrf.mxu0
    %v3207 = vpop.f32.mrf.mxu0
    %3208 = vdwg.mxu0
    %vm3209 = vcmask 74752
    %3210 = vst.msk [vmem:[#allocation2] sm:$0x3] %vm3209, %v3204
    // Predicated region
    $region26: #{net_forward.1} parent=1 // pred_check
      _
    $region27: #{net_forward.1} parent=1 // pred_check_branch
      %3212 = sbr.rel (0) target = $region29
    $region28: #{net_forward.1} parent=1 // pred_region
      %s3214 = ssub.s32 32, 32
      %3215 = vsyncadd [#allocation3], %s3214
      %s3217 = sshll.u32 [#allocation2], 4
      %s3218 = int_to_ptr.vmem [resolvable:$true] %s3217
      %3220 = dma.vmem_to_hbm [thread:$0]  %s3218, 32, %s6, [#allocation3]
    $region29: #{net_forward.1} parent=1 // pred_fallthru
      _
    // Predicated region
    $region30: #{net_forward.1} parent=1 // pred_check
      _
    $region31: #{net_forward.1} parent=1 // pred_check_branch
      %3222 = sbr.rel (0) target = $region33
    $region32: #{net_forward.1} parent=1 // pred_region
      %3223 = dma.done [#allocation3], 32
    $region33: #{net_forward.1} parent=1 // pred_fallthru
      _
    %3224 = vsyncpa [#allocation3], 1

</llo_original>
